<compile_context>
chip_gen: v7x
topology: tpu7x:2x2x1
jax: 0.10.0
libtpu: 0.0.40
codegen_flags: <defaults>
</compile_context>

<pallas_src>
import functools
import math

import jax
import jax.numpy as jnp
from jax.experimental import pallas as pl
from jax.experimental.pallas import tpu as pltpu


# ----------------------------------------------------------------------------
# Generic matmul + bias (+ fused ReLU) kernel, M-tiled, used for the conv GEMMs
# ----------------------------------------------------------------------------
def _linear_kernel(x_ref, w_ref, b_ref, o_ref, *, relu):
    acc = jnp.dot(x_ref[...], w_ref[...], preferred_element_type=jnp.float32)
    acc = acc + b_ref[...]
    if relu:
        acc = jnp.maximum(acc, 0.0)
    o_ref[...] = acc.astype(o_ref.dtype)


def linear_pallas(x, w, b, relu=False, tm=512):
    """x: [M, K], w: [K, N], b: [N] -> x @ w + b (optionally fused ReLU)."""
    M, K = x.shape
    N = w.shape[1]
    tm_eff = M if M <= tm else tm          # tm is a multiple of 8; small M -> 1 step
    return pl.pallas_call(
        functools.partial(_linear_kernel, relu=relu),
        out_shape=jax.ShapeDtypeStruct((M, N), jnp.float32),
        grid=(pl.cdiv(M, tm_eff),),
        in_specs=[
            pl.BlockSpec((tm_eff, K), lambda i: (i, 0)),
            pl.BlockSpec((K, N), lambda i: (0, 0)),
            pl.BlockSpec((1, N), lambda i: (0, 0)),
        ],
        out_specs=pl.BlockSpec((tm_eff, N), lambda i: (i, 0)),
        compiler_params=pltpu.CompilerParams(dimension_semantics=("parallel",)),
    )(x, w, b.reshape(1, N))


# ----------------------------------------------------------------------------
# Conv2d (valid, strided) as channel-last im2col + Pallas matmul+bias+ReLU
# ----------------------------------------------------------------------------
def conv2d_relu_pallas(x, w, b, stride):
    # x: [B, H, W, C] NHWC, w: [F, C, k, k] (torch layout), b: [F]
    B, H, W, C = x.shape
    F, _, k, _ = w.shape
    Ho = (H - k) // stride + 1
    Wo = (W - k) // stride + 1
    cols = []
    for di in range(k):
        for dj in range(k):
            cols.append(x[:, di:di + stride * (Ho - 1) + 1:stride,
                             dj:dj + stride * (Wo - 1) + 1:stride, :])   # [B,Ho,Wo,C]
    # last-dim layout: (kh, kw, C), kh slowest / C fastest
    patches = jnp.concatenate(cols, axis=-1).reshape(B * Ho * Wo, k * k * C)
    w2 = w.transpose(0, 2, 3, 1).reshape(F, k * k * C).T                  # [k*k*C, F]
    out = linear_pallas(patches, w2, b, relu=True)                        # [B*Ho*Wo, F]
    return out.reshape(B, Ho, Wo, F)                                      # stays NHWC


# ----------------------------------------------------------------------------
# Fused post-conv kernel: main/aux heads + full multi-head attention block
# ----------------------------------------------------------------------------
def _post_conv_kernel(emb_ref, w_heads_ref, b_heads_ref,
                      wq_ref, bq_ref, wkv_ref, bkv_ref,
                      wc_ctx_ref, wc_q_ref, bc_ref,
                      wo_ref, bo_ref,
                      q_ref, aux_ref, tq_ref, attw_ref,
                      *, heads, E, attn_heads, scaling):
    f32 = jnp.float32
    emb = emb_ref[...]                                                   # [tb, lin]

    # --- main + all aux heads: one wide GEMM, slice afterwards -------------
    ho = jnp.dot(emb, w_heads_ref[...], preferred_element_type=f32) + b_heads_ref[...]
    main = ho[:, :E]                                                     # [tb, E]
    aux = ho[:, E:]                                                      # [tb, heads*E]
    q_ref[...] = main.astype(q_ref.dtype)
    aux_ref[...] = aux.astype(aux_ref.dtype)

    # --- shared context projection (bias added once, reused by q and k) ----
    ctx_proj = jnp.dot(emb, wc_ctx_ref[...], preferred_element_type=f32) + bc_ref[...]

    # --- query path: in-proj -> context layer -> scaling -------------------
    q0 = jnp.dot(main, wq_ref[...], preferred_element_type=f32) + bq_ref[...]
    q1 = (ctx_proj + jnp.dot(q0, wc_q_ref[...], preferred_element_type=f32)) * scaling

    # --- key / value paths, one per attention slot (= aux head) ------------
    k_slots, v_slots = [], []
    for s in range(heads):
        a_s = aux[:, s * E:(s + 1) * E]                                  # [tb, E]
        kv_s = jnp.dot(a_s, wkv_ref[...], preferred_element_type=f32) + bkv_ref[...]
        k0_s, v0_s = kv_s[:, :E], kv_s[:, E:]
        k_slots.append(ctx_proj + jnp.dot(k0_s, wc_q_ref[...],
                                          preferred_element_type=f32))  # [tb, E]
        v_slots.append(v0_s)

    # --- attention core (statically unrolled over attn heads and slots) ----
    hd = E // attn_heads
    wo = wo_ref[...]                                                     # [E, E]
    w_slot = [None] * heads                                              # per-slot prob sums
    tq_acc = None
    for a in range(attn_heads):
        lo, hi = a * hd, (a + 1) * hd
        parts = [jnp.sum(q1[:, lo:hi] * k_slots[s][:, lo:hi],
                         axis=-1, keepdims=True) for s in range(heads)]  # S x [tb, 1]
        m = parts[0]
        for c in parts[1:]:
            m = jnp.maximum(m, c)
        exps = [jnp.exp(c - m) for c in parts]
        denom = exps[0]
        for e_ in exps[1:]:
            denom = denom + e_
        inv = 1.0 / denom
        ps = [e_ * inv for e_ in exps]                                   # softmax probs
        for s in range(heads):
            w_slot[s] = ps[s] if w_slot[s] is None else w_slot[s] + ps[s]
        out_a = ps[0] * v_slots[0][:, lo:hi]
        for s in range(1, heads):
            out_a = out_a + ps[s] * v_slots[s][:, lo:hi]                 # [tb, hd]
        # out_proj distributed over attn heads: concat_a(out_a) @ Wo == sum_a out_a @ Wo[lo:hi]
        contrib = jnp.dot(out_a, wo[lo:hi, :], preferred_element_type=f32)
        tq_acc = contrib if tq_acc is None else tq_acc + contrib

    tq_ref[...] = (tq_acc + bo_ref[...]).astype(tq_ref.dtype)
    inv_ah = 1.0 / attn_heads
    for s in range(heads):
        attw_ref[:, s:s + 1] = (w_slot[s] * inv_ah).astype(attw_ref.dtype)


def post_conv_fused_pallas(emb, params, attn_heads):
    B, lin = emb.shape
    E = params["main_b"].shape[0]
    heads = len(params["aux"])
    hd = E // attn_heads
    scaling = float(hd) ** (-0.5)

    # Stacked head weights: one [lin, (1+heads)*E] GEMM for main + all aux heads.
    w_heads = jnp.concatenate([params["main_w"].T] + [aw.T for aw, _ in params["aux"]], axis=1)
    b_heads = jnp.concatenate([params["main_b"]] + [ab for _, ab in params["aux"]])
    Wi, bi = params["in_proj_w"], params["in_proj_b"]                    # [3E,E], [3E]
    wq, bq = Wi[:E].T, bi[:E]
    wkv, bkv = Wi[E:].T, bi[E:]                                          # [E,2E], [2E]
    Wc, bc = params["ctx_w"], params["ctx_b"]                            # [E, lin+E], [E]
    wc_ctx, wc_q = Wc[:, :lin].T, Wc[:, lin:].T                          # [lin,E], [E,E]
    wo, bo = params["out_proj_w"].T, params["out_proj_b"]                # [E,E], [E]

    NH = (1 + heads) * E
    tb = B if B <= 256 else 256                                          # batch row tile

    def row_spec(n):
        return pl.BlockSpec((tb, n), lambda i: (i, 0))

    def full2(a):
        return pl.BlockSpec(a.shape, lambda i: (0, 0))

    kernel = functools.partial(_post_conv_kernel, heads=heads, E=E,
                               attn_heads=attn_heads, scaling=scaling)
    q, aux_flat, tq, attw = pl.pallas_call(
        kernel,
        out_shape=(jax.ShapeDtypeStruct((B, E), jnp.float32),            # q (main head)
                   jax.ShapeDtypeStruct((B, heads * E), jnp.float32),    # aux heads (flat)
                   jax.ShapeDtypeStruct((B, E), jnp.float32),            # tilde_q
                   jax.ShapeDtypeStruct((B, heads), jnp.float32)),       # attention weights
        grid=(pl.cdiv(B, tb),),
        in_specs=[
            row_spec(lin),
            full2(w_heads), pl.BlockSpec((1, NH), lambda i: (0, 0)),
            full2(wq), pl.BlockSpec((1, E), lambda i: (0, 0)),
            full2(wkv), pl.BlockSpec((1, 2 * E), lambda i: (0, 0)),
            full2(wc_ctx), full2(wc_q), pl.BlockSpec((1, E), lambda i: (0, 0)),
            full2(wo), pl.BlockSpec((1, E), lambda i: (0, 0)),
        ],
        out_specs=(row_spec(E), row_spec(heads * E), row_spec(E), row_spec(heads)),
        compiler_params=pltpu.CompilerParams(dimension_semantics=("parallel",)),
    )(emb, w_heads, b_heads.reshape(1, NH),
      wq, bq.reshape(1, E), wkv, bkv.reshape(1, 2 * E),
      wc_ctx, wc_q, bc.reshape(1, E), wo, bo.reshape(1, E))

    return (q,
            aux_flat.reshape(B, heads, E),
            tq.reshape(B, 1, E),
            attw.reshape(B, 1, heads))


# ----------------------------------------------------------------------------
# MultiHeadDQN forward
# ----------------------------------------------------------------------------
CONV_LAYERS = ((16, 5, 2), (32, 5, 2), (32, 5, 2))


def multihead_dqn_forward(x, params, *, attn_heads=1):
    # conv stack, kept channel-last (NHWC) between layers
    x = jnp.transpose(x, (0, 2, 3, 1))                       # NCHW -> NHWC once
    for (cw, cb), (_, _, stride) in zip(params["convs"], CONV_LAYERS):
        x = conv2d_relu_pallas(x, cw, cb, stride)
    B = x.shape[0]
    # single transpose back so the flatten matches torch's NCHW x.view(B, -1)
    emb = jnp.transpose(x, (0, 3, 1, 2)).reshape(B, -1)      # [B, lin]

    q, aux_qs, tilde_q, attn_w = post_conv_fused_pallas(emb, params, attn_heads)

    return {
        "embedding": emb,            # [B, lin]
        "q": q,                      # [B, outputs]
        "aux_qs": aux_qs,            # [B, heads, outputs]
        "tilde_q": tilde_q,          # [B, 1, outputs]
        "attention": attn_w,         # [B, 1, heads]
    }


# ----------------------------------------------------------------------------
# Deterministic parameter init (shapes follow MultiHeadDQN.__init__)
# ----------------------------------------------------------------------------
def init_params(key, c, h, w, heads, outputs):
    keys = iter(jax.random.split(key, 64))
    nk = lambda: next(keys)
    convs = []
    prev, convw, convh = c, w, h
    for f, k, s in CONV_LAYERS:
        fan_in = prev * k * k
        cw = jax.random.normal(nk(), (f, prev, k, k), jnp.float32) / math.sqrt(fan_in)
        cb = jax.random.normal(nk(), (f,), jnp.float32) * 0.01
        convs.append((cw, cb))
        prev = f
        convw = (convw - k) // s + 1
        convh = (convh - k) // s + 1
    lin = convw * convh * prev
    E = outputs
    params = {
        "convs": convs,
        "main_w": jax.random.normal(nk(), (E, lin), jnp.float32) / math.sqrt(lin),
        "main_b": jax.random.normal(nk(), (E,), jnp.float32) * 0.01,
        "aux": [(jax.random.normal(nk(), (E, lin), jnp.float32) / math.sqrt(lin),
                 jax.random.normal(nk(), (E,), jnp.float32) * 0.01)
                for _ in range(heads)],
        "in_proj_w": jax.random.normal(nk(), (3 * E, E), jnp.float32) / math.sqrt(E),
        "in_proj_b": jnp.zeros((3 * E,), jnp.float32),
        "ctx_w": jax.random.normal(nk(), (E, lin + E), jnp.float32) / math.sqrt(lin + E),
        "ctx_b": jnp.zeros((E,), jnp.float32),
        "out_proj_w": jax.random.normal(nk(), (E, E), jnp.float32) / math.sqrt(E),
        "out_proj_b": jnp.zeros((E,), jnp.float32),
    }
    return params, lin


if __name__ == "__main__":
    B, C, H, W = 2, 4, 32, 32           # 32 -> 14 -> 5 -> 1 spatial (valid, stride 2)
    heads, outputs, attn_heads = 3, 8, 1

    key = jax.random.PRNGKey(0)
    kx, kp = jax.random.split(key)
    x = jax.random.normal(kx, (B, C, H, W), jnp.float32)   # NCHW, like PyTorch
    params, lin = init_params(kp, C, H, W, heads, outputs)

    fwd = jax.jit(functools.partial(multihead_dqn_forward, attn_heads=attn_heads))
    out = fwd(x, params)
    jax.block_until_ready(out)

    assert out["embedding"].shape == (B, lin)
    assert out["q"].shape == (B, outputs)
    assert out["aux_qs"].shape == (B, heads, outputs)
    assert out["tilde_q"].shape == (B, 1, outputs)
    assert out["attention"].shape == (B, 1, heads)
    assert bool(jnp.all(jnp.isfinite(out["tilde_q"])))
    assert bool(jnp.allclose(jnp.sum(out["attention"], axis=-1), 1.0, atol=1e-5))
    print("KERNEL_OK")
</pallas_src>

<mosaic_0001>
module attributes {stable_mosaic.version = 11 : i64} {
  func.func @_linear_kernel(%arg0: i32, %arg1: memref<392x100xf32, #tpu.memory_space<vmem>>, %arg2: memref<100x16xf32, #tpu.memory_space<vmem>>, %arg3: memref<1x16xf32, #tpu.memory_space<vmem>>, %arg4: memref<392x16xf32, #tpu.memory_space<vmem>>) attributes {dimension_semantics = [#tpu.dimension_semantics<parallel>], iteration_bounds = array<i64: 1>, scalar_prefetch = 0 : i64, scratch_operands = 0 : i64, tpu.core_type = #tpu.core_type<tc>, window_params = [{transform_indices = @transform_0, window_bounds = array<i64: 392, 100>}, {pipeline_mode = #tpu.pipeline_mode<synchronous>, transform_indices = @transform_1, window_bounds = array<i64: 100, 16>}, {pipeline_mode = #tpu.pipeline_mode<synchronous>, transform_indices = @transform_2, window_bounds = array<i64: 1, 16>}, {transform_indices = @transform_3, window_bounds = array<i64: 392, 16>}]} {
    %c0 = arith.constant 0 : index
    %c0_0 = arith.constant 0 : index
    %0 = vector.load %arg1[%c0, %c0_0] : memref<392x100xf32, #tpu.memory_space<vmem>>, vector<392x100xf32>
    %c0_1 = arith.constant 0 : index
    %c0_2 = arith.constant 0 : index
    %1 = vector.load %arg2[%c0_1, %c0_2] : memref<100x16xf32, #tpu.memory_space<vmem>>, vector<100x16xf32>
    %cst = arith.constant dense<0.000000e+00> : vector<392x16xf32>
    %2 = tpu.matmul %0, %1, %cst {dimension_numbers = #tpu.dot_dimension_numbers<[1], [0], [0], [1], [0, 0, 1, 1], [], []>} : vector<392x100xf32>, vector<100x16xf32>, vector<392x16xf32> -> vector<392x16xf32>
    %c0_3 = arith.constant 0 : index
    %c0_4 = arith.constant 0 : index
    %3 = vector.load %arg3[%c0_3, %c0_4] : memref<1x16xf32, #tpu.memory_space<vmem>>, vector<1x16xf32>
    %4 = vector.broadcast %3 : vector<1x16xf32> to vector<392x16xf32>
    %5 = arith.addf %2, %4 : vector<392x16xf32>
    %cst_5 = arith.constant 0.000000e+00 : f32
    %6 = vector.broadcast %cst_5 : f32 to vector<392x16xf32>
    %7 = arith.maximumf %5, %6 : vector<392x16xf32>
    %c0_6 = arith.constant 0 : index
    %c0_7 = arith.constant 0 : index
    %8 = vector.load %arg4[%c0_6, %c0_7] : memref<392x16xf32, #tpu.memory_space<vmem>>, vector<392x16xf32>
    tpu.vector_store %arg4[%c0_6, %c0_7], %7 {strides = array<i32>} : memref<392x16xf32, #tpu.memory_space<vmem>>, vector<392x16xf32>,
    return
  }
  func.func @transform_0(%arg0: i32) -> (i32, i32) {
    %c0_i32 = arith.constant 0 : i32
    %c0_i32_0 = arith.constant 0 : i32
    return %arg0, %c0_i32 : i32, i32
  }
  func.func @transform_1(%arg0: i32) -> (i32, i32) {
    %c0_i32 = arith.constant 0 : i32
    %c0_i32_0 = arith.constant 0 : i32
    %c0_i32_1 = arith.constant 0 : i32
    return %c0_i32, %c0_i32_0 : i32, i32
  }
  func.func @transform_2(%arg0: i32) -> (i32, i32) {
    %c0_i32 = arith.constant 0 : i32
    %c0_i32_0 = arith.constant 0 : i32
    %c0_i32_1 = arith.constant 0 : i32
    return %c0_i32, %c0_i32_0 : i32, i32
  }
  func.func @transform_3(%arg0: i32) -> (i32, i32) {
    %c0_i32 = arith.constant 0 : i32
    %c0_i32_0 = arith.constant 0 : i32
    return %arg0, %c0_i32 : i32, i32
  }
}

module attributes {stable_mosaic.version = 11 : i64} {
  func.func @_linear_kernel(%arg0: i32, %arg1: memref<50x400xf32, #tpu.memory_space<vmem>>, %arg2: memref<400x32xf32, #tpu.memory_space<vmem>>, %arg3: memref<1x32xf32, #tpu.memory_space<vmem>>, %arg4: memref<50x32xf32, #tpu.memory_space<vmem>>) attributes {dimension_semantics = [#tpu.dimension_semantics<parallel>], iteration_bounds = array<i64: 1>, scalar_prefetch = 0 : i64, scratch_operands = 0 : i64, tpu.core_type = #tpu.core_type<tc>, window_params = [{transform_indices = @transform_0, window_bounds = array<i64: 50, 400>}, {pipeline_mode = #tpu.pipeline_mode<synchronous>, transform_indices = @transform_1, window_bounds = array<i64: 400, 32>}, {pipeline_mode = #tpu.pipeline_mode<synchronous>, transform_indices = @transform_2, window_bounds = array<i64: 1, 32>}, {transform_indices = @transform_3, window_bounds = array<i64: 50, 32>}]} {
    %c0 = arith.constant 0 : index
    %c0_0 = arith.constant 0 : index
    %0 = vector.load %arg1[%c0, %c0_0] : memref<50x400xf32, #tpu.memory_space<vmem>>, vector<50x400xf32>
    %c0_1 = arith.constant 0 : index
    %c0_2 = arith.constant 0 : index
    %1 = vector.load %arg2[%c0_1, %c0_2] : memref<400x32xf32, #tpu.memory_space<vmem>>, vector<400x32xf32>
    %cst = arith.constant dense<0.000000e+00> : vector<50x32xf32>
    %2 = tpu.matmul %0, %1, %cst {dimension_numbers = #tpu.dot_dimension_numbers<[1], [0], [0], [1], [0, 0, 1, 1], [], []>} : vector<50x400xf32>, vector<400x32xf32>, vector<50x32xf32> -> vector<50x32xf32>
    %c0_3 = arith.constant 0 : index
    %c0_4 = arith.constant 0 : index
    %3 = vector.load %arg3[%c0_3, %c0_4] : memref<1x32xf32, #tpu.memory_space<vmem>>, vector<1x32xf32>
    %4 = vector.broadcast %3 : vector<1x32xf32> to vector<50x32xf32>
    %5 = arith.addf %2, %4 : vector<50x32xf32>
    %cst_5 = arith.constant 0.000000e+00 : f32
    %6 = vector.broadcast %cst_5 : f32 to vector<50x32xf32>
    %7 = arith.maximumf %5, %6 : vector<50x32xf32>
    %c0_6 = arith.constant 0 : index
    %c0_7 = arith.constant 0 : index
    %8 = vector.load %arg4[%c0_6, %c0_7] : memref<50x32xf32, #tpu.memory_space<vmem>>, vector<50x32xf32>
    tpu.vector_store %arg4[%c0_6, %c0_7], %7 {strides = array<i32>} : memref<50x32xf32, #tpu.memory_space<vmem>>, vector<50x32xf32>,
    return
  }
  func.func @transform_0(%arg0: i32) -> (i32, i32) {
    %c0_i32 = arith.constant 0 : i32
    %c0_i32_0 = arith.constant 0 : i32
    return %arg0, %c0_i32 : i32, i32
  }
  func.func @transform_1(%arg0: i32) -> (i32, i32) {
    %c0_i32 = arith.constant 0 : i32
    %c0_i32_0 = arith.constant 0 : i32
    %c0_i32_1 = arith.constant 0 : i32
    return %c0_i32, %c0_i32_0 : i32, i32
  }
  func.func @transform_2(%arg0: i32) -> (i32, i32) {
    %c0_i32 = arith.constant 0 : i32
    %c0_i32_0 = arith.constant 0 : i32
    %c0_i32_1 = arith.constant 0 : i32
    return %c0_i32, %c0_i32_0 : i32, i32
  }
  func.func @transform_3(%arg0: i32) -> (i32, i32) {
    %c0_i32 = arith.constant 0 : i32
    %c0_i32_0 = arith.constant 0 : i32
    return %arg0, %c0_i32 : i32, i32
  }
}

module attributes {stable_mosaic.version = 11 : i64} {
  func.func @_linear_kernel(%arg0: i32, %arg1: memref<2x800xf32, #tpu.memory_space<vmem>>, %arg2: memref<800x32xf32, #tpu.memory_space<vmem>>, %arg3: memref<1x32xf32, #tpu.memory_space<vmem>>, %arg4: memref<2x32xf32, #tpu.memory_space<vmem>>) attributes {dimension_semantics = [#tpu.dimension_semantics<parallel>], iteration_bounds = array<i64: 1>, scalar_prefetch = 0 : i64, scratch_operands = 0 : i64, tpu.core_type = #tpu.core_type<tc>, window_params = [{transform_indices = @transform_0, window_bounds = array<i64: 2, 800>}, {pipeline_mode = #tpu.pipeline_mode<synchronous>, transform_indices = @transform_1, window_bounds = array<i64: 800, 32>}, {pipeline_mode = #tpu.pipeline_mode<synchronous>, transform_indices = @transform_2, window_bounds = array<i64: 1, 32>}, {transform_indices = @transform_3, window_bounds = array<i64: 2, 32>}]} {
    %c0 = arith.constant 0 : index
    %c0_0 = arith.constant 0 : index
    %0 = vector.load %arg1[%c0, %c0_0] : memref<2x800xf32, #tpu.memory_space<vmem>>, vector<2x800xf32>
    %c0_1 = arith.constant 0 : index
    %c0_2 = arith.constant 0 : index
    %1 = vector.load %arg2[%c0_1, %c0_2] : memref<800x32xf32, #tpu.memory_space<vmem>>, vector<800x32xf32>
    %cst = arith.constant dense<0.000000e+00> : vector<2x32xf32>
    %2 = tpu.matmul %0, %1, %cst {dimension_numbers = #tpu.dot_dimension_numbers<[1], [0], [0], [1], [0, 0, 1, 1], [], []>} : vector<2x800xf32>, vector<800x32xf32>, vector<2x32xf32> -> vector<2x32xf32>
    %c0_3 = arith.constant 0 : index
    %c0_4 = arith.constant 0 : index
    %3 = vector.load %arg3[%c0_3, %c0_4] : memref<1x32xf32, #tpu.memory_space<vmem>>, vector<1x32xf32>
    %4 = vector.broadcast %3 : vector<1x32xf32> to vector<2x32xf32>
    %5 = arith.addf %2, %4 : vector<2x32xf32>
    %cst_5 = arith.constant 0.000000e+00 : f32
    %6 = vector.broadcast %cst_5 : f32 to vector<2x32xf32>
    %7 = arith.maximumf %5, %6 : vector<2x32xf32>
    %c0_6 = arith.constant 0 : index
    %c0_7 = arith.constant 0 : index
    %8 = vector.load %arg4[%c0_6, %c0_7] : memref<2x32xf32, #tpu.memory_space<vmem>>, vector<2x32xf32>
    tpu.vector_store %arg4[%c0_6, %c0_7], %7 {strides = array<i32>} : memref<2x32xf32, #tpu.memory_space<vmem>>, vector<2x32xf32>,
    return
  }
  func.func @transform_0(%arg0: i32) -> (i32, i32) {
    %c0_i32 = arith.constant 0 : i32
    %c0_i32_0 = arith.constant 0 : i32
    return %arg0, %c0_i32 : i32, i32
  }
  func.func @transform_1(%arg0: i32) -> (i32, i32) {
    %c0_i32 = arith.constant 0 : i32
    %c0_i32_0 = arith.constant 0 : i32
    %c0_i32_1 = arith.constant 0 : i32
    return %c0_i32, %c0_i32_0 : i32, i32
  }
  func.func @transform_2(%arg0: i32) -> (i32, i32) {
    %c0_i32 = arith.constant 0 : i32
    %c0_i32_0 = arith.constant 0 : i32
    %c0_i32_1 = arith.constant 0 : i32
    return %c0_i32, %c0_i32_0 : i32, i32
  }
  func.func @transform_3(%arg0: i32) -> (i32, i32) {
    %c0_i32 = arith.constant 0 : i32
    %c0_i32_0 = arith.constant 0 : i32
    return %arg0, %c0_i32 : i32, i32
  }
}

module attributes {stable_mosaic.version = 11 : i64} {
  func.func @_post_conv_kernel(%arg0: i32, %arg1: memref<2x32xf32, #tpu.memory_space<vmem>>, %arg2: memref<32x32xf32, #tpu.memory_space<vmem>>, %arg3: memref<1x32xf32, #tpu.memory_space<vmem>>, %arg4: memref<8x8xf32, #tpu.memory_space<vmem>>, %arg5: memref<1x8xf32, #tpu.memory_space<vmem>>, %arg6: memref<8x16xf32, #tpu.memory_space<vmem>>, %arg7: memref<1x16xf32, #tpu.memory_space<vmem>>, %arg8: memref<32x8xf32, #tpu.memory_space<vmem>>, %arg9: memref<8x8xf32, #tpu.memory_space<vmem>>, %arg10: memref<1x8xf32, #tpu.memory_space<vmem>>, %arg11: memref<8x8xf32, #tpu.memory_space<vmem>>, %arg12: memref<1x8xf32, #tpu.memory_space<vmem>>, %arg13: memref<2x8xf32, #tpu.memory_space<vmem>>, %arg14: memref<2x24xf32, #tpu.memory_space<vmem>>, %arg15: memref<2x8xf32, #tpu.memory_space<vmem>>, %arg16: memref<2x3xf32, #tpu.memory_space<vmem>>) attributes {dimension_semantics = [#tpu.dimension_semantics<parallel>], iteration_bounds = array<i64: 1>, scalar_prefetch = 0 : i64, scratch_operands = 0 : i64, tpu.core_type = #tpu.core_type<tc>, window_params = [{transform_indices = @transform_0, window_bounds = array<i64: 2, 32>}, {pipeline_mode = #tpu.pipeline_mode<synchronous>, transform_indices = @transform_1, window_bounds = array<i64: 32, 32>}, {pipeline_mode = #tpu.pipeline_mode<synchronous>, transform_indices = @transform_2, window_bounds = array<i64: 1, 32>}, {pipeline_mode = #tpu.pipeline_mode<synchronous>, transform_indices = @transform_3, window_bounds = array<i64: 8, 8>}, {pipeline_mode = #tpu.pipeline_mode<synchronous>, transform_indices = @transform_4, window_bounds = array<i64: 1, 8>}, {pipeline_mode = #tpu.pipeline_mode<synchronous>, transform_indices = @transform_5, window_bounds = array<i64: 8, 16>}, {pipeline_mode = #tpu.pipeline_mode<synchronous>, transform_indices = @transform_6, window_bounds = array<i64: 1, 16>}, {pipeline_mode = #tpu.pipeline_mode<synchronous>, transform_indices = @transform_7, window_bounds = array<i64: 32, 8>}, {pipeline_mode = #tpu.pipeline_mode<synchronous>, transform_indices = @transform_8, window_bounds = array<i64: 8, 8>}, {pipeline_mode = #tpu.pipeline_mode<synchronous>, transform_indices = @transform_9, window_bounds = array<i64: 1, 8>}, {pipeline_mode = #tpu.pipeline_mode<synchronous>, transform_indices = @transform_10, window_bounds = array<i64: 8, 8>}, {pipeline_mode = #tpu.pipeline_mode<synchronous>, transform_indices = @transform_11, window_bounds = array<i64: 1, 8>}, {transform_indices = @transform_12, window_bounds = array<i64: 2, 8>}, {transform_indices = @transform_13, window_bounds = array<i64: 2, 24>}, {transform_indices = @transform_14, window_bounds = array<i64: 2, 8>}, {transform_indices = @transform_15, window_bounds = array<i64: 2, 3>}]} {
    %c0 = arith.constant 0 : index
    %c0_0 = arith.constant 0 : index
    %0 = vector.load %arg1[%c0, %c0_0] : memref<2x32xf32, #tpu.memory_space<vmem>>, vector<2x32xf32>
    %c0_1 = arith.constant 0 : index
    %c0_2 = arith.constant 0 : index
    %1 = vector.load %arg2[%c0_1, %c0_2] : memref<32x32xf32, #tpu.memory_space<vmem>>, vector<32x32xf32>
    %cst = arith.constant dense<0.000000e+00> : vector<2x32xf32>
    %2 = tpu.matmul %0, %1, %cst {dimension_numbers = #tpu.dot_dimension_numbers<[1], [0], [0], [1], [0, 0, 1, 1], [], []>} : vector<2x32xf32>, vector<32x32xf32>, vector<2x32xf32> -> vector<2x32xf32>
    %c0_3 = arith.constant 0 : index
    %c0_4 = arith.constant 0 : index
    %3 = vector.load %arg3[%c0_3, %c0_4] : memref<1x32xf32, #tpu.memory_space<vmem>>, vector<1x32xf32>
    %4 = vector.broadcast %3 : vector<1x32xf32> to vector<2x32xf32>
    %5 = arith.addf %2, %4 : vector<2x32xf32>
    %6 = vector.extract_strided_slice %5 {offsets = [0, 0], sizes = [2, 8], strides = [1, 1]} : vector<2x32xf32> to vector<2x8xf32>
    %7 = vector.extract_strided_slice %5 {offsets = [0, 8], sizes = [2, 24], strides = [1, 1]} : vector<2x32xf32> to vector<2x24xf32>
    %c0_5 = arith.constant 0 : index
    %c0_6 = arith.constant 0 : index
    %8 = vector.load %arg13[%c0_5, %c0_6] : memref<2x8xf32, #tpu.memory_space<vmem>>, vector<2x8xf32>
    tpu.vector_store %arg13[%c0_5, %c0_6], %6 {strides = array<i32>} : memref<2x8xf32, #tpu.memory_space<vmem>>, vector<2x8xf32>,
    %c0_7 = arith.constant 0 : index
    %c0_8 = arith.constant 0 : index
    %9 = vector.load %arg14[%c0_7, %c0_8] : memref<2x24xf32, #tpu.memory_space<vmem>>, vector<2x24xf32>
    tpu.vector_store %arg14[%c0_7, %c0_8], %7 {strides = array<i32>} : memref<2x24xf32, #tpu.memory_space<vmem>>, vector<2x24xf32>,
    %c0_9 = arith.constant 0 : index
    %c0_10 = arith.constant 0 : index
    %10 = vector.load %arg8[%c0_9, %c0_10] : memref<32x8xf32, #tpu.memory_space<vmem>>, vector<32x8xf32>
    %cst_11 = arith.constant dense<0.000000e+00> : vector<2x8xf32>
    %11 = tpu.matmul %0, %10, %cst_11 {dimension_numbers = #tpu.dot_dimension_numbers<[1], [0], [0], [1], [0, 0, 1, 1], [], []>} : vector<2x32xf32>, vector<32x8xf32>, vector<2x8xf32> -> vector<2x8xf32>
    %c0_12 = arith.constant 0 : index
    %c0_13 = arith.constant 0 : index
    %12 = vector.load %arg10[%c0_12, %c0_13] : memref<1x8xf32, #tpu.memory_space<vmem>>, vector<1x8xf32>
    %13 = vector.broadcast %12 : vector<1x8xf32> to vector<2x8xf32>
    %14 = arith.addf %11, %13 : vector<2x8xf32>
    %c0_14 = arith.constant 0 : index
    %c0_15 = arith.constant 0 : index
    %15 = vector.load %arg4[%c0_14, %c0_15] : memref<8x8xf32, #tpu.memory_space<vmem>>, vector<8x8xf32>
    %cst_16 = arith.constant dense<0.000000e+00> : vector<2x8xf32>
    %16 = tpu.matmul %6, %15, %cst_16 {dimension_numbers = #tpu.dot_dimension_numbers<[1], [0], [0], [1], [0, 0, 1, 1], [], []>} : vector<2x8xf32>, vector<8x8xf32>, vector<2x8xf32> -> vector<2x8xf32>
    %c0_17 = arith.constant 0 : index
    %c0_18 = arith.constant 0 : index
    %17 = vector.load %arg5[%c0_17, %c0_18] : memref<1x8xf32, #tpu.memory_space<vmem>>, vector<1x8xf32>
    %18 = vector.broadcast %17 : vector<1x8xf32> to vector<2x8xf32>
    %19 = arith.addf %16, %18 : vector<2x8xf32>
    %c0_19 = arith.constant 0 : index
    %c0_20 = arith.constant 0 : index
    %20 = vector.load %arg9[%c0_19, %c0_20] : memref<8x8xf32, #tpu.memory_space<vmem>>, vector<8x8xf32>
    %cst_21 = arith.constant dense<0.000000e+00> : vector<2x8xf32>
    %21 = tpu.matmul %19, %20, %cst_21 {dimension_numbers = #tpu.dot_dimension_numbers<[1], [0], [0], [1], [0, 0, 1, 1], [], []>} : vector<2x8xf32>, vector<8x8xf32>, vector<2x8xf32> -> vector<2x8xf32>
    %22 = arith.addf %14, %21 : vector<2x8xf32>
    %cst_22 = arith.constant 0.353553385 : f32
    %23 = vector.broadcast %cst_22 : f32 to vector<2x8xf32>
    %24 = arith.mulf %22, %23 : vector<2x8xf32>
    %25 = vector.extract_strided_slice %7 {offsets = [0, 0], sizes = [2, 8], strides = [1, 1]} : vector<2x24xf32> to vector<2x8xf32>
    %c0_23 = arith.constant 0 : index
    %c0_24 = arith.constant 0 : index
    %26 = vector.load %arg6[%c0_23, %c0_24] : memref<8x16xf32, #tpu.memory_space<vmem>>, vector<8x16xf32>
    %cst_25 = arith.constant dense<0.000000e+00> : vector<2x16xf32>
    %27 = tpu.matmul %25, %26, %cst_25 {dimension_numbers = #tpu.dot_dimension_numbers<[1], [0], [0], [1], [0, 0, 1, 1], [], []>} : vector<2x8xf32>, vector<8x16xf32>, vector<2x16xf32> -> vector<2x16xf32>
    %c0_26 = arith.constant 0 : index
    %c0_27 = arith.constant 0 : index
    %28 = vector.load %arg7[%c0_26, %c0_27] : memref<1x16xf32, #tpu.memory_space<vmem>>, vector<1x16xf32>
    %29 = vector.broadcast %28 : vector<1x16xf32> to vector<2x16xf32>
    %30 = arith.addf %27, %29 : vector<2x16xf32>
    %31 = vector.extract_strided_slice %30 {offsets = [0, 0], sizes = [2, 8], strides = [1, 1]} : vector<2x16xf32> to vector<2x8xf32>
    %32 = vector.extract_strided_slice %30 {offsets = [0, 8], sizes = [2, 8], strides = [1, 1]} : vector<2x16xf32> to vector<2x8xf32>
    %c0_28 = arith.constant 0 : index
    %c0_29 = arith.constant 0 : index
    %33 = vector.load %arg9[%c0_28, %c0_29] : memref<8x8xf32, #tpu.memory_space<vmem>>, vector<8x8xf32>
    %cst_30 = arith.constant dense<0.000000e+00> : vector<2x8xf32>
    %34 = tpu.matmul %31, %33, %cst_30 {dimension_numbers = #tpu.dot_dimension_numbers<[1], [0], [0], [1], [0, 0, 1, 1], [], []>} : vector<2x8xf32>, vector<8x8xf32>, vector<2x8xf32> -> vector<2x8xf32>
    %35 = arith.addf %14, %34 : vector<2x8xf32>
    %36 = vector.extract_strided_slice %7 {offsets = [0, 8], sizes = [2, 8], strides = [1, 1]} : vector<2x24xf32> to vector<2x8xf32>
    %c0_31 = arith.constant 0 : index
    %c0_32 = arith.constant 0 : index
    %37 = vector.load %arg6[%c0_31, %c0_32] : memref<8x16xf32, #tpu.memory_space<vmem>>, vector<8x16xf32>
    %cst_33 = arith.constant dense<0.000000e+00> : vector<2x16xf32>
    %38 = tpu.matmul %36, %37, %cst_33 {dimension_numbers = #tpu.dot_dimension_numbers<[1], [0], [0], [1], [0, 0, 1, 1], [], []>} : vector<2x8xf32>, vector<8x16xf32>, vector<2x16xf32> -> vector<2x16xf32>
    %c0_34 = arith.constant 0 : index
    %c0_35 = arith.constant 0 : index
    %39 = vector.load %arg7[%c0_34, %c0_35] : memref<1x16xf32, #tpu.memory_space<vmem>>, vector<1x16xf32>
    %40 = vector.broadcast %39 : vector<1x16xf32> to vector<2x16xf32>
    %41 = arith.addf %38, %40 : vector<2x16xf32>
    %42 = vector.extract_strided_slice %41 {offsets = [0, 0], sizes = [2, 8], strides = [1, 1]} : vector<2x16xf32> to vector<2x8xf32>
    %43 = vector.extract_strided_slice %41 {offsets = [0, 8], sizes = [2, 8], strides = [1, 1]} : vector<2x16xf32> to vector<2x8xf32>
    %c0_36 = arith.constant 0 : index
    %c0_37 = arith.constant 0 : index
    %44 = vector.load %arg9[%c0_36, %c0_37] : memref<8x8xf32, #tpu.memory_space<vmem>>, vector<8x8xf32>
    %cst_38 = arith.constant dense<0.000000e+00> : vector<2x8xf32>
    %45 = tpu.matmul %42, %44, %cst_38 {dimension_numbers = #tpu.dot_dimension_numbers<[1], [0], [0], [1], [0, 0, 1, 1], [], []>} : vector<2x8xf32>, vector<8x8xf32>, vector<2x8xf32> -> vector<2x8xf32>
    %46 = arith.addf %14, %45 : vector<2x8xf32>
    %47 = vector.extract_strided_slice %7 {offsets = [0, 16], sizes = [2, 8], strides = [1, 1]} : vector<2x24xf32> to vector<2x8xf32>
    %c0_39 = arith.constant 0 : index
    %c0_40 = arith.constant 0 : index
    %48 = vector.load %arg6[%c0_39, %c0_40] : memref<8x16xf32, #tpu.memory_space<vmem>>, vector<8x16xf32>
    %cst_41 = arith.constant dense<0.000000e+00> : vector<2x16xf32>
    %49 = tpu.matmul %47, %48, %cst_41 {dimension_numbers = #tpu.dot_dimension_numbers<[1], [0], [0], [1], [0, 0, 1, 1], [], []>} : vector<2x8xf32>, vector<8x16xf32>, vector<2x16xf32> -> vector<2x16xf32>
    %c0_42 = arith.constant 0 : index
    %c0_43 = arith.constant 0 : index
    %50 = vector.load %arg7[%c0_42, %c0_43] : memref<1x16xf32, #tpu.memory_space<vmem>>, vector<1x16xf32>
    %51 = vector.broadcast %50 : vector<1x16xf32> to vector<2x16xf32>
    %52 = arith.addf %49, %51 : vector<2x16xf32>
    %53 = vector.extract_strided_slice %52 {offsets = [0, 0], sizes = [2, 8], strides = [1, 1]} : vector<2x16xf32> to vector<2x8xf32>
    %54 = vector.extract_strided_slice %52 {offsets = [0, 8], sizes = [2, 8], strides = [1, 1]} : vector<2x16xf32> to vector<2x8xf32>
    %c0_44 = arith.constant 0 : index
    %c0_45 = arith.constant 0 : index
    %55 = vector.load %arg9[%c0_44, %c0_45] : memref<8x8xf32, #tpu.memory_space<vmem>>, vector<8x8xf32>
    %cst_46 = arith.constant dense<0.000000e+00> : vector<2x8xf32>
    %56 = tpu.matmul %53, %55, %cst_46 {dimension_numbers = #tpu.dot_dimension_numbers<[1], [0], [0], [1], [0, 0, 1, 1], [], []>} : vector<2x8xf32>, vector<8x8xf32>, vector<2x8xf32> -> vector<2x8xf32>
    %57 = arith.addf %14, %56 : vector<2x8xf32>
    %c0_47 = arith.constant 0 : index
    %c0_48 = arith.constant 0 : index
    %58 = vector.load %arg11[%c0_47, %c0_48] : memref<8x8xf32, #tpu.memory_space<vmem>>, vector<8x8xf32>
    %59 = arith.mulf %24, %35 : vector<2x8xf32>
    %cst_49 = arith.constant dense<0.000000e+00> : vector<2xf32>
    %60 = vector.multi_reduction <add>, %59, %cst_49 [1] : vector<2x8xf32> to vector<2xf32>
    %61 = vector.shape_cast %60 : vector<2xf32> to vector<2x1xf32>
    %62 = arith.mulf %24, %46 : vector<2x8xf32>
    %cst_50 = arith.constant dense<0.000000e+00> : vector<2xf32>
    %63 = vector.multi_reduction <add>, %62, %cst_50 [1] : vector<2x8xf32> to vector<2xf32>
    %64 = vector.shape_cast %63 : vector<2xf32> to vector<2x1xf32>
    %65 = arith.mulf %24, %57 : vector<2x8xf32>
    %cst_51 = arith.constant dense<0.000000e+00> : vector<2xf32>
    %66 = vector.multi_reduction <add>, %65, %cst_51 [1] : vector<2x8xf32> to vector<2xf32>
    %67 = vector.shape_cast %66 : vector<2xf32> to vector<2x1xf32>
    %68 = arith.maximumf %61, %64 : vector<2x1xf32>
    %69 = arith.maximumf %68, %67 : vector<2x1xf32>
    %70 = arith.subf %61, %69 : vector<2x1xf32>
    %71 = math.exp %70 : vector<2x1xf32>
    %72 = arith.subf %64, %69 : vector<2x1xf32>
    %73 = math.exp %72 : vector<2x1xf32>
    %74 = arith.subf %67, %69 : vector<2x1xf32>
    %75 = math.exp %74 : vector<2x1xf32>
    %76 = arith.addf %71, %73 : vector<2x1xf32>
    %77 = arith.addf %76, %75 : vector<2x1xf32>
    %cst_52 = arith.constant 1.000000e+00 : f32
    %78 = vector.broadcast %cst_52 : f32 to vector<2x1xf32>
    %79 = arith.divf %78, %77 : vector<2x1xf32>
    %80 = arith.mulf %71, %79 : vector<2x1xf32>
    %81 = arith.mulf %73, %79 : vector<2x1xf32>
    %82 = arith.mulf %75, %79 : vector<2x1xf32>
    %83 = vector.broadcast %80 : vector<2x1xf32> to vector<2x8xf32>
    %84 = arith.mulf %83, %32 : vector<2x8xf32>
    %85 = vector.broadcast %81 : vector<2x1xf32> to vector<2x8xf32>
    %86 = arith.mulf %85, %43 : vector<2x8xf32>
    %87 = arith.addf %84, %86 : vector<2x8xf32>
    %88 = vector.broadcast %82 : vector<2x1xf32> to vector<2x8xf32>
    %89 = arith.mulf %88, %54 : vector<2x8xf32>
    %90 = arith.addf %87, %89 : vector<2x8xf32>
    %cst_53 = arith.constant dense<0.000000e+00> : vector<2x8xf32>
    %91 = tpu.matmul %90, %58, %cst_53 {dimension_numbers = #tpu.dot_dimension_numbers<[1], [0], [0], [1], [0, 0, 1, 1], [], []>} : vector<2x8xf32>, vector<8x8xf32>, vector<2x8xf32> -> vector<2x8xf32>
    %c0_54 = arith.constant 0 : index
    %c0_55 = arith.constant 0 : index
    %92 = vector.load %arg12[%c0_54, %c0_55] : memref<1x8xf32, #tpu.memory_space<vmem>>, vector<1x8xf32>
    %93 = vector.broadcast %92 : vector<1x8xf32> to vector<2x8xf32>
    %94 = arith.addf %91, %93 : vector<2x8xf32>
    %c0_56 = arith.constant 0 : index
    %c0_57 = arith.constant 0 : index
    %95 = vector.load %arg15[%c0_56, %c0_57] : memref<2x8xf32, #tpu.memory_space<vmem>>, vector<2x8xf32>
    tpu.vector_store %arg15[%c0_56, %c0_57], %94 {strides = array<i32>} : memref<2x8xf32, #tpu.memory_space<vmem>>, vector<2x8xf32>,
    %cst_58 = arith.constant 1.000000e+00 : f32
    %96 = vector.broadcast %cst_58 : f32 to vector<2x1xf32>
    %97 = arith.mulf %80, %96 : vector<2x1xf32>
    %c0_59 = arith.constant 0 : index
    %c0_60 = arith.constant 0 : index
    %98 = vector.load %arg16[%c0_59, %c0_60] : memref<2x3xf32, #tpu.memory_space<vmem>>, vector<2x1xf32>
    tpu.vector_store %arg16[%c0_59, %c0_60], %97 {strides = array<i32>} : memref<2x3xf32, #tpu.memory_space<vmem>>, vector<2x1xf32>,
    %cst_61 = arith.constant 1.000000e+00 : f32
    %99 = vector.broadcast %cst_61 : f32 to vector<2x1xf32>
    %100 = arith.mulf %81, %99 : vector<2x1xf32>
    %c0_62 = arith.constant 0 : index
    %c1 = arith.constant 1 : index
    %101 = vector.load %arg16[%c0_62, %c1] : memref<2x3xf32, #tpu.memory_space<vmem>>, vector<2x1xf32>
    tpu.vector_store %arg16[%c0_62, %c1], %100 {strides = array<i32>} : memref<2x3xf32, #tpu.memory_space<vmem>>, vector<2x1xf32>,
    %cst_63 = arith.constant 1.000000e+00 : f32
    %102 = vector.broadcast %cst_63 : f32 to vector<2x1xf32>
    %103 = arith.mulf %82, %102 : vector<2x1xf32>
    %c0_64 = arith.constant 0 : index
    %c2 = arith.constant 2 : index
    %104 = vector.load %arg16[%c0_64, %c2] : memref<2x3xf32, #tpu.memory_space<vmem>>, vector<2x1xf32>
    tpu.vector_store %arg16[%c0_64, %c2], %103 {strides = array<i32>} : memref<2x3xf32, #tpu.memory_space<vmem>>, vector<2x1xf32>,
    return
  }
  func.func @transform_0(%arg0: i32) -> (i32, i32) {
    %c0_i32 = arith.constant 0 : i32
    %c0_i32_0 = arith.constant 0 : i32
    return %arg0, %c0_i32 : i32, i32
  }
  func.func @transform_1(%arg0: i32) -> (i32, i32) {
    %c0_i32 = arith.constant 0 : i32
    %c0_i32_0 = arith.constant 0 : i32
    %c0_i32_1 = arith.constant 0 : i32
    return %c0_i32, %c0_i32_0 : i32, i32
  }
  func.func @transform_2(%arg0: i32) -> (i32, i32) {
    %c0_i32 = arith.constant 0 : i32
    %c0_i32_0 = arith.constant 0 : i32
    %c0_i32_1 = arith.constant 0 : i32
    return %c0_i32, %c0_i32_0 : i32, i32
  }
  func.func @transform_3(%arg0: i32) -> (i32, i32) {
    %c0_i32 = arith.constant 0 : i32
    %c0_i32_0 = arith.constant 0 : i32
    %c0_i32_1 = arith.constant 0 : i32
    return %c0_i32, %c0_i32_0 : i32, i32
  }
  func.func @transform_4(%arg0: i32) -> (i32, i32) {
    %c0_i32 = arith.constant 0 : i32
    %c0_i32_0 = arith.constant 0 : i32
    %c0_i32_1 = arith.constant 0 : i32
    return %c0_i32, %c0_i32_0 : i32, i32
  }
  func.func @transform_5(%arg0: i32) -> (i32, i32) {
    %c0_i32 = arith.constant 0 : i32
    %c0_i32_0 = arith.constant 0 : i32
    %c0_i32_1 = arith.constant 0 : i32
    return %c0_i32, %c0_i32_0 : i32, i32
  }
  func.func @transform_6(%arg0: i32) -> (i32, i32) {
    %c0_i32 = arith.constant 0 : i32
    %c0_i32_0 = arith.constant 0 : i32
    %c0_i32_1 = arith.constant 0 : i32
    return %c0_i32, %c0_i32_0 : i32, i32
  }
  func.func @transform_7(%arg0: i32) -> (i32, i32) {
    %c0_i32 = arith.constant 0 : i32
    %c0_i32_0 = arith.constant 0 : i32
    %c0_i32_1 = arith.constant 0 : i32
    return %c0_i32, %c0_i32_0 : i32, i32
  }
  func.func @transform_8(%arg0: i32) -> (i32, i32) {
    %c0_i32 = arith.constant 0 : i32
    %c0_i32_0 = arith.constant 0 : i32
    %c0_i32_1 = arith.constant 0 : i32
    return %c0_i32, %c0_i32_0 : i32, i32
  }
  func.func @transform_9(%arg0: i32) -> (i32, i32) {
    %c0_i32 = arith.constant 0 : i32
    %c0_i32_0 = arith.constant 0 : i32
    %c0_i32_1 = arith.constant 0 : i32
    return %c0_i32, %c0_i32_0 : i32, i32
  }
  func.func @transform_10(%arg0: i32) -> (i32, i32) {
    %c0_i32 = arith.constant 0 : i32
    %c0_i32_0 = arith.constant 0 : i32
    %c0_i32_1 = arith.constant 0 : i32
    return %c0_i32, %c0_i32_0 : i32, i32
  }
  func.func @transform_11(%arg0: i32) -> (i32, i32) {
    %c0_i32 = arith.constant 0 : i32
    %c0_i32_0 = arith.constant 0 : i32
    %c0_i32_1 = arith.constant 0 : i32
    return %c0_i32, %c0_i32_0 : i32, i32
  }
  func.func @transform_12(%arg0: i32) -> (i32, i32) {
    %c0_i32 = arith.constant 0 : i32
    %c0_i32_0 = arith.constant 0 : i32
    return %arg0, %c0_i32 : i32, i32
  }
  func.func @transform_13(%arg0: i32) -> (i32, i32) {
    %c0_i32 = arith.constant 0 : i32
    %c0_i32_0 = arith.constant 0 : i32
    return %arg0, %c0_i32 : i32, i32
  }
  func.func @transform_14(%arg0: i32) -> (i32, i32) {
    %c0_i32 = arith.constant 0 : i32
    %c0_i32_0 = arith.constant 0 : i32
    return %arg0, %c0_i32 : i32, i32
  }
  func.func @transform_15(%arg0: i32) -> (i32, i32) {
    %c0_i32 = arith.constant 0 : i32
    %c0_i32_0 = arith.constant 0 : i32
    return %arg0, %c0_i32 : i32, i32
  }
}

</mosaic_0001>

<llo_original>
// kernel: multihead_dqn_forward.4
$region0: #{multihead_dqn_forward.4}
  #allocation0 [shape = 'u32[]', space=smem, size = 0x4, offset = 0x4, fixed_abs, tag = 'smem constant byte address 0x4 - core index']
  #allocation1 [shape = 'u32[144,128]{1,0:T(1,128)}', space=vmem, size = 0x12000, scoped, tag = 'internal scratch']
  %s0 = inlined_call_operand.vmem [shape: f32[392,100], index: 0, kind: input, shape index: {}]
  %s1 = inlined_call_operand.vmem [shape: f32[100,16], index: 1, kind: input, shape index: {}]
  %s2 = inlined_call_operand.vmem [shape: f32[1,16], index: 2, kind: input, shape index: {}]
  %s3 = inlined_call_operand.vmem [shape: f32[392,16], index: 3, kind: output, shape index: {}]
  %s4 = sld [smem:[#allocation0]]
  $region22: #{multihead_dqn_forward.4} parent=0
    _
  %s6 = ssub.s32 1, %s4
  %s7 = scalar_select 0, %s6, %s4
  // Predicated region
  $region2: #{multihead_dqn_forward.4} parent=0 // pred_check
    _
  $region3: #{multihead_dqn_forward.4} parent=0 // pred_check_branch
    %9 = sbr.rel (0) target = $region5
  $region4: #{multihead_dqn_forward.4} parent=0 // pred_region
    _
  $region5: #{multihead_dqn_forward.4} parent=0 // pred_fallthru
    _
  // Predicated region
  $region6: #{multihead_dqn_forward.4} parent=0 // pred_check
    _
  $region7: #{multihead_dqn_forward.4} parent=0 // pred_check_branch
    %11 = sbr.rel (0) target = $region9
  $region8: #{multihead_dqn_forward.4} parent=0 // pred_region
    _
  $region9: #{multihead_dqn_forward.4} parent=0 // pred_fallthru
    _
  // Predicated region
  $region10: #{multihead_dqn_forward.4} parent=0 // pred_check
    _
  $region11: #{multihead_dqn_forward.4} parent=0 // pred_check_branch
    %13 = sbr.rel (0) target = $region13
  $region12: #{multihead_dqn_forward.4} parent=0 // pred_region
    _
  $region13: #{multihead_dqn_forward.4} parent=0 // pred_fallthru
    _
  %v14 = vld [vmem:[%s0] sm:$0xff]
  %v15 = vld [vmem:[%s0 + $0x8] sm:$0xff]
  %v16 = vld [vmem:[%s0 + $0x10] sm:$0xff]
  %v17 = vld [vmem:[%s0 + $0x18] sm:$0xff]
  %v18 = vld [vmem:[%s0 + $0x20] sm:$0xff]
  %v19 = vld [vmem:[%s0 + $0x28] sm:$0xff]
  %v20 = vld [vmem:[%s0 + $0x30] sm:$0xff]
  %v21 = vld [vmem:[%s0 + $0x38] sm:$0xff]
  %v22 = vld [vmem:[%s0 + $0x40] sm:$0xff]
  %v23 = vld [vmem:[%s0 + $0x48] sm:$0xff]
  %v24 = vld [vmem:[%s0 + $0x50] sm:$0xff]
  %v25 = vld [vmem:[%s0 + $0x58] sm:$0xff]
  %v26 = vld [vmem:[%s0 + $0x60] sm:$0xff]
  %v27 = vld [vmem:[%s0 + $0x68] sm:$0xff]
  %v28 = vld [vmem:[%s0 + $0x70] sm:$0xff]
  %v29 = vld [vmem:[%s0 + $0x78] sm:$0xff]
  %v30 = vld [vmem:[%s0 + $0x80] sm:$0xff]
  %v31 = vld [vmem:[%s0 + $0x88] sm:$0xff]
  %v32 = vld [vmem:[%s0 + $0x90] sm:$0xff]
  %v33 = vld [vmem:[%s0 + $0x98] sm:$0xff]
  %v34 = vld [vmem:[%s0 + $0xa0] sm:$0xff]
  %v35 = vld [vmem:[%s0 + $0xa8] sm:$0xff]
  %v36 = vld [vmem:[%s0 + $0xb0] sm:$0xff]
  %v37 = vld [vmem:[%s0 + $0xb8] sm:$0xff]
  %v38 = vld [vmem:[%s0 + $0xc0] sm:$0xff]
  %v39 = vld [vmem:[%s0 + $0xc8] sm:$0xff]
  %v40 = vld [vmem:[%s0 + $0xd0] sm:$0xff]
  %v41 = vld [vmem:[%s0 + $0xd8] sm:$0xff]
  %v42 = vld [vmem:[%s0 + $0xe0] sm:$0xff]
  %v43 = vld [vmem:[%s0 + $0xe8] sm:$0xff]
  %v44 = vld [vmem:[%s0 + $0xf0] sm:$0xff]
  %v45 = vld [vmem:[%s0 + $0xf8] sm:$0xff]
  %v46 = vld [vmem:[%s0 + $0x100] sm:$0xff]
  %v47 = vld [vmem:[%s0 + $0x108] sm:$0xff]
  %v48 = vld [vmem:[%s0 + $0x110] sm:$0xff]
  %v49 = vld [vmem:[%s0 + $0x118] sm:$0xff]
  %v50 = vld [vmem:[%s0 + $0x120] sm:$0xff]
  %v51 = vld [vmem:[%s0 + $0x128] sm:$0xff]
  %v52 = vld [vmem:[%s0 + $0x130] sm:$0xff]
  %v53 = vld [vmem:[%s0 + $0x138] sm:$0xff]
  %v54 = vld [vmem:[%s0 + $0x140] sm:$0xff]
  %v55 = vld [vmem:[%s0 + $0x148] sm:$0xff]
  %v56 = vld [vmem:[%s0 + $0x150] sm:$0xff]
  %v57 = vld [vmem:[%s0 + $0x158] sm:$0xff]
  %v58 = vld [vmem:[%s0 + $0x160] sm:$0xff]
  %v59 = vld [vmem:[%s0 + $0x168] sm:$0xff]
  %v60 = vld [vmem:[%s0 + $0x170] sm:$0xff]
  %v61 = vld [vmem:[%s0 + $0x178] sm:$0xff]
  %v62 = vld [vmem:[%s0 + $0x180] sm:$0xff]
  %v63 = vld [vmem:[%s1] sm:$0xff]
  %v64 = vld [vmem:[%s1 + $0x8] sm:$0xff]
  %v65 = vld [vmem:[%s1 + $0x10] sm:$0xff]
  %v66 = vld [vmem:[%s1 + $0x18] sm:$0xff]
  %v67 = vld [vmem:[%s1 + $0x20] sm:$0xff]
  %v68 = vld [vmem:[%s1 + $0x28] sm:$0xff]
  %v69 = vld [vmem:[%s1 + $0x30] sm:$0xff]
  %v70 = vld [vmem:[%s1 + $0x38] sm:$0xff]
  %v71 = vld [vmem:[%s1 + $0x40] sm:$0xff]
  %v72 = vld [vmem:[%s1 + $0x48] sm:$0xff]
  %v73 = vld [vmem:[%s1 + $0x50] sm:$0xff]
  %v74 = vld [vmem:[%s1 + $0x58] sm:$0xff]
  %v75 = vld [vmem:[%s1 + $0x60] sm:$0xf]
  %v76 = vld [vmem:[%s2] sm:$0x1]
  %v78 = vlaneseq
  %v79 = vshrl.u32 %v78, 7
  %v80 = vsub.s32 0, %v79
  %v81 = vrot.slane %v76, %v80
  %vm83 = vcmask 818176
  %v85 = vsel %vm83, %v14, 0
  %v88 = vsel %vm83, %v15, 0
  %v91 = vsel %vm83, %v16, 0
  %v94 = vsel %vm83, %v17, 0
  %v97 = vsel %vm83, %v18, 0
  %v100 = vsel %vm83, %v19, 0
  %v103 = vsel %vm83, %v20, 0
  %v106 = vsel %vm83, %v21, 0
  %v109 = vsel %vm83, %v22, 0
  %v112 = vsel %vm83, %v23, 0
  %v115 = vsel %vm83, %v24, 0
  %v118 = vsel %vm83, %v25, 0
  %v121 = vsel %vm83, %v26, 0
  %v124 = vsel %vm83, %v27, 0
  %v127 = vsel %vm83, %v28, 0
  %v130 = vsel %vm83, %v29, 0
  %v133 = vsel %vm83, %v30, 0
  %v136 = vsel %vm83, %v31, 0
  %v139 = vsel %vm83, %v32, 0
  %v142 = vsel %vm83, %v33, 0
  %v145 = vsel %vm83, %v34, 0
  %v148 = vsel %vm83, %v35, 0
  %v151 = vsel %vm83, %v36, 0
  %v154 = vsel %vm83, %v37, 0
  %v157 = vsel %vm83, %v38, 0
  %v160 = vsel %vm83, %v39, 0
  %v163 = vsel %vm83, %v40, 0
  %v166 = vsel %vm83, %v41, 0
  %v169 = vsel %vm83, %v42, 0
  %v172 = vsel %vm83, %v43, 0
  %v175 = vsel %vm83, %v44, 0
  %v178 = vsel %vm83, %v45, 0
  %v181 = vsel %vm83, %v46, 0
  %v184 = vsel %vm83, %v47, 0
  %v187 = vsel %vm83, %v48, 0
  %v190 = vsel %vm83, %v49, 0
  %v193 = vsel %vm83, %v50, 0
  %v196 = vsel %vm83, %v51, 0
  %v199 = vsel %vm83, %v52, 0
  %v202 = vsel %vm83, %v53, 0
  %v205 = vsel %vm83, %v54, 0
  %v208 = vsel %vm83, %v55, 0
  %v211 = vsel %vm83, %v56, 0
  %v214 = vsel %vm83, %v57, 0
  %v217 = vsel %vm83, %v58, 0
  %v220 = vsel %vm83, %v59, 0
  %v223 = vsel %vm83, %v60, 0
  %v226 = vsel %vm83, %v61, 0
  %v229 = vsel %vm83, %v62, 0
  %vm231 = vcmask 1043456
  %v233 = vsel %vm231, %v75, 0
  %235 = vmatprep.subr.mxu0 0.0
  %236 = vmatpush1.msra.mxu0 %v63
  %237 = vmatprep.subr.mxu0 0.0
  %238 = vmatpush1.msra.mxu0 %v64
  %239 = vmatprep.subr.mxu0 0.0
  %240 = vmatpush1.msra.mxu0 %v65
  %241 = vmatprep.subr.mxu0 0.0
  %242 = vmatpush1.msra.mxu0 %v66
  %243 = vmatprep.subr.mxu0 0.0
  %244 = vmatpush1.msra.mxu0 %v67
  %245 = vmatprep.subr.mxu0 0.0
  %246 = vmatpush1.msra.mxu0 %v68
  %247 = vmatprep.subr.mxu0 0.0
  %248 = vmatpush1.msra.mxu0 %v69
  %249 = vmatprep.subr.mxu0 0.0
  %250 = vmatpush1.msra.mxu0 %v70
  %251 = vmatprep.subr.mxu0 0.0
  %252 = vmatpush1.msra.mxu0 %v71
  %253 = vmatprep.subr.mxu0 0.0
  %254 = vmatpush1.msra.mxu0 %v72
  %255 = vmatprep.subr.mxu0 0.0
  %256 = vmatpush1.msra.mxu0 %v73
  %257 = vmatprep.subr.mxu0 0.0
  %258 = vmatpush1.msra.mxu0 %v74
  %259 = vmatprep.subr.mxu0 0.0
  %260 = vmatpush1.msra.mxu0 %v233
  %261 = vmatprep.subr.mxu0 0.0
  %262 = vmatpush1.msra.mxu0 0.0
  %263 = vmatprep.subr.mxu0 0.0
  %264 = vmatpush1.msra.mxu0 0.0
  %265 = vmatprep.subr.mxu0 0.0
  %266 = vmatpush1.msra.mxu0 0.0
  %267 = vmatprep.subr.mxu0 0.0
  %268 = vmatpush1.msra.mxu0 0.0
  %269 = vmatprep.subr.mxu0 0.0
  %270 = vmatpush1.msra.mxu0 0.0
  %271 = vmatprep.subr.mxu0 0.0
  %272 = vmatpush1.msra.mxu0 0.0
  %273 = vmatprep.subr.mxu0 0.0
  %274 = vmatpush1.msra.mxu0 0.0
  %275 = vmatprep.subr.mxu0 0.0
  %276 = vmatpush1.msra.mxu0 0.0
  %277 = vmatprep.subr.mxu0 0.0
  %278 = vmatpush1.msra.mxu0 0.0
  %279 = vmatprep.subr.mxu0 0.0
  %280 = vmatpush1.msra.mxu0 0.0
  %281 = vmatprep.subr.mxu0 0.0
  %282 = vmatpush1.msra.mxu0 0.0
  %283 = vmatprep.subr.mxu0 0.0
  %284 = vmatpush1.msra.mxu0 0.0
  %285 = vmatprep.subr.mxu0 0.0
  %286 = vmatpush1.msra.mxu0 0.0
  %287 = vmatprep.subr.mxu0 0.0
  %288 = vmatpush1.msra.mxu0 0.0
  %289 = vmatprep.subr.mxu0 0.0
  %290 = vmatpush1.msra.mxu0 0.0
  %291 = vmatprep.subr.mxu0 0.0
  %292 = vmatpush1.msra.mxu0 0.0
  %293 = vmatprep.subr.mxu0 0.0
  %294 = vmatpush1.msra.mxu0 0.0
  %295 = vmatprep.subr.mxu0 0.0
  %296 = vmatpush1.msra.mxu0 0.0
  %297 = vmatprep.subr.mxu0 0.0
  %298 = vmatpush1.msra.mxu0 0.0
  %299 = vmatprep.mubr.f32.mxu0 0.0
  %300 = vmatmul.mubr.f32.gmra.mrb[0].mxu0 %v85
  %v301 = vpop.f32.mrb[0].mxu0
  %v302 = vadd.f32 %v81, %v301
  %v303 = vpop.f32.mrb[0].mxu0
  %304 = vmatprep.mubr.f32.mxu0 0.0
  %305 = vmatmul.mubr.f32.gmra.mrb[0].mxu0 %v88
  %v306 = vpop.f32.mrb[0].mxu0
  %v307 = vadd.f32 %v81, %v306
  %v308 = vpop.f32.mrb[0].mxu0
  %309 = vmatprep.mubr.f32.mxu0 0.0
  %310 = vmatmul.mubr.f32.gmra.mrb[0].mxu0 %v91
  %v311 = vpop.f32.mrb[0].mxu0
  %v312 = vadd.f32 %v81, %v311
  %v313 = vpop.f32.mrb[0].mxu0
  %314 = vmatprep.mubr.f32.mxu0 0.0
  %315 = vmatmul.mubr.f32.gmra.mrb[0].mxu0 %v94
  %v316 = vpop.f32.mrb[0].mxu0
  %v317 = vadd.f32 %v81, %v316
  %v318 = vpop.f32.mrb[0].mxu0
  %319 = vmatprep.mubr.f32.mxu0 0.0
  %320 = vmatmul.mubr.f32.gmra.mrb[0].mxu0 %v97
  %v321 = vpop.f32.mrb[0].mxu0
  %v322 = vadd.f32 %v81, %v321
  %v323 = vpop.f32.mrb[0].mxu0
  %324 = vmatprep.mubr.f32.mxu0 0.0
  %325 = vmatmul.mubr.f32.gmra.mrb[0].mxu0 %v100
  %v326 = vpop.f32.mrb[0].mxu0
  %v327 = vadd.f32 %v81, %v326
  %v328 = vpop.f32.mrb[0].mxu0
  %329 = vmatprep.mubr.f32.mxu0 0.0
  %330 = vmatmul.mubr.f32.gmra.mrb[0].mxu0 %v103
  %v331 = vpop.f32.mrb[0].mxu0
  %v332 = vadd.f32 %v81, %v331
  %v333 = vpop.f32.mrb[0].mxu0
  %334 = vmatprep.mubr.f32.mxu0 0.0
  %335 = vmatmul.mubr.f32.gmra.mrb[0].mxu0 %v106
  %v336 = vpop.f32.mrb[0].mxu0
  %v337 = vadd.f32 %v81, %v336
  %v338 = vpop.f32.mrb[0].mxu0
  %339 = vmatprep.mubr.f32.mxu0 0.0
  %340 = vmatmul.mubr.f32.gmra.mrb[0].mxu0 %v109
  %v341 = vpop.f32.mrb[0].mxu0
  %v342 = vadd.f32 %v81, %v341
  %v343 = vpop.f32.mrb[0].mxu0
  %344 = vmatprep.mubr.f32.mxu0 0.0
  %345 = vmatmul.mubr.f32.gmra.mrb[0].mxu0 %v112
  %v346 = vpop.f32.mrb[0].mxu0
  %v347 = vadd.f32 %v81, %v346
  %v348 = vpop.f32.mrb[0].mxu0
  %349 = vmatprep.mubr.f32.mxu0 0.0
  %350 = vmatmul.mubr.f32.gmra.mrb[0].mxu0 %v115
  %v351 = vpop.f32.mrb[0].mxu0
  %v352 = vadd.f32 %v81, %v351
  %v353 = vpop.f32.mrb[0].mxu0
  %354 = vmatprep.mubr.f32.mxu0 0.0
  %355 = vmatmul.mubr.f32.gmra.mrb[0].mxu0 %v118
  %v356 = vpop.f32.mrb[0].mxu0
  %v357 = vadd.f32 %v81, %v356
  %v358 = vpop.f32.mrb[0].mxu0
  %359 = vmatprep.mubr.f32.mxu0 0.0
  %360 = vmatmul.mubr.f32.gmra.mrb[0].mxu0 %v121
  %v361 = vpop.f32.mrb[0].mxu0
  %v362 = vadd.f32 %v81, %v361
  %v363 = vpop.f32.mrb[0].mxu0
  %364 = vmatprep.mubr.f32.mxu0 0.0
  %365 = vmatmul.mubr.f32.gmra.mrb[0].mxu0 %v124
  %v366 = vpop.f32.mrb[0].mxu0
  %v367 = vadd.f32 %v81, %v366
  %v368 = vpop.f32.mrb[0].mxu0
  %369 = vmatprep.mubr.f32.mxu0 0.0
  %370 = vmatmul.mubr.f32.gmra.mrb[0].mxu0 %v127
  %v371 = vpop.f32.mrb[0].mxu0
  %v372 = vadd.f32 %v81, %v371
  %v373 = vpop.f32.mrb[0].mxu0
  %374 = vmatprep.mubr.f32.mxu0 0.0
  %375 = vmatmul.mubr.f32.gmra.mrb[0].mxu0 %v130
  %v376 = vpop.f32.mrb[0].mxu0
  %v377 = vadd.f32 %v81, %v376
  %v378 = vpop.f32.mrb[0].mxu0
  %379 = vmatprep.mubr.f32.mxu0 0.0
  %380 = vmatmul.mubr.f32.gmra.mrb[0].mxu0 %v133
  %v381 = vpop.f32.mrb[0].mxu0
  %v382 = vadd.f32 %v81, %v381
  %v383 = vpop.f32.mrb[0].mxu0
  %384 = vmatprep.mubr.f32.mxu0 0.0
  %385 = vmatmul.mubr.f32.gmra.mrb[0].mxu0 %v136
  %v386 = vpop.f32.mrb[0].mxu0
  %v387 = vadd.f32 %v81, %v386
  %v388 = vpop.f32.mrb[0].mxu0
  %389 = vmatprep.mubr.f32.mxu0 0.0
  %390 = vmatmul.mubr.f32.gmra.mrb[0].mxu0 %v139
  %v391 = vpop.f32.mrb[0].mxu0
  %v392 = vadd.f32 %v81, %v391
  %v393 = vpop.f32.mrb[0].mxu0
  %394 = vmatprep.mubr.f32.mxu0 0.0
  %395 = vmatmul.mubr.f32.gmra.mrb[0].mxu0 %v142
  %v396 = vpop.f32.mrb[0].mxu0
  %v397 = vadd.f32 %v81, %v396
  %v398 = vpop.f32.mrb[0].mxu0
  %399 = vmatprep.mubr.f32.mxu0 0.0
  %400 = vmatmul.mubr.f32.gmra.mrb[0].mxu0 %v145
  %v401 = vpop.f32.mrb[0].mxu0
  %v402 = vadd.f32 %v81, %v401
  %v403 = vpop.f32.mrb[0].mxu0
  %404 = vmatprep.mubr.f32.mxu0 0.0
  %405 = vmatmul.mubr.f32.gmra.mrb[0].mxu0 %v148
  %v406 = vpop.f32.mrb[0].mxu0
  %v407 = vadd.f32 %v81, %v406
  %v408 = vpop.f32.mrb[0].mxu0
  %409 = vmatprep.mubr.f32.mxu0 0.0
  %410 = vmatmul.mubr.f32.gmra.mrb[0].mxu0 %v151
  %v411 = vpop.f32.mrb[0].mxu0
  %v412 = vadd.f32 %v81, %v411
  %v413 = vpop.f32.mrb[0].mxu0
  %414 = vmatprep.mubr.f32.mxu0 0.0
  %415 = vmatmul.mubr.f32.gmra.mrb[0].mxu0 %v154
  %v416 = vpop.f32.mrb[0].mxu0
  %v417 = vadd.f32 %v81, %v416
  %v418 = vpop.f32.mrb[0].mxu0
  %419 = vmatprep.mubr.f32.mxu0 0.0
  %420 = vmatmul.mubr.f32.gmra.mrb[0].mxu0 %v157
  %v421 = vpop.f32.mrb[0].mxu0
  %v422 = vadd.f32 %v81, %v421
  %v423 = vpop.f32.mrb[0].mxu0
  %424 = vmatprep.mubr.f32.mxu0 0.0
  %425 = vmatmul.mubr.f32.gmra.mrb[0].mxu0 %v160
  %v426 = vpop.f32.mrb[0].mxu0
  %v427 = vadd.f32 %v81, %v426
  %v428 = vpop.f32.mrb[0].mxu0
  %429 = vmatprep.mubr.f32.mxu0 0.0
  %430 = vmatmul.mubr.f32.gmra.mrb[0].mxu0 %v163
  %v431 = vpop.f32.mrb[0].mxu0
  %v432 = vadd.f32 %v81, %v431
  %v433 = vpop.f32.mrb[0].mxu0
  %434 = vmatprep.mubr.f32.mxu0 0.0
  %435 = vmatmul.mubr.f32.gmra.mrb[0].mxu0 %v166
  %v436 = vpop.f32.mrb[0].mxu0
  %v437 = vadd.f32 %v81, %v436
  %v438 = vpop.f32.mrb[0].mxu0
  %439 = vmatprep.mubr.f32.mxu0 0.0
  %440 = vmatmul.mubr.f32.gmra.mrb[0].mxu0 %v169
  %v441 = vpop.f32.mrb[0].mxu0
  %v442 = vadd.f32 %v81, %v441
  %v443 = vpop.f32.mrb[0].mxu0
  %444 = vmatprep.mubr.f32.mxu0 0.0
  %445 = vmatmul.mubr.f32.gmra.mrb[0].mxu0 %v172
  %v446 = vpop.f32.mrb[0].mxu0
  %v447 = vadd.f32 %v81, %v446
  %v448 = vpop.f32.mrb[0].mxu0
  %449 = vmatprep.mubr.f32.mxu0 0.0
  %450 = vmatmul.mubr.f32.gmra.mrb[0].mxu0 %v175
  %v451 = vpop.f32.mrb[0].mxu0
  %v452 = vadd.f32 %v81, %v451
  %v453 = vpop.f32.mrb[0].mxu0
  %454 = vmatprep.mubr.f32.mxu0 0.0
  %455 = vmatmul.mubr.f32.gmra.mrb[0].mxu0 %v178
  %v456 = vpop.f32.mrb[0].mxu0
  %v457 = vadd.f32 %v81, %v456
  %v458 = vpop.f32.mrb[0].mxu0
  %459 = vmatprep.mubr.f32.mxu0 0.0
  %460 = vmatmul.mubr.f32.gmra.mrb[0].mxu0 %v181
  %v461 = vpop.f32.mrb[0].mxu0
  %v462 = vadd.f32 %v81, %v461
  %v463 = vpop.f32.mrb[0].mxu0
  %464 = vmatprep.mubr.f32.mxu0 0.0
  %465 = vmatmul.mubr.f32.gmra.mrb[0].mxu0 %v184
  %v466 = vpop.f32.mrb[0].mxu0
  %v467 = vadd.f32 %v81, %v466
  %v468 = vpop.f32.mrb[0].mxu0
  %469 = vmatprep.mubr.f32.mxu0 0.0
  %470 = vmatmul.mubr.f32.gmra.mrb[0].mxu0 %v187
  %v471 = vpop.f32.mrb[0].mxu0
  %v472 = vadd.f32 %v81, %v471
  %v473 = vpop.f32.mrb[0].mxu0
  %474 = vmatprep.mubr.f32.mxu0 0.0
  %475 = vmatmul.mubr.f32.gmra.mrb[0].mxu0 %v190
  %v476 = vpop.f32.mrb[0].mxu0
  %v477 = vadd.f32 %v81, %v476
  %v478 = vpop.f32.mrb[0].mxu0
  %479 = vmatprep.mubr.f32.mxu0 0.0
  %480 = vmatmul.mubr.f32.gmra.mrb[0].mxu0 %v193
  %v481 = vpop.f32.mrb[0].mxu0
  %v482 = vadd.f32 %v81, %v481
  %v483 = vpop.f32.mrb[0].mxu0
  %484 = vmatprep.mubr.f32.mxu0 0.0
  %485 = vmatmul.mubr.f32.gmra.mrb[0].mxu0 %v196
  %v486 = vpop.f32.mrb[0].mxu0
  %v487 = vadd.f32 %v81, %v486
  %v488 = vpop.f32.mrb[0].mxu0
  %489 = vmatprep.mubr.f32.mxu0 0.0
  %490 = vmatmul.mubr.f32.gmra.mrb[0].mxu0 %v199
  %v491 = vpop.f32.mrb[0].mxu0
  %v492 = vadd.f32 %v81, %v491
  %v493 = vpop.f32.mrb[0].mxu0
  %494 = vmatprep.mubr.f32.mxu0 0.0
  %495 = vmatmul.mubr.f32.gmra.mrb[0].mxu0 %v202
  %v496 = vpop.f32.mrb[0].mxu0
  %v497 = vadd.f32 %v81, %v496
  %v498 = vpop.f32.mrb[0].mxu0
  %499 = vmatprep.mubr.f32.mxu0 0.0
  %500 = vmatmul.mubr.f32.gmra.mrb[0].mxu0 %v205
  %v501 = vpop.f32.mrb[0].mxu0
  %v502 = vadd.f32 %v81, %v501
  %v503 = vpop.f32.mrb[0].mxu0
  %504 = vmatprep.mubr.f32.mxu0 0.0
  %505 = vmatmul.mubr.f32.gmra.mrb[0].mxu0 %v208
  %v506 = vpop.f32.mrb[0].mxu0
  %v507 = vadd.f32 %v81, %v506
  %v508 = vpop.f32.mrb[0].mxu0
  %509 = vmatprep.mubr.f32.mxu0 0.0
  %510 = vmatmul.mubr.f32.gmra.mrb[0].mxu0 %v211
  %v511 = vpop.f32.mrb[0].mxu0
  %v512 = vadd.f32 %v81, %v511
  %v513 = vpop.f32.mrb[0].mxu0
  %514 = vmatprep.mubr.f32.mxu0 0.0
  %515 = vmatmul.mubr.f32.gmra.mrb[0].mxu0 %v214
  %v516 = vpop.f32.mrb[0].mxu0
  %v517 = vadd.f32 %v81, %v516
  %v518 = vpop.f32.mrb[0].mxu0
  %519 = vmatprep.mubr.f32.mxu0 0.0
  %520 = vmatmul.mubr.f32.gmra.mrb[0].mxu0 %v217
  %v521 = vpop.f32.mrb[0].mxu0
  %v522 = vadd.f32 %v81, %v521
  %v523 = vpop.f32.mrb[0].mxu0
  %524 = vmatprep.mubr.f32.mxu0 0.0
  %525 = vmatmul.mubr.f32.gmra.mrb[0].mxu0 %v220
  %v526 = vpop.f32.mrb[0].mxu0
  %v527 = vadd.f32 %v81, %v526
  %v528 = vpop.f32.mrb[0].mxu0
  %529 = vmatprep.mubr.f32.mxu0 0.0
  %530 = vmatmul.mubr.f32.gmra.mrb[0].mxu0 %v223
  %v531 = vpop.f32.mrb[0].mxu0
  %v532 = vadd.f32 %v81, %v531
  %v533 = vpop.f32.mrb[0].mxu0
  %534 = vmatprep.mubr.f32.mxu0 0.0
  %535 = vmatmul.mubr.f32.gmra.mrb[0].mxu0 %v226
  %v536 = vpop.f32.mrb[0].mxu0
  %v537 = vadd.f32 %v81, %v536
  %v538 = vpop.f32.mrb[0].mxu0
  %539 = vmatprep.mubr.f32.mxu0 0.0
  %540 = vmatmul.mubr.f32.gmra.mrb[0].mxu0 %v229
  %v541 = vpop.f32.mrb[0].mxu0
  %v542 = vadd.f32 %v81, %v541
  %v543 = vpop.f32.mrb[0].mxu0
  %544 = vdwg.mxu0
  %v545 = vmax.f32 %v302, 0.0
  %v546 = vmax.f32 %v307, 0.0
  %v547 = vmax.f32 %v312, 0.0
  %v548 = vmax.f32 %v317, 0.0
  %v549 = vmax.f32 %v322, 0.0
  %v550 = vmax.f32 %v327, 0.0
  %v551 = vmax.f32 %v332, 0.0
  %v552 = vmax.f32 %v337, 0.0
  %v553 = vmax.f32 %v342, 0.0
  %v554 = vmax.f32 %v347, 0.0
  %v555 = vmax.f32 %v352, 0.0
  %v556 = vmax.f32 %v357, 0.0
  %v557 = vmax.f32 %v362, 0.0
  %v558 = vmax.f32 %v367, 0.0
  %v559 = vmax.f32 %v372, 0.0
  %v560 = vmax.f32 %v377, 0.0
  %v561 = vmax.f32 %v382, 0.0
  %v562 = vmax.f32 %v387, 0.0
  %v563 = vmax.f32 %v392, 0.0
  %v564 = vmax.f32 %v397, 0.0
  %v565 = vmax.f32 %v402, 0.0
  %v566 = vmax.f32 %v407, 0.0
  %v567 = vmax.f32 %v412, 0.0
  %v568 = vmax.f32 %v417, 0.0
  %v569 = vmax.f32 %v422, 0.0
  %v570 = vmax.f32 %v427, 0.0
  %v571 = vmax.f32 %v432, 0.0
  %v572 = vmax.f32 %v437, 0.0
  %v573 = vmax.f32 %v442, 0.0
  %v574 = vmax.f32 %v447, 0.0
  %v575 = vmax.f32 %v452, 0.0
  %v576 = vmax.f32 %v457, 0.0
  %v577 = vmax.f32 %v462, 0.0
  %v578 = vmax.f32 %v467, 0.0
  %v579 = vmax.f32 %v472, 0.0
  %v580 = vmax.f32 %v477, 0.0
  %v581 = vmax.f32 %v482, 0.0
  %v582 = vmax.f32 %v487, 0.0
  %v583 = vmax.f32 %v492, 0.0
  %v584 = vmax.f32 %v497, 0.0
  %v585 = vmax.f32 %v502, 0.0
  %v586 = vmax.f32 %v507, 0.0
  %v587 = vmax.f32 %v512, 0.0
  %v588 = vmax.f32 %v517, 0.0
  %v589 = vmax.f32 %v522, 0.0
  %v590 = vmax.f32 %v527, 0.0
  %v591 = vmax.f32 %v532, 0.0
  %v592 = vmax.f32 %v537, 0.0
  %v593 = vmax.f32 %v542, 0.0
  %vm594 = vcmask 130048
  %595 = vst.msk [vmem:[%s3] sm:$0xff] %vm594, %v545
  %596 = vst.msk [vmem:[%s3 + $0x8] sm:$0xff] %vm594, %v546
  %597 = vst.msk [vmem:[%s3 + $0x10] sm:$0xff] %vm594, %v547
  %598 = vst.msk [vmem:[%s3 + $0x18] sm:$0xff] %vm594, %v548
  %599 = vst.msk [vmem:[%s3 + $0x20] sm:$0xff] %vm594, %v549
  %600 = vst.msk [vmem:[%s3 + $0x28] sm:$0xff] %vm594, %v550
  %601 = vst.msk [vmem:[%s3 + $0x30] sm:$0xff] %vm594, %v551
  %602 = vst.msk [vmem:[%s3 + $0x38] sm:$0xff] %vm594, %v552
  %603 = vst.msk [vmem:[%s3 + $0x40] sm:$0xff] %vm594, %v553
  %604 = vst.msk [vmem:[%s3 + $0x48] sm:$0xff] %vm594, %v554
  %605 = vst.msk [vmem:[%s3 + $0x50] sm:$0xff] %vm594, %v555
  %606 = vst.msk [vmem:[%s3 + $0x58] sm:$0xff] %vm594, %v556
  %607 = vst.msk [vmem:[%s3 + $0x60] sm:$0xff] %vm594, %v557
  %608 = vst.msk [vmem:[%s3 + $0x68] sm:$0xff] %vm594, %v558
  %609 = vst.msk [vmem:[%s3 + $0x70] sm:$0xff] %vm594, %v559
  %610 = vst.msk [vmem:[%s3 + $0x78] sm:$0xff] %vm594, %v560
  %611 = vst.msk [vmem:[%s3 + $0x80] sm:$0xff] %vm594, %v561
  %612 = vst.msk [vmem:[%s3 + $0x88] sm:$0xff] %vm594, %v562
  %613 = vst.msk [vmem:[%s3 + $0x90] sm:$0xff] %vm594, %v563
  %614 = vst.msk [vmem:[%s3 + $0x98] sm:$0xff] %vm594, %v564
  %615 = vst.msk [vmem:[%s3 + $0xa0] sm:$0xff] %vm594, %v565
  %616 = vst.msk [vmem:[%s3 + $0xa8] sm:$0xff] %vm594, %v566
  %617 = vst.msk [vmem:[%s3 + $0xb0] sm:$0xff] %vm594, %v567
  %618 = vst.msk [vmem:[%s3 + $0xb8] sm:$0xff] %vm594, %v568
  %619 = vst.msk [vmem:[%s3 + $0xc0] sm:$0xff] %vm594, %v569
  %620 = vst.msk [vmem:[%s3 + $0xc8] sm:$0xff] %vm594, %v570
  %621 = vst.msk [vmem:[%s3 + $0xd0] sm:$0xff] %vm594, %v571
  %622 = vst.msk [vmem:[%s3 + $0xd8] sm:$0xff] %vm594, %v572
  %623 = vst.msk [vmem:[%s3 + $0xe0] sm:$0xff] %vm594, %v573
  %624 = vst.msk [vmem:[%s3 + $0xe8] sm:$0xff] %vm594, %v574
  %625 = vst.msk [vmem:[%s3 + $0xf0] sm:$0xff] %vm594, %v575
  %626 = vst.msk [vmem:[%s3 + $0xf8] sm:$0xff] %vm594, %v576
  %627 = vst.msk [vmem:[%s3 + $0x100] sm:$0xff] %vm594, %v577
  %628 = vst.msk [vmem:[%s3 + $0x108] sm:$0xff] %vm594, %v578
  %629 = vst.msk [vmem:[%s3 + $0x110] sm:$0xff] %vm594, %v579
  %630 = vst.msk [vmem:[%s3 + $0x118] sm:$0xff] %vm594, %v580
  %631 = vst.msk [vmem:[%s3 + $0x120] sm:$0xff] %vm594, %v581
  %632 = vst.msk [vmem:[%s3 + $0x128] sm:$0xff] %vm594, %v582
  %633 = vst.msk [vmem:[%s3 + $0x130] sm:$0xff] %vm594, %v583
  %634 = vst.msk [vmem:[%s3 + $0x138] sm:$0xff] %vm594, %v584
  %635 = vst.msk [vmem:[%s3 + $0x140] sm:$0xff] %vm594, %v585
  %636 = vst.msk [vmem:[%s3 + $0x148] sm:$0xff] %vm594, %v586
  %637 = vst.msk [vmem:[%s3 + $0x150] sm:$0xff] %vm594, %v587
  %638 = vst.msk [vmem:[%s3 + $0x158] sm:$0xff] %vm594, %v588
  %639 = vst.msk [vmem:[%s3 + $0x160] sm:$0xff] %vm594, %v589
  %640 = vst.msk [vmem:[%s3 + $0x168] sm:$0xff] %vm594, %v590
  %641 = vst.msk [vmem:[%s3 + $0x170] sm:$0xff] %vm594, %v591
  %642 = vst.msk [vmem:[%s3 + $0x178] sm:$0xff] %vm594, %v592
  %643 = vst.msk [vmem:[%s3 + $0x180] sm:$0xff] %vm594, %v593
  // Predicated region
  $region14: #{multihead_dqn_forward.4} parent=0 // pred_check
    _
  $region15: #{multihead_dqn_forward.4} parent=0 // pred_check_branch
    %645 = sbr.rel (0) target = $region17
  $region16: #{multihead_dqn_forward.4} parent=0 // pred_region
    _
  $region17: #{multihead_dqn_forward.4} parent=0 // pred_fallthru
    _
  // Predicated region
  $region18: #{multihead_dqn_forward.4} parent=0 // pred_check
    _
  $region19: #{multihead_dqn_forward.4} parent=0 // pred_check_branch
    %647 = sbr.rel (0) target = $region21
  $region20: #{multihead_dqn_forward.4} parent=0 // pred_region
    _
  $region21: #{multihead_dqn_forward.4} parent=0 // pred_fallthru
    _

// kernel: multihead_dqn_forward.5
$region0: #{multihead_dqn_forward.5}
  #allocation0 [shape = 'u32[]', space=smem, size = 0x4, offset = 0x4, fixed_abs, tag = 'smem constant byte address 0x4 - core index']
  #allocation1 [shape = 'u32[144,128]{1,0:T(1,128)}', space=vmem, size = 0x12000, scoped, tag = 'internal scratch']
  %s0 = inlined_call_operand.vmem [shape: f32[50,400], index: 0, kind: input, shape index: {}]
  %s1 = inlined_call_operand.vmem [shape: f32[400,32], index: 1, kind: input, shape index: {}]
  %s2 = inlined_call_operand.vmem [shape: f32[1,32], index: 2, kind: input, shape index: {}]
  %s3 = inlined_call_operand.vmem [shape: f32[50,32], index: 3, kind: output, shape index: {}]
  %s4 = sld [smem:[#allocation0]]
  $region22: #{multihead_dqn_forward.5} parent=0
    _
  %s6 = ssub.s32 1, %s4
  %s7 = scalar_select 0, %s6, %s4
  // Predicated region
  $region2: #{multihead_dqn_forward.5} parent=0 // pred_check
    _
  $region3: #{multihead_dqn_forward.5} parent=0 // pred_check_branch
    %9 = sbr.rel (0) target = $region5
  $region4: #{multihead_dqn_forward.5} parent=0 // pred_region
    _
  $region5: #{multihead_dqn_forward.5} parent=0 // pred_fallthru
    _
  // Predicated region
  $region6: #{multihead_dqn_forward.5} parent=0 // pred_check
    _
  $region7: #{multihead_dqn_forward.5} parent=0 // pred_check_branch
    %11 = sbr.rel (0) target = $region9
  $region8: #{multihead_dqn_forward.5} parent=0 // pred_region
    _
  $region9: #{multihead_dqn_forward.5} parent=0 // pred_fallthru
    _
  // Predicated region
  $region10: #{multihead_dqn_forward.5} parent=0 // pred_check
    _
  $region11: #{multihead_dqn_forward.5} parent=0 // pred_check_branch
    %13 = sbr.rel (0) target = $region13
  $region12: #{multihead_dqn_forward.5} parent=0 // pred_region
    _
  $region13: #{multihead_dqn_forward.5} parent=0 // pred_fallthru
    _
  %v14 = vld [vmem:[%s0] sm:$0xff]
  %v15 = vld [vmem:[%s0 + $0x8] sm:$0xff]
  %v16 = vld [vmem:[%s0 + $0x10] sm:$0xff]
  %v17 = vld [vmem:[%s0 + $0x18] sm:$0xff]
  %v18 = vld [vmem:[%s0 + $0x20] sm:$0xff]
  %v19 = vld [vmem:[%s0 + $0x28] sm:$0xff]
  %v20 = vld [vmem:[%s0 + $0x30] sm:$0xff]
  %v21 = vld [vmem:[%s0 + $0x38] sm:$0xff]
  %v22 = vld [vmem:[%s0 + $0x40] sm:$0xff]
  %v23 = vld [vmem:[%s0 + $0x48] sm:$0xff]
  %v24 = vld [vmem:[%s0 + $0x50] sm:$0xff]
  %v25 = vld [vmem:[%s0 + $0x58] sm:$0xff]
  %v26 = vld [vmem:[%s0 + $0x60] sm:$0xff]
  %v27 = vld [vmem:[%s0 + $0x68] sm:$0xff]
  %v28 = vld [vmem:[%s0 + $0x70] sm:$0xff]
  %v29 = vld [vmem:[%s0 + $0x78] sm:$0xff]
  %v30 = vld [vmem:[%s0 + $0x80] sm:$0xff]
  %v31 = vld [vmem:[%s0 + $0x88] sm:$0xff]
  %v32 = vld [vmem:[%s0 + $0x90] sm:$0xff]
  %v33 = vld [vmem:[%s0 + $0x98] sm:$0xff]
  %v34 = vld [vmem:[%s0 + $0xa0] sm:$0xff]
  %v35 = vld [vmem:[%s0 + $0xa8] sm:$0xff]
  %v36 = vld [vmem:[%s0 + $0xb0] sm:$0xff]
  %v37 = vld [vmem:[%s0 + $0xb8] sm:$0xff]
  %v38 = vld [vmem:[%s0 + $0xc0] sm:$0x3]
  %v39 = vld [vmem:[%s0 + $0xc8] sm:$0x3]
  %v40 = vld [vmem:[%s0 + $0xd0] sm:$0x3]
  %v41 = vld [vmem:[%s0 + $0xd8] sm:$0x3]
  %v42 = vld [vmem:[%s1] sm:$0xff]
  %v43 = vld [vmem:[%s1 + $0x8] sm:$0xff]
  %v44 = vld [vmem:[%s1 + $0x10] sm:$0xff]
  %v45 = vld [vmem:[%s1 + $0x18] sm:$0xff]
  %v46 = vld [vmem:[%s1 + $0x20] sm:$0xff]
  %v47 = vld [vmem:[%s1 + $0x28] sm:$0xff]
  %v48 = vld [vmem:[%s1 + $0x30] sm:$0xff]
  %v49 = vld [vmem:[%s1 + $0x38] sm:$0xff]
  %v50 = vld [vmem:[%s1 + $0x40] sm:$0xff]
  %v51 = vld [vmem:[%s1 + $0x48] sm:$0xff]
  %v52 = vld [vmem:[%s1 + $0x50] sm:$0xff]
  %v53 = vld [vmem:[%s1 + $0x58] sm:$0xff]
  %v54 = vld [vmem:[%s1 + $0x60] sm:$0xff]
  %v55 = vld [vmem:[%s1 + $0x68] sm:$0xff]
  %v56 = vld [vmem:[%s1 + $0x70] sm:$0xff]
  %v57 = vld [vmem:[%s1 + $0x78] sm:$0xff]
  %v58 = vld [vmem:[%s1 + $0x80] sm:$0xff]
  %v59 = vld [vmem:[%s1 + $0x88] sm:$0xff]
  %v60 = vld [vmem:[%s1 + $0x90] sm:$0xff]
  %v61 = vld [vmem:[%s1 + $0x98] sm:$0xff]
  %v62 = vld [vmem:[%s1 + $0xa0] sm:$0xff]
  %v63 = vld [vmem:[%s1 + $0xa8] sm:$0xff]
  %v64 = vld [vmem:[%s1 + $0xb0] sm:$0xff]
  %v65 = vld [vmem:[%s1 + $0xb8] sm:$0xff]
  %v66 = vld [vmem:[%s1 + $0xc0] sm:$0xff]
  %v67 = vld [vmem:[%s1 + $0xc8] sm:$0xff]
  %v68 = vld [vmem:[%s1 + $0xd0] sm:$0xff]
  %v69 = vld [vmem:[%s1 + $0xd8] sm:$0xff]
  %v70 = vld [vmem:[%s1 + $0xe0] sm:$0xff]
  %v71 = vld [vmem:[%s1 + $0xe8] sm:$0xff]
  %v72 = vld [vmem:[%s1 + $0xf0] sm:$0xff]
  %v73 = vld [vmem:[%s1 + $0xf8] sm:$0xff]
  %v74 = vld [vmem:[%s1 + $0x100] sm:$0xff]
  %v75 = vld [vmem:[%s1 + $0x108] sm:$0xff]
  %v76 = vld [vmem:[%s1 + $0x110] sm:$0xff]
  %v77 = vld [vmem:[%s1 + $0x118] sm:$0xff]
  %v78 = vld [vmem:[%s1 + $0x120] sm:$0xff]
  %v79 = vld [vmem:[%s1 + $0x128] sm:$0xff]
  %v80 = vld [vmem:[%s1 + $0x130] sm:$0xff]
  %v81 = vld [vmem:[%s1 + $0x138] sm:$0xff]
  %v82 = vld [vmem:[%s1 + $0x140] sm:$0xff]
  %v83 = vld [vmem:[%s1 + $0x148] sm:$0xff]
  %v84 = vld [vmem:[%s1 + $0x150] sm:$0xff]
  %v85 = vld [vmem:[%s1 + $0x158] sm:$0xff]
  %v86 = vld [vmem:[%s1 + $0x160] sm:$0xff]
  %v87 = vld [vmem:[%s1 + $0x168] sm:$0xff]
  %v88 = vld [vmem:[%s1 + $0x170] sm:$0xff]
  %v89 = vld [vmem:[%s1 + $0x178] sm:$0xff]
  %v90 = vld [vmem:[%s1 + $0x180] sm:$0xff]
  %v91 = vld [vmem:[%s1 + $0x188] sm:$0xff]
  %v92 = vld [vmem:[%s2] sm:$0x1]
  %v94 = vlaneseq
  %v95 = vshrl.u32 %v94, 7
  %v96 = vsub.s32 0, %v95
  %v97 = vrot.slane %v92, %v96
  %vm99 = vcmask 130048
  %v101 = vsel %vm99, %v17, 0
  %v104 = vsel %vm99, %v21, 0
  %v107 = vsel %vm99, %v25, 0
  %v110 = vsel %vm99, %v29, 0
  %v113 = vsel %vm99, %v33, 0
  %v116 = vsel %vm99, %v37, 0
  %v119 = vsel %vm99, %v41, 0
  %121 = vmatprep.subr.mxu0 0.0
  %122 = vmatpush1.msra.mxu0 %v42
  %123 = vmatprep.subr.mxu0 0.0
  %124 = vmatpush1.msra.mxu0 %v43
  %125 = vmatprep.subr.mxu0 0.0
  %126 = vmatpush1.msra.mxu0 %v44
  %127 = vmatprep.subr.mxu0 0.0
  %128 = vmatpush1.msra.mxu0 %v45
  %129 = vmatprep.subr.mxu0 0.0
  %130 = vmatpush1.msra.mxu0 %v46
  %131 = vmatprep.subr.mxu0 0.0
  %132 = vmatpush1.msra.mxu0 %v47
  %133 = vmatprep.subr.mxu0 0.0
  %134 = vmatpush1.msra.mxu0 %v48
  %135 = vmatprep.subr.mxu0 0.0
  %136 = vmatpush1.msra.mxu0 %v49
  %137 = vmatprep.subr.mxu0 0.0
  %138 = vmatpush1.msra.mxu0 %v50
  %139 = vmatprep.subr.mxu0 0.0
  %140 = vmatpush1.msra.mxu0 %v51
  %141 = vmatprep.subr.mxu0 0.0
  %142 = vmatpush1.msra.mxu0 %v52
  %143 = vmatprep.subr.mxu0 0.0
  %144 = vmatpush1.msra.mxu0 %v53
  %145 = vmatprep.subr.mxu0 0.0
  %146 = vmatpush1.msra.mxu0 %v54
  %147 = vmatprep.subr.mxu0 0.0
  %148 = vmatpush1.msra.mxu0 %v55
  %149 = vmatprep.subr.mxu0 0.0
  %150 = vmatpush1.msra.mxu0 %v56
  %151 = vmatprep.subr.mxu0 0.0
  %152 = vmatpush1.msra.mxu0 %v57
  %153 = vmatprep.subr.mxu0 0.0
  %154 = vmatpush1.msra.mxu0 %v58
  %155 = vmatprep.subr.mxu0 0.0
  %156 = vmatpush1.msra.mxu0 %v59
  %157 = vmatprep.subr.mxu0 0.0
  %158 = vmatpush1.msra.mxu0 %v60
  %159 = vmatprep.subr.mxu0 0.0
  %160 = vmatpush1.msra.mxu0 %v61
  %161 = vmatprep.subr.mxu0 0.0
  %162 = vmatpush1.msra.mxu0 %v62
  %163 = vmatprep.subr.mxu0 0.0
  %164 = vmatpush1.msra.mxu0 %v63
  %165 = vmatprep.subr.mxu0 0.0
  %166 = vmatpush1.msra.mxu0 %v64
  %167 = vmatprep.subr.mxu0 0.0
  %168 = vmatpush1.msra.mxu0 %v65
  %169 = vmatprep.subr.mxu0 0.0
  %170 = vmatpush1.msra.mxu0 %v66
  %171 = vmatprep.subr.mxu0 0.0
  %172 = vmatpush1.msra.mxu0 %v67
  %173 = vmatprep.subr.mxu0 0.0
  %174 = vmatpush1.msra.mxu0 %v68
  %175 = vmatprep.subr.mxu0 0.0
  %176 = vmatpush1.msra.mxu0 %v69
  %177 = vmatprep.subr.mxu0 0.0
  %178 = vmatpush1.msra.mxu0 %v70
  %179 = vmatprep.subr.mxu0 0.0
  %180 = vmatpush1.msra.mxu0 %v71
  %181 = vmatprep.subr.mxu0 0.0
  %182 = vmatpush1.msra.mxu0 %v72
  %183 = vmatprep.subr.mxu0 0.0
  %184 = vmatpush1.msra.mxu0 %v73
  %185 = vmatprep.mubr.f32.mxu0 %v15
  %186 = vmatmul.mubr.f32.gmra.mrb[0].mxu0 %v14
  %v187 = vpop.f32.mrb[0].mxu0
  %v188 = vadd.f32 %v97, %v187
  %v189 = vpop.f32.mrb[0].mxu0
  %190 = vmatprep.mubr.f32.mxu0 %v19
  %191 = vmatmul.mubr.f32.gmra.mrb[0].mxu0 %v18
  %v192 = vpop.f32.mrb[0].mxu0
  %v193 = vadd.f32 %v97, %v192
  %v194 = vpop.f32.mrb[0].mxu0
  %195 = vmatprep.mubr.f32.mxu0 %v23
  %196 = vmatmul.mubr.f32.gmra.mrb[0].mxu0 %v22
  %v197 = vpop.f32.mrb[0].mxu0
  %v198 = vadd.f32 %v97, %v197
  %v199 = vpop.f32.mrb[0].mxu0
  %200 = vmatprep.mubr.f32.mxu0 %v27
  %201 = vmatmul.mubr.f32.gmra.mrb[0].mxu0 %v26
  %v202 = vpop.f32.mrb[0].mxu0
  %v203 = vadd.f32 %v97, %v202
  %v204 = vpop.f32.mrb[0].mxu0
  %205 = vmatprep.mubr.f32.mxu0 %v31
  %206 = vmatmul.mubr.f32.gmra.mrb[0].mxu0 %v30
  %v207 = vpop.f32.mrb[0].mxu0
  %v208 = vadd.f32 %v97, %v207
  %v209 = vpop.f32.mrb[0].mxu0
  %210 = vmatprep.mubr.f32.mxu0 %v35
  %211 = vmatmul.mubr.f32.gmra.mrb[0].mxu0 %v34
  %v212 = vpop.f32.mrb[0].mxu0
  %v213 = vadd.f32 %v97, %v212
  %v214 = vpop.f32.mrb[0].mxu0
  %215 = vmatprep.mubr.f32.mxu0 %v39
  %216 = vmatmul.mubr.f32.gmra.mrb[0].mxu0 %v38
  %v217 = vpop.f32.mrb[0].mxu0
  %v218 = vadd.f32 %v97, %v217
  %v219 = vpop.f32.mrb[0].mxu0
  %220 = vdwg.mxu0
  %221 = vmatprep.subr.mxu0 0.0
  %222 = vmatpush1.msra.mxu0 %v74
  %223 = vmatprep.subr.mxu0 0.0
  %224 = vmatpush1.msra.mxu0 %v75
  %225 = vmatprep.subr.mxu0 0.0
  %226 = vmatpush1.msra.mxu0 %v76
  %227 = vmatprep.subr.mxu0 0.0
  %228 = vmatpush1.msra.mxu0 %v77
  %229 = vmatprep.subr.mxu0 0.0
  %230 = vmatpush1.msra.mxu0 %v78
  %231 = vmatprep.subr.mxu0 0.0
  %232 = vmatpush1.msra.mxu0 %v79
  %233 = vmatprep.subr.mxu0 0.0
  %234 = vmatpush1.msra.mxu0 %v80
  %235 = vmatprep.subr.mxu0 0.0
  %236 = vmatpush1.msra.mxu0 %v81
  %237 = vmatprep.subr.mxu0 0.0
  %238 = vmatpush1.msra.mxu0 %v82
  %239 = vmatprep.subr.mxu0 0.0
  %240 = vmatpush1.msra.mxu0 %v83
  %241 = vmatprep.subr.mxu0 0.0
  %242 = vmatpush1.msra.mxu0 %v84
  %243 = vmatprep.subr.mxu0 0.0
  %244 = vmatpush1.msra.mxu0 %v85
  %245 = vmatprep.subr.mxu0 0.0
  %246 = vmatpush1.msra.mxu0 %v86
  %247 = vmatprep.subr.mxu0 0.0
  %248 = vmatpush1.msra.mxu0 %v87
  %249 = vmatprep.subr.mxu0 0.0
  %250 = vmatpush1.msra.mxu0 %v88
  %251 = vmatprep.subr.mxu0 0.0
  %252 = vmatpush1.msra.mxu0 %v89
  %253 = vmatprep.subr.mxu0 0.0
  %254 = vmatpush1.msra.mxu0 %v90
  %255 = vmatprep.subr.mxu0 0.0
  %256 = vmatpush1.msra.mxu0 %v91
  %257 = vmatprep.subr.mxu0 0.0
  %258 = vmatpush1.msra.mxu0 0.0
  %259 = vmatprep.subr.mxu0 0.0
  %260 = vmatpush1.msra.mxu0 0.0
  %261 = vmatprep.subr.mxu0 0.0
  %262 = vmatpush1.msra.mxu0 0.0
  %263 = vmatprep.subr.mxu0 0.0
  %264 = vmatpush1.msra.mxu0 0.0
  %265 = vmatprep.subr.mxu0 0.0
  %266 = vmatpush1.msra.mxu0 0.0
  %267 = vmatprep.subr.mxu0 0.0
  %268 = vmatpush1.msra.mxu0 0.0
  %269 = vmatprep.subr.mxu0 0.0
  %270 = vmatpush1.msra.mxu0 0.0
  %271 = vmatprep.subr.mxu0 0.0
  %272 = vmatpush1.msra.mxu0 0.0
  %273 = vmatprep.subr.mxu0 0.0
  %274 = vmatpush1.msra.mxu0 0.0
  %275 = vmatprep.subr.mxu0 0.0
  %276 = vmatpush1.msra.mxu0 0.0
  %277 = vmatprep.subr.mxu0 0.0
  %278 = vmatpush1.msra.mxu0 0.0
  %279 = vmatprep.subr.mxu0 0.0
  %280 = vmatpush1.msra.mxu0 0.0
  %281 = vmatprep.subr.mxu0 0.0
  %282 = vmatpush1.msra.mxu0 0.0
  %283 = vmatprep.subr.mxu0 0.0
  %284 = vmatpush1.msra.mxu0 0.0
  %285 = vmatprep.mubr.f32.mxu0 %v101
  %286 = vmatmul.mubr.f32.gmra.mrb[0].mxu0 %v16
  %v287 = vpop.f32.mrb[0].mxu0
  %v288 = vadd.f32 %v188, %v287
  %v289 = vpop.f32.mrb[0].mxu0
  %290 = vmatprep.mubr.f32.mxu0 %v104
  %291 = vmatmul.mubr.f32.gmra.mrb[0].mxu0 %v20
  %v292 = vpop.f32.mrb[0].mxu0
  %v293 = vadd.f32 %v193, %v292
  %v294 = vpop.f32.mrb[0].mxu0
  %295 = vmatprep.mubr.f32.mxu0 %v107
  %296 = vmatmul.mubr.f32.gmra.mrb[0].mxu0 %v24
  %v297 = vpop.f32.mrb[0].mxu0
  %v298 = vadd.f32 %v198, %v297
  %v299 = vpop.f32.mrb[0].mxu0
  %300 = vmatprep.mubr.f32.mxu0 %v110
  %301 = vmatmul.mubr.f32.gmra.mrb[0].mxu0 %v28
  %v302 = vpop.f32.mrb[0].mxu0
  %v303 = vadd.f32 %v203, %v302
  %v304 = vpop.f32.mrb[0].mxu0
  %305 = vmatprep.mubr.f32.mxu0 %v113
  %306 = vmatmul.mubr.f32.gmra.mrb[0].mxu0 %v32
  %v307 = vpop.f32.mrb[0].mxu0
  %v308 = vadd.f32 %v208, %v307
  %v309 = vpop.f32.mrb[0].mxu0
  %310 = vmatprep.mubr.f32.mxu0 %v116
  %311 = vmatmul.mubr.f32.gmra.mrb[0].mxu0 %v36
  %v312 = vpop.f32.mrb[0].mxu0
  %v313 = vadd.f32 %v213, %v312
  %v314 = vpop.f32.mrb[0].mxu0
  %315 = vmatprep.mubr.f32.mxu0 %v119
  %316 = vmatmul.mubr.f32.gmra.mrb[0].mxu0 %v40
  %v317 = vpop.f32.mrb[0].mxu0
  %v318 = vadd.f32 %v218, %v317
  %v319 = vpop.f32.mrb[0].mxu0
  %320 = vdwg.mxu0
  %v321 = vmax.f32 %v288, 0.0
  %v322 = vmax.f32 %v293, 0.0
  %v323 = vmax.f32 %v298, 0.0
  %v324 = vmax.f32 %v303, 0.0
  %v325 = vmax.f32 %v308, 0.0
  %v326 = vmax.f32 %v313, 0.0
  %v327 = vmax.f32 %v318, 0.0
  %vm328 = vcmask 261120
  %329 = vst.msk [vmem:[%s3] sm:$0xff] %vm328, %v321
  %330 = vst.msk [vmem:[%s3 + $0x8] sm:$0xff] %vm328, %v322
  %331 = vst.msk [vmem:[%s3 + $0x10] sm:$0xff] %vm328, %v323
  %332 = vst.msk [vmem:[%s3 + $0x18] sm:$0xff] %vm328, %v324
  %333 = vst.msk [vmem:[%s3 + $0x20] sm:$0xff] %vm328, %v325
  %334 = vst.msk [vmem:[%s3 + $0x28] sm:$0xff] %vm328, %v326
  %vm335 = vcmask 254976
  %336 = vst.msk [vmem:[%s3 + $0x30] sm:$0x3] %vm335, %v327
  // Predicated region
  $region14: #{multihead_dqn_forward.5} parent=0 // pred_check
    _
  $region15: #{multihead_dqn_forward.5} parent=0 // pred_check_branch
    %338 = sbr.rel (0) target = $region17
  $region16: #{multihead_dqn_forward.5} parent=0 // pred_region
    _
  $region17: #{multihead_dqn_forward.5} parent=0 // pred_fallthru
    _
  // Predicated region
  $region18: #{multihead_dqn_forward.5} parent=0 // pred_check
    _
  $region19: #{multihead_dqn_forward.5} parent=0 // pred_check_branch
    %340 = sbr.rel (0) target = $region21
  $region20: #{multihead_dqn_forward.5} parent=0 // pred_region
    _
  $region21: #{multihead_dqn_forward.5} parent=0 // pred_fallthru
    _

// kernel: multihead_dqn_forward.6
$region0: #{multihead_dqn_forward.6}
  #allocation0 [shape = 'u32[]', space=smem, size = 0x4, offset = 0x4, fixed_abs, tag = 'smem constant byte address 0x4 - core index']
  #allocation1 [shape = 'u32[144,128]{1,0:T(1,128)}', space=vmem, size = 0x12000, scoped, tag = 'internal scratch']
  %s0 = inlined_call_operand.vmem [shape: f32[2,800], index: 0, kind: input, shape index: {}]
  %s1 = inlined_call_operand.vmem [shape: f32[800,32], index: 1, kind: input, shape index: {}]
  %s2 = inlined_call_operand.vmem [shape: f32[1,32], index: 2, kind: input, shape index: {}]
  %s3 = inlined_call_operand.vmem [shape: f32[2,32], index: 3, kind: output, shape index: {}]
  %s4 = sld [smem:[#allocation0]]
  $region22: #{multihead_dqn_forward.6} parent=0
    _
  %s6 = ssub.s32 1, %s4
  %s7 = scalar_select 0, %s6, %s4
  // Predicated region
  $region2: #{multihead_dqn_forward.6} parent=0 // pred_check
    _
  $region3: #{multihead_dqn_forward.6} parent=0 // pred_check_branch
    %9 = sbr.rel (0) target = $region5
  $region4: #{multihead_dqn_forward.6} parent=0 // pred_region
    _
  $region5: #{multihead_dqn_forward.6} parent=0 // pred_fallthru
    _
  // Predicated region
  $region6: #{multihead_dqn_forward.6} parent=0 // pred_check
    _
  $region7: #{multihead_dqn_forward.6} parent=0 // pred_check_branch
    %11 = sbr.rel (0) target = $region9
  $region8: #{multihead_dqn_forward.6} parent=0 // pred_region
    _
  $region9: #{multihead_dqn_forward.6} parent=0 // pred_fallthru
    _
  // Predicated region
  $region10: #{multihead_dqn_forward.6} parent=0 // pred_check
    _
  $region11: #{multihead_dqn_forward.6} parent=0 // pred_check_branch
    %13 = sbr.rel (0) target = $region13
  $region12: #{multihead_dqn_forward.6} parent=0 // pred_region
    _
  $region13: #{multihead_dqn_forward.6} parent=0 // pred_fallthru
    _
  %v14 = vld [vmem:[%s0] sm:$0xff]
  %v15 = vld [vmem:[%s0 + $0x8] sm:$0x3f]
  %v16 = vld [vmem:[%s1] sm:$0xff]
  %v17 = vld [vmem:[%s1 + $0x8] sm:$0xff]
  %v18 = vld [vmem:[%s1 + $0x10] sm:$0xff]
  %v19 = vld [vmem:[%s1 + $0x18] sm:$0xff]
  %v20 = vld [vmem:[%s1 + $0x20] sm:$0xff]
  %v21 = vld [vmem:[%s1 + $0x28] sm:$0xff]
  %v22 = vld [vmem:[%s1 + $0x30] sm:$0xff]
  %v23 = vld [vmem:[%s1 + $0x38] sm:$0xff]
  %v24 = vld [vmem:[%s1 + $0x40] sm:$0xff]
  %v25 = vld [vmem:[%s1 + $0x48] sm:$0xff]
  %v26 = vld [vmem:[%s1 + $0x50] sm:$0xff]
  %v27 = vld [vmem:[%s1 + $0x58] sm:$0xff]
  %v28 = vld [vmem:[%s1 + $0x60] sm:$0xff]
  %v29 = vld [vmem:[%s1 + $0x68] sm:$0xff]
  %v30 = vld [vmem:[%s1 + $0x70] sm:$0xff]
  %v31 = vld [vmem:[%s1 + $0x78] sm:$0xff]
  %v32 = vld [vmem:[%s1 + $0x80] sm:$0xff]
  %v33 = vld [vmem:[%s1 + $0x88] sm:$0xff]
  %v34 = vld [vmem:[%s1 + $0x90] sm:$0xff]
  %v35 = vld [vmem:[%s1 + $0x98] sm:$0xff]
  %v36 = vld [vmem:[%s1 + $0xa0] sm:$0xff]
  %v37 = vld [vmem:[%s1 + $0xa8] sm:$0xff]
  %v38 = vld [vmem:[%s1 + $0xb0] sm:$0xff]
  %v39 = vld [vmem:[%s1 + $0xb8] sm:$0xff]
  %v40 = vld [vmem:[%s1 + $0xc0] sm:$0xff]
  %v41 = vld [vmem:[%s1 + $0xc8] sm:$0xff]
  %v42 = vld [vmem:[%s1 + $0xd0] sm:$0xff]
  %v43 = vld [vmem:[%s1 + $0xd8] sm:$0xff]
  %v44 = vld [vmem:[%s1 + $0xe0] sm:$0xff]
  %v45 = vld [vmem:[%s1 + $0xe8] sm:$0xff]
  %v46 = vld [vmem:[%s1 + $0xf0] sm:$0xff]
  %v47 = vld [vmem:[%s1 + $0xf8] sm:$0xff]
  %v48 = vld [vmem:[%s1 + $0x100] sm:$0xff]
  %v49 = vld [vmem:[%s1 + $0x108] sm:$0xff]
  %v50 = vld [vmem:[%s1 + $0x110] sm:$0xff]
  %v51 = vld [vmem:[%s1 + $0x118] sm:$0xff]
  %v52 = vld [vmem:[%s1 + $0x120] sm:$0xff]
  %v53 = vld [vmem:[%s1 + $0x128] sm:$0xff]
  %v54 = vld [vmem:[%s1 + $0x130] sm:$0xff]
  %v55 = vld [vmem:[%s1 + $0x138] sm:$0xff]
  %v56 = vld [vmem:[%s1 + $0x140] sm:$0xff]
  %v57 = vld [vmem:[%s1 + $0x148] sm:$0xff]
  %v58 = vld [vmem:[%s1 + $0x150] sm:$0xff]
  %v59 = vld [vmem:[%s1 + $0x158] sm:$0xff]
  %v60 = vld [vmem:[%s1 + $0x160] sm:$0xff]
  %v61 = vld [vmem:[%s1 + $0x168] sm:$0xff]
  %v62 = vld [vmem:[%s1 + $0x170] sm:$0xff]
  %v63 = vld [vmem:[%s1 + $0x178] sm:$0xff]
  %v64 = vld [vmem:[%s1 + $0x180] sm:$0xff]
  %v65 = vld [vmem:[%s1 + $0x188] sm:$0xff]
  %v66 = vld [vmem:[%s1 + $0x190] sm:$0xff]
  %v67 = vld [vmem:[%s1 + $0x198] sm:$0xff]
  %v68 = vld [vmem:[%s1 + $0x1a0] sm:$0xff]
  %v69 = vld [vmem:[%s1 + $0x1a8] sm:$0xff]
  %v70 = vld [vmem:[%s1 + $0x1b0] sm:$0xff]
  %v71 = vld [vmem:[%s1 + $0x1b8] sm:$0xff]
  %v72 = vld [vmem:[%s1 + $0x1c0] sm:$0xff]
  %v73 = vld [vmem:[%s1 + $0x1c8] sm:$0xff]
  %v74 = vld [vmem:[%s1 + $0x1d0] sm:$0xff]
  %v75 = vld [vmem:[%s1 + $0x1d8] sm:$0xff]
  %v76 = vld [vmem:[%s1 + $0x1e0] sm:$0xff]
  %v77 = vld [vmem:[%s1 + $0x1e8] sm:$0xff]
  %v78 = vld [vmem:[%s1 + $0x1f0] sm:$0xff]
  %v79 = vld [vmem:[%s1 + $0x1f8] sm:$0xff]
  %v80 = vld [vmem:[%s1 + $0x200] sm:$0xff]
  %v81 = vld [vmem:[%s1 + $0x208] sm:$0xff]
  %v82 = vld [vmem:[%s1 + $0x210] sm:$0xff]
  %v83 = vld [vmem:[%s1 + $0x218] sm:$0xff]
  %v84 = vld [vmem:[%s1 + $0x220] sm:$0xff]
  %v85 = vld [vmem:[%s1 + $0x228] sm:$0xff]
  %v86 = vld [vmem:[%s1 + $0x230] sm:$0xff]
  %v87 = vld [vmem:[%s1 + $0x238] sm:$0xff]
  %v88 = vld [vmem:[%s1 + $0x240] sm:$0xff]
  %v89 = vld [vmem:[%s1 + $0x248] sm:$0xff]
  %v90 = vld [vmem:[%s1 + $0x250] sm:$0xff]
  %v91 = vld [vmem:[%s1 + $0x258] sm:$0xff]
  %v92 = vld [vmem:[%s1 + $0x260] sm:$0xff]
  %v93 = vld [vmem:[%s1 + $0x268] sm:$0xff]
  %v94 = vld [vmem:[%s1 + $0x270] sm:$0xff]
  %v95 = vld [vmem:[%s1 + $0x278] sm:$0xff]
  %v96 = vld [vmem:[%s1 + $0x280] sm:$0xff]
  %v97 = vld [vmem:[%s1 + $0x288] sm:$0xff]
  %v98 = vld [vmem:[%s1 + $0x290] sm:$0xff]
  %v99 = vld [vmem:[%s1 + $0x298] sm:$0xff]
  %v100 = vld [vmem:[%s1 + $0x2a0] sm:$0xff]
  %v101 = vld [vmem:[%s1 + $0x2a8] sm:$0xff]
  %v102 = vld [vmem:[%s1 + $0x2b0] sm:$0xff]
  %v103 = vld [vmem:[%s1 + $0x2b8] sm:$0xff]
  %v104 = vld [vmem:[%s1 + $0x2c0] sm:$0xff]
  %v105 = vld [vmem:[%s1 + $0x2c8] sm:$0xff]
  %v106 = vld [vmem:[%s1 + $0x2d0] sm:$0xff]
  %v107 = vld [vmem:[%s1 + $0x2d8] sm:$0xff]
  %v108 = vld [vmem:[%s1 + $0x2e0] sm:$0xff]
  %v109 = vld [vmem:[%s1 + $0x2e8] sm:$0xff]
  %v110 = vld [vmem:[%s1 + $0x2f0] sm:$0xff]
  %v111 = vld [vmem:[%s1 + $0x2f8] sm:$0xff]
  %v112 = vld [vmem:[%s1 + $0x300] sm:$0xff]
  %v113 = vld [vmem:[%s1 + $0x308] sm:$0xff]
  %v114 = vld [vmem:[%s1 + $0x310] sm:$0xff]
  %v115 = vld [vmem:[%s1 + $0x318] sm:$0xff]
  %v116 = vld [vmem:[%s2] sm:$0x1]
  %v118 = vlaneseq
  %v119 = vshrl.u32 %v118, 7
  %v120 = vsub.s32 0, %v119
  %v121 = vrot.slane %v116, %v120
  %v125 = vcombine.high %v14, %v14
  %v127 = vunpack.c.l.s4 1983009808
  %v128 = vunpack.c.0.s8 %v127
  %v129 = vlaneseq
  %v130 = vshrl.u32 %v129, 7
  %v131 = vsub.s32 %v128, %v130
  %v132 = vrot.slane %v14, %v131
  %v134 = vunpack.c.l.s4 1983009808
  %v135 = vunpack.c.0.s8 %v134
  %v136 = vlaneseq
  %v137 = vshrl.u32 %v136, 7
  %v138 = vsub.s32 %v135, %v137
  %v139 = vrot.slane %v125, %v138
  %v140 = vcombine.high %v132, %v132
  %v141 = vcombine.high %v139, %v139
  %v142 = vcombine.high %v15, %v15
  %v144 = vunpack.c.l.s4 1983009808
  %v145 = vunpack.c.0.s8 %v144
  %v146 = vlaneseq
  %v147 = vshrl.u32 %v146, 7
  %v148 = vsub.s32 %v145, %v147
  %v149 = vrot.slane %v15, %v148
  %v151 = vunpack.c.l.s4 1983009808
  %v152 = vunpack.c.0.s8 %v151
  %v153 = vlaneseq
  %v154 = vshrl.u32 %v153, 7
  %v155 = vsub.s32 %v152, %v154
  %v156 = vrot.slane %v142, %v155
  %v157 = vcombine.high %v149, %v149
  %vm164 = vcmask 261120
  %v165 = vsel %vm164, %v156, 0
  %167 = vmatprep.subr.mxu0 0.0
  %168 = vmatpush1.msra.mxu0 %v16
  %169 = vmatprep.subr.mxu0 0.0
  %170 = vmatpush1.msra.mxu0 %v17
  %171 = vmatprep.subr.mxu0 0.0
  %172 = vmatpush1.msra.mxu0 %v18
  %173 = vmatprep.subr.mxu0 0.0
  %174 = vmatpush1.msra.mxu0 %v19
  %175 = vmatprep.subr.mxu0 0.0
  %176 = vmatpush1.msra.mxu0 %v20
  %177 = vmatprep.subr.mxu0 0.0
  %178 = vmatpush1.msra.mxu0 %v21
  %179 = vmatprep.subr.mxu0 0.0
  %180 = vmatpush1.msra.mxu0 %v22
  %181 = vmatprep.subr.mxu0 0.0
  %182 = vmatpush1.msra.mxu0 %v23
  %183 = vmatprep.subr.mxu0 0.0
  %184 = vmatpush1.msra.mxu0 %v24
  %185 = vmatprep.subr.mxu0 0.0
  %186 = vmatpush1.msra.mxu0 %v25
  %187 = vmatprep.subr.mxu0 0.0
  %188 = vmatpush1.msra.mxu0 %v26
  %189 = vmatprep.subr.mxu0 0.0
  %190 = vmatpush1.msra.mxu0 %v27
  %191 = vmatprep.subr.mxu0 0.0
  %192 = vmatpush1.msra.mxu0 %v28
  %193 = vmatprep.subr.mxu0 0.0
  %194 = vmatpush1.msra.mxu0 %v29
  %195 = vmatprep.subr.mxu0 0.0
  %196 = vmatpush1.msra.mxu0 %v30
  %197 = vmatprep.subr.mxu0 0.0
  %198 = vmatpush1.msra.mxu0 %v31
  %199 = vmatprep.subr.mxu0 0.0
  %200 = vmatpush1.msra.mxu0 %v32
  %201 = vmatprep.subr.mxu0 0.0
  %202 = vmatpush1.msra.mxu0 %v33
  %203 = vmatprep.subr.mxu0 0.0
  %204 = vmatpush1.msra.mxu0 %v34
  %205 = vmatprep.subr.mxu0 0.0
  %206 = vmatpush1.msra.mxu0 %v35
  %207 = vmatprep.subr.mxu0 0.0
  %208 = vmatpush1.msra.mxu0 %v36
  %209 = vmatprep.subr.mxu0 0.0
  %210 = vmatpush1.msra.mxu0 %v37
  %211 = vmatprep.subr.mxu0 0.0
  %212 = vmatpush1.msra.mxu0 %v38
  %213 = vmatprep.subr.mxu0 0.0
  %214 = vmatpush1.msra.mxu0 %v39
  %215 = vmatprep.subr.mxu0 0.0
  %216 = vmatpush1.msra.mxu0 %v40
  %217 = vmatprep.subr.mxu0 0.0
  %218 = vmatpush1.msra.mxu0 %v41
  %219 = vmatprep.subr.mxu0 0.0
  %220 = vmatpush1.msra.mxu0 %v42
  %221 = vmatprep.subr.mxu0 0.0
  %222 = vmatpush1.msra.mxu0 %v43
  %223 = vmatprep.subr.mxu0 0.0
  %224 = vmatpush1.msra.mxu0 %v44
  %225 = vmatprep.subr.mxu0 0.0
  %226 = vmatpush1.msra.mxu0 %v45
  %227 = vmatprep.subr.mxu0 0.0
  %228 = vmatpush1.msra.mxu0 %v46
  %229 = vmatprep.subr.mxu0 0.0
  %230 = vmatpush1.msra.mxu0 %v47
  %231 = vmatprep.mubr.f32.mxu0 %v140
  %232 = vmatmul.mubr.f32.gmra.mrb[0].mxu0 %v132
  %v233 = vpop.f32.mrb[0].mxu0
  %v234 = vadd.f32 %v121, %v233
  %v235 = vpop.f32.mrb[0].mxu0
  %236 = vdwg.mxu0
  %237 = vmatprep.subr.mxu0 0.0
  %238 = vmatpush1.msra.mxu0 %v48
  %239 = vmatprep.subr.mxu0 0.0
  %240 = vmatpush1.msra.mxu0 %v49
  %241 = vmatprep.subr.mxu0 0.0
  %242 = vmatpush1.msra.mxu0 %v50
  %243 = vmatprep.subr.mxu0 0.0
  %244 = vmatpush1.msra.mxu0 %v51
  %245 = vmatprep.subr.mxu0 0.0
  %246 = vmatpush1.msra.mxu0 %v52
  %247 = vmatprep.subr.mxu0 0.0
  %248 = vmatpush1.msra.mxu0 %v53
  %249 = vmatprep.subr.mxu0 0.0
  %250 = vmatpush1.msra.mxu0 %v54
  %251 = vmatprep.subr.mxu0 0.0
  %252 = vmatpush1.msra.mxu0 %v55
  %253 = vmatprep.subr.mxu0 0.0
  %254 = vmatpush1.msra.mxu0 %v56
  %255 = vmatprep.subr.mxu0 0.0
  %256 = vmatpush1.msra.mxu0 %v57
  %257 = vmatprep.subr.mxu0 0.0
  %258 = vmatpush1.msra.mxu0 %v58
  %259 = vmatprep.subr.mxu0 0.0
  %260 = vmatpush1.msra.mxu0 %v59
  %261 = vmatprep.subr.mxu0 0.0
  %262 = vmatpush1.msra.mxu0 %v60
  %263 = vmatprep.subr.mxu0 0.0
  %264 = vmatpush1.msra.mxu0 %v61
  %265 = vmatprep.subr.mxu0 0.0
  %266 = vmatpush1.msra.mxu0 %v62
  %267 = vmatprep.subr.mxu0 0.0
  %268 = vmatpush1.msra.mxu0 %v63
  %269 = vmatprep.subr.mxu0 0.0
  %270 = vmatpush1.msra.mxu0 %v64
  %271 = vmatprep.subr.mxu0 0.0
  %272 = vmatpush1.msra.mxu0 %v65
  %273 = vmatprep.subr.mxu0 0.0
  %274 = vmatpush1.msra.mxu0 %v66
  %275 = vmatprep.subr.mxu0 0.0
  %276 = vmatpush1.msra.mxu0 %v67
  %277 = vmatprep.subr.mxu0 0.0
  %278 = vmatpush1.msra.mxu0 %v68
  %279 = vmatprep.subr.mxu0 0.0
  %280 = vmatpush1.msra.mxu0 %v69
  %281 = vmatprep.subr.mxu0 0.0
  %282 = vmatpush1.msra.mxu0 %v70
  %283 = vmatprep.subr.mxu0 0.0
  %284 = vmatpush1.msra.mxu0 %v71
  %285 = vmatprep.subr.mxu0 0.0
  %286 = vmatpush1.msra.mxu0 %v72
  %287 = vmatprep.subr.mxu0 0.0
  %288 = vmatpush1.msra.mxu0 %v73
  %289 = vmatprep.subr.mxu0 0.0
  %290 = vmatpush1.msra.mxu0 %v74
  %291 = vmatprep.subr.mxu0 0.0
  %292 = vmatpush1.msra.mxu0 %v75
  %293 = vmatprep.subr.mxu0 0.0
  %294 = vmatpush1.msra.mxu0 %v76
  %295 = vmatprep.subr.mxu0 0.0
  %296 = vmatpush1.msra.mxu0 %v77
  %297 = vmatprep.subr.mxu0 0.0
  %298 = vmatpush1.msra.mxu0 %v78
  %299 = vmatprep.subr.mxu0 0.0
  %300 = vmatpush1.msra.mxu0 %v79
  %301 = vmatprep.mubr.f32.mxu0 %v141
  %302 = vmatmul.mubr.f32.gmra.mrb[0].mxu0 %v139
  %v303 = vpop.f32.mrb[0].mxu0
  %v304 = vadd.f32 %v234, %v303
  %v305 = vpop.f32.mrb[0].mxu0
  %306 = vdwg.mxu0
  %307 = vmatprep.subr.mxu0 0.0
  %308 = vmatpush1.msra.mxu0 %v80
  %309 = vmatprep.subr.mxu0 0.0
  %310 = vmatpush1.msra.mxu0 %v81
  %311 = vmatprep.subr.mxu0 0.0
  %312 = vmatpush1.msra.mxu0 %v82
  %313 = vmatprep.subr.mxu0 0.0
  %314 = vmatpush1.msra.mxu0 %v83
  %315 = vmatprep.subr.mxu0 0.0
  %316 = vmatpush1.msra.mxu0 %v84
  %317 = vmatprep.subr.mxu0 0.0
  %318 = vmatpush1.msra.mxu0 %v85
  %319 = vmatprep.subr.mxu0 0.0
  %320 = vmatpush1.msra.mxu0 %v86
  %321 = vmatprep.subr.mxu0 0.0
  %322 = vmatpush1.msra.mxu0 %v87
  %323 = vmatprep.subr.mxu0 0.0
  %324 = vmatpush1.msra.mxu0 %v88
  %325 = vmatprep.subr.mxu0 0.0
  %326 = vmatpush1.msra.mxu0 %v89
  %327 = vmatprep.subr.mxu0 0.0
  %328 = vmatpush1.msra.mxu0 %v90
  %329 = vmatprep.subr.mxu0 0.0
  %330 = vmatpush1.msra.mxu0 %v91
  %331 = vmatprep.subr.mxu0 0.0
  %332 = vmatpush1.msra.mxu0 %v92
  %333 = vmatprep.subr.mxu0 0.0
  %334 = vmatpush1.msra.mxu0 %v93
  %335 = vmatprep.subr.mxu0 0.0
  %336 = vmatpush1.msra.mxu0 %v94
  %337 = vmatprep.subr.mxu0 0.0
  %338 = vmatpush1.msra.mxu0 %v95
  %339 = vmatprep.subr.mxu0 0.0
  %340 = vmatpush1.msra.mxu0 %v96
  %341 = vmatprep.subr.mxu0 0.0
  %342 = vmatpush1.msra.mxu0 %v97
  %343 = vmatprep.subr.mxu0 0.0
  %344 = vmatpush1.msra.mxu0 %v98
  %345 = vmatprep.subr.mxu0 0.0
  %346 = vmatpush1.msra.mxu0 %v99
  %347 = vmatprep.subr.mxu0 0.0
  %348 = vmatpush1.msra.mxu0 %v100
  %349 = vmatprep.subr.mxu0 0.0
  %350 = vmatpush1.msra.mxu0 %v101
  %351 = vmatprep.subr.mxu0 0.0
  %352 = vmatpush1.msra.mxu0 %v102
  %353 = vmatprep.subr.mxu0 0.0
  %354 = vmatpush1.msra.mxu0 %v103
  %355 = vmatprep.subr.mxu0 0.0
  %356 = vmatpush1.msra.mxu0 %v104
  %357 = vmatprep.subr.mxu0 0.0
  %358 = vmatpush1.msra.mxu0 %v105
  %359 = vmatprep.subr.mxu0 0.0
  %360 = vmatpush1.msra.mxu0 %v106
  %361 = vmatprep.subr.mxu0 0.0
  %362 = vmatpush1.msra.mxu0 %v107
  %363 = vmatprep.subr.mxu0 0.0
  %364 = vmatpush1.msra.mxu0 %v108
  %365 = vmatprep.subr.mxu0 0.0
  %366 = vmatpush1.msra.mxu0 %v109
  %367 = vmatprep.subr.mxu0 0.0
  %368 = vmatpush1.msra.mxu0 %v110
  %369 = vmatprep.subr.mxu0 0.0
  %370 = vmatpush1.msra.mxu0 %v111
  %371 = vmatprep.mubr.f32.mxu0 %v157
  %372 = vmatmul.mubr.f32.gmra.mrb[0].mxu0 %v149
  %v373 = vpop.f32.mrb[0].mxu0
  %v374 = vadd.f32 %v304, %v373
  %v375 = vpop.f32.mrb[0].mxu0
  %376 = vdwg.mxu0
  %377 = vmatprep.subr.mxu0 0.0
  %378 = vmatpush1.msra.mxu0 %v112
  %379 = vmatprep.subr.mxu0 0.0
  %380 = vmatpush1.msra.mxu0 %v113
  %381 = vmatprep.subr.mxu0 0.0
  %382 = vmatpush1.msra.mxu0 %v114
  %383 = vmatprep.subr.mxu0 0.0
  %384 = vmatpush1.msra.mxu0 %v115
  %385 = vmatprep.subr.mxu0 0.0
  %386 = vmatpush1.msra.mxu0 0.0
  %387 = vmatprep.subr.mxu0 0.0
  %388 = vmatpush1.msra.mxu0 0.0
  %389 = vmatprep.subr.mxu0 0.0
  %390 = vmatpush1.msra.mxu0 0.0
  %391 = vmatprep.subr.mxu0 0.0
  %392 = vmatpush1.msra.mxu0 0.0
  %393 = vmatprep.subr.mxu0 0.0
  %394 = vmatpush1.msra.mxu0 0.0
  %395 = vmatprep.subr.mxu0 0.0
  %396 = vmatpush1.msra.mxu0 0.0
  %397 = vmatprep.subr.mxu0 0.0
  %398 = vmatpush1.msra.mxu0 0.0
  %399 = vmatprep.subr.mxu0 0.0
  %400 = vmatpush1.msra.mxu0 0.0
  %401 = vmatprep.subr.mxu0 0.0
  %402 = vmatpush1.msra.mxu0 0.0
  %403 = vmatprep.subr.mxu0 0.0
  %404 = vmatpush1.msra.mxu0 0.0
  %405 = vmatprep.subr.mxu0 0.0
  %406 = vmatpush1.msra.mxu0 0.0
  %407 = vmatprep.subr.mxu0 0.0
  %408 = vmatpush1.msra.mxu0 0.0
  %409 = vmatprep.subr.mxu0 0.0
  %410 = vmatpush1.msra.mxu0 0.0
  %411 = vmatprep.subr.mxu0 0.0
  %412 = vmatpush1.msra.mxu0 0.0
  %413 = vmatprep.subr.mxu0 0.0
  %414 = vmatpush1.msra.mxu0 0.0
  %415 = vmatprep.subr.mxu0 0.0
  %416 = vmatpush1.msra.mxu0 0.0
  %417 = vmatprep.subr.mxu0 0.0
  %418 = vmatpush1.msra.mxu0 0.0
  %419 = vmatprep.subr.mxu0 0.0
  %420 = vmatpush1.msra.mxu0 0.0
  %421 = vmatprep.subr.mxu0 0.0
  %422 = vmatpush1.msra.mxu0 0.0
  %423 = vmatprep.subr.mxu0 0.0
  %424 = vmatpush1.msra.mxu0 0.0
  %425 = vmatprep.subr.mxu0 0.0
  %426 = vmatpush1.msra.mxu0 0.0
  %427 = vmatprep.subr.mxu0 0.0
  %428 = vmatpush1.msra.mxu0 0.0
  %429 = vmatprep.subr.mxu0 0.0
  %430 = vmatpush1.msra.mxu0 0.0
  %431 = vmatprep.subr.mxu0 0.0
  %432 = vmatpush1.msra.mxu0 0.0
  %433 = vmatprep.subr.mxu0 0.0
  %434 = vmatpush1.msra.mxu0 0.0
  %435 = vmatprep.subr.mxu0 0.0
  %436 = vmatpush1.msra.mxu0 0.0
  %437 = vmatprep.subr.mxu0 0.0
  %438 = vmatpush1.msra.mxu0 0.0
  %439 = vmatprep.subr.mxu0 0.0
  %440 = vmatpush1.msra.mxu0 0.0
  %441 = vmatprep.mubr.f32.mxu0 0.0
  %442 = vmatmul.mubr.f32.gmra.mrb[0].mxu0 %v165
  %v443 = vpop.f32.mrb[0].mxu0
  %v444 = vadd.f32 %v374, %v443
  %v445 = vpop.f32.mrb[0].mxu0
  %446 = vdwg.mxu0
  %v447 = vmax.f32 %v444, 0.0
  %vm448 = vcmask 254976
  %449 = vst.msk [vmem:[%s3] sm:$0x3] %vm448, %v447
  // Predicated region
  $region14: #{multihead_dqn_forward.6} parent=0 // pred_check
    _
  $region15: #{multihead_dqn_forward.6} parent=0 // pred_check_branch
    %451 = sbr.rel (0) target = $region17
  $region16: #{multihead_dqn_forward.6} parent=0 // pred_region
    _
  $region17: #{multihead_dqn_forward.6} parent=0 // pred_fallthru
    _
  // Predicated region
  $region18: #{multihead_dqn_forward.6} parent=0 // pred_check
    _
  $region19: #{multihead_dqn_forward.6} parent=0 // pred_check_branch
    %453 = sbr.rel (0) target = $region21
  $region20: #{multihead_dqn_forward.6} parent=0 // pred_region
    _
  $region21: #{multihead_dqn_forward.6} parent=0 // pred_fallthru
    _

// kernel: multihead_dqn_forward.7
$region0: #{multihead_dqn_forward.7}
  #allocation0 [shape = 'u32[]', space=smem, size = 0x4, offset = 0x4, fixed_abs, tag = 'smem constant byte address 0x4 - core index']
  #allocation1 [shape = 'u32[144,128]{1,0:T(1,128)}', space=vmem, size = 0x12000, scoped, tag = 'internal scratch']
  %s0 = inlined_call_operand.vmem [shape: f32[2,32], index: 0, kind: input, shape index: {}]
  %s1 = inlined_call_operand.vmem [shape: f32[32,32], index: 1, kind: input, shape index: {}]
  %s2 = inlined_call_operand.vmem [shape: f32[1,32], index: 2, kind: input, shape index: {}]
  %s3 = inlined_call_operand.vmem [shape: f32[8,8], index: 3, kind: input, shape index: {}]
  %s4 = inlined_call_operand.vmem [shape: f32[1,8], index: 4, kind: input, shape index: {}]
  %s5 = inlined_call_operand.vmem [shape: f32[8,16], index: 5, kind: input, shape index: {}]
  %s6 = inlined_call_operand.vmem [shape: f32[1,16], index: 6, kind: input, shape index: {}]
  %s7 = inlined_call_operand.vmem [shape: f32[32,8], index: 7, kind: input, shape index: {}]
  %s8 = inlined_call_operand.vmem [shape: f32[8,8], index: 8, kind: input, shape index: {}]
  %s9 = inlined_call_operand.vmem [shape: f32[1,8], index: 9, kind: input, shape index: {}]
  %s10 = inlined_call_operand.vmem [shape: f32[8,8], index: 10, kind: input, shape index: {}]
  %s11 = inlined_call_operand.vmem [shape: f32[1,8], index: 11, kind: input, shape index: {}]
  %s12 = inlined_call_operand.hbm [shape: f32[2,8], index: 12, kind: output, shape index: {0}]
  %s13 = inlined_call_operand.vmem [shape: f32[2,24], index: 13, kind: output, shape index: {1}]
  %s14 = inlined_call_operand.hbm [shape: f32[2,8], index: 14, kind: output, shape index: {2}]
  %s15 = inlined_call_operand.hbm [shape: f32[2,3], index: 15, kind: output, shape index: {3}]
  %16 = xla_tuple %s12, %s13, %s14, %s15
  %s17 = sld [smem:[#allocation0]]
  $region82: #{multihead_dqn_forward.7} parent=0
    _
  %s19 = ssub.s32 1, %s17
  %s20 = scalar_select 0, %s19, %s17
  $region1: #{multihead_dqn_forward.7} parent=0
    #allocation2 [shape = 'u8[1024]{0}', space=vmem, size = 0x400, scoped, tag = 'output window, operand 0, single buffered']
    #allocation3 [shape = 's32[1]{0}', space=sflag, size = 0x4, scoped, tag = 'scoped memory for multihead_dqn_forward.7']
    #allocation4 [shape = 'u8[1024]{0}', space=vmem, size = 0x400, scoped, tag = 'output window, operand 2, single buffered']
    #allocation5 [shape = 's32[1]{0}', space=sflag, size = 0x4, scoped, tag = 'scoped memory for multihead_dqn_forward.7']
    #allocation6 [shape = 'u8[1024]{0}', space=vmem, size = 0x400, scoped, tag = 'output window, operand 3, single buffered']
    %21 = vsyncpa [#allocation3], 0
    %22 = vsyncpa [#allocation5], 0
    // Predicated region
    $region2: #{multihead_dqn_forward.7} parent=1 // pred_check
      _
    $region3: #{multihead_dqn_forward.7} parent=1 // pred_check_branch
      %24 = sbr.rel (0) target = $region5
    $region4: #{multihead_dqn_forward.7} parent=1 // pred_region
      _
    $region5: #{multihead_dqn_forward.7} parent=1 // pred_fallthru
      _
    // Predicated region
    $region6: #{multihead_dqn_forward.7} parent=1 // pred_check
      _
    $region7: #{multihead_dqn_forward.7} parent=1 // pred_check_branch
      %26 = sbr.rel (0) target = $region9
    $region8: #{multihead_dqn_forward.7} parent=1 // pred_region
      _
    $region9: #{multihead_dqn_forward.7} parent=1 // pred_fallthru
      _
    // Predicated region
    $region10: #{multihead_dqn_forward.7} parent=1 // pred_check
      _
    $region11: #{multihead_dqn_forward.7} parent=1 // pred_check_branch
      %28 = sbr.rel (0) target = $region13
    $region12: #{multihead_dqn_forward.7} parent=1 // pred_region
      _
    $region13: #{multihead_dqn_forward.7} parent=1 // pred_fallthru
      _
    // Predicated region
    $region14: #{multihead_dqn_forward.7} parent=1 // pred_check
      _
    $region15: #{multihead_dqn_forward.7} parent=1 // pred_check_branch
      %30 = sbr.rel (0) target = $region17
    $region16: #{multihead_dqn_forward.7} parent=1 // pred_region
      _
    $region17: #{multihead_dqn_forward.7} parent=1 // pred_fallthru
      _
    // Predicated region
    $region18: #{multihead_dqn_forward.7} parent=1 // pred_check
      _
    $region19: #{multihead_dqn_forward.7} parent=1 // pred_check_branch
      %32 = sbr.rel (0) target = $region21
    $region20: #{multihead_dqn_forward.7} parent=1 // pred_region
      _
    $region21: #{multihead_dqn_forward.7} parent=1 // pred_fallthru
      _
    // Predicated region
    $region22: #{multihead_dqn_forward.7} parent=1 // pred_check
      _
    $region23: #{multihead_dqn_forward.7} parent=1 // pred_check_branch
      %34 = sbr.rel (0) target = $region25
    $region24: #{multihead_dqn_forward.7} parent=1 // pred_region
      _
    $region25: #{multihead_dqn_forward.7} parent=1 // pred_fallthru
      _
    // Predicated region
    $region26: #{multihead_dqn_forward.7} parent=1 // pred_check
      _
    $region27: #{multihead_dqn_forward.7} parent=1 // pred_check_branch
      %36 = sbr.rel (0) target = $region29
    $region28: #{multihead_dqn_forward.7} parent=1 // pred_region
      _
    $region29: #{multihead_dqn_forward.7} parent=1 // pred_fallthru
      _
    // Predicated region
    $region30: #{multihead_dqn_forward.7} parent=1 // pred_check
      _
    $region31: #{multihead_dqn_forward.7} parent=1 // pred_check_branch
      %38 = sbr.rel (0) target = $region33
    $region32: #{multihead_dqn_forward.7} parent=1 // pred_region
      _
    $region33: #{multihead_dqn_forward.7} parent=1 // pred_fallthru
      _
    // Predicated region
    $region34: #{multihead_dqn_forward.7} parent=1 // pred_check
      _
    $region35: #{multihead_dqn_forward.7} parent=1 // pred_check_branch
      %40 = sbr.rel (0) target = $region37
    $region36: #{multihead_dqn_forward.7} parent=1 // pred_region
      _
    $region37: #{multihead_dqn_forward.7} parent=1 // pred_fallthru
      _
    // Predicated region
    $region38: #{multihead_dqn_forward.7} parent=1 // pred_check
      _
    $region39: #{multihead_dqn_forward.7} parent=1 // pred_check_branch
      %42 = sbr.rel (0) target = $region41
    $region40: #{multihead_dqn_forward.7} parent=1 // pred_region
      _
    $region41: #{multihead_dqn_forward.7} parent=1 // pred_fallthru
      _
    // Predicated region
    $region42: #{multihead_dqn_forward.7} parent=1 // pred_check
      _
    $region43: #{multihead_dqn_forward.7} parent=1 // pred_check_branch
      %44 = sbr.rel (0) target = $region45
    $region44: #{multihead_dqn_forward.7} parent=1 // pred_region
      _
    $region45: #{multihead_dqn_forward.7} parent=1 // pred_fallthru
      _
    // Predicated region
    $region46: #{multihead_dqn_forward.7} parent=1 // pred_check
      _
    $region47: #{multihead_dqn_forward.7} parent=1 // pred_check_branch
      %46 = sbr.rel (0) target = $region49
    $region48: #{multihead_dqn_forward.7} parent=1 // pred_region
      _
    $region49: #{multihead_dqn_forward.7} parent=1 // pred_fallthru
      _
    %v47 = vld [vmem:[%s0] sm:$0x3]
    %v48 = vld [vmem:[%s1] sm:$0xff]
    %v49 = vld [vmem:[%s1 + $0x8] sm:$0xff]
    %v50 = vld [vmem:[%s1 + $0x10] sm:$0xff]
    %v51 = vld [vmem:[%s1 + $0x18] sm:$0xff]
    %v52 = vld [vmem:[%s2] sm:$0x1]
    %v54 = vlaneseq
    %v55 = vshrl.u32 %v54, 7
    %v56 = vsub.s32 0, %v55
    %v57 = vrot.slane %v52, %v56
    %vm59 = vcmask 261120
    %v61 = vsel %vm59, %v47, 0
    %63 = vmatprep.subr.mxu0 0.0
    %64 = vmatpush1.msra.mxu0 %v48
    %65 = vmatprep.subr.mxu0 0.0
    %66 = vmatpush1.msra.mxu0 %v49
    %67 = vmatprep.subr.mxu0 0.0
    %68 = vmatpush1.msra.mxu0 %v50
    %69 = vmatprep.subr.mxu0 0.0
    %70 = vmatpush1.msra.mxu0 %v51
    %71 = vmatprep.subr.mxu0 0.0
    %72 = vmatpush1.msra.mxu0 0.0
    %73 = vmatprep.subr.mxu0 0.0
    %74 = vmatpush1.msra.mxu0 0.0
    %75 = vmatprep.subr.mxu0 0.0
    %76 = vmatpush1.msra.mxu0 0.0
    %77 = vmatprep.subr.mxu0 0.0
    %78 = vmatpush1.msra.mxu0 0.0
    %79 = vmatprep.subr.mxu0 0.0
    %80 = vmatpush1.msra.mxu0 0.0
    %81 = vmatprep.subr.mxu0 0.0
    %82 = vmatpush1.msra.mxu0 0.0
    %83 = vmatprep.subr.mxu0 0.0
    %84 = vmatpush1.msra.mxu0 0.0
    %85 = vmatprep.subr.mxu0 0.0
    %86 = vmatpush1.msra.mxu0 0.0
    %87 = vmatprep.subr.mxu0 0.0
    %88 = vmatpush1.msra.mxu0 0.0
    %89 = vmatprep.subr.mxu0 0.0
    %90 = vmatpush1.msra.mxu0 0.0
    %91 = vmatprep.subr.mxu0 0.0
    %92 = vmatpush1.msra.mxu0 0.0
    %93 = vmatprep.subr.mxu0 0.0
    %94 = vmatpush1.msra.mxu0 0.0
    %95 = vmatprep.subr.mxu0 0.0
    %96 = vmatpush1.msra.mxu0 0.0
    %97 = vmatprep.subr.mxu0 0.0
    %98 = vmatpush1.msra.mxu0 0.0
    %99 = vmatprep.subr.mxu0 0.0
    %100 = vmatpush1.msra.mxu0 0.0
    %101 = vmatprep.subr.mxu0 0.0
    %102 = vmatpush1.msra.mxu0 0.0
    %103 = vmatprep.subr.mxu0 0.0
    %104 = vmatpush1.msra.mxu0 0.0
    %105 = vmatprep.subr.mxu0 0.0
    %106 = vmatpush1.msra.mxu0 0.0
    %107 = vmatprep.subr.mxu0 0.0
    %108 = vmatpush1.msra.mxu0 0.0
    %109 = vmatprep.subr.mxu0 0.0
    %110 = vmatpush1.msra.mxu0 0.0
    %111 = vmatprep.subr.mxu0 0.0
    %112 = vmatpush1.msra.mxu0 0.0
    %113 = vmatprep.subr.mxu0 0.0
    %114 = vmatpush1.msra.mxu0 0.0
    %115 = vmatprep.subr.mxu0 0.0
    %116 = vmatpush1.msra.mxu0 0.0
    %117 = vmatprep.subr.mxu0 0.0
    %118 = vmatpush1.msra.mxu0 0.0
    %119 = vmatprep.subr.mxu0 0.0
    %120 = vmatpush1.msra.mxu0 0.0
    %121 = vmatprep.subr.mxu0 0.0
    %122 = vmatpush1.msra.mxu0 0.0
    %123 = vmatprep.subr.mxu0 0.0
    %124 = vmatpush1.msra.mxu0 0.0
    %125 = vmatprep.subr.mxu0 0.0
    %126 = vmatpush1.msra.mxu0 0.0
    %127 = vmatprep.mubr.f32.mxu0 0.0
    %128 = vmatmul.mubr.f32.gmra.mrb[0].mxu0 %v61
    %v129 = vpop.f32.mrb[0].mxu0
    %v130 = vadd.f32 %v57, %v129
    %v131 = vpop.f32.mrb[0].mxu0
    %132 = vdwg.mxu0
    %vm133 = vcmask 58368
    %134 = vst.msk [vmem:[#allocation2] sm:$0x3] %vm133, %v130
    %136 = vrot.lane.b32.xlu0 %v130, 120
    %v137 = vpop.permute.xlu0 %136
    %vm139 = vcmask 189440
    %140 = vst.msk [vmem:[%s13] sm:$0x3] %vm139, %v137
    %v141 = vld [vmem:[%s7] sm:$0xff]
    %v142 = vld [vmem:[%s7 + $0x8] sm:$0xff]
    %v143 = vld [vmem:[%s7 + $0x10] sm:$0xff]
    %v144 = vld [vmem:[%s7 + $0x18] sm:$0xff]
    %v145 = vld [vmem:[%s9] sm:$0x1]
    %v147 = vlaneseq
    %v148 = vshrl.u32 %v147, 7
    %v149 = vsub.s32 0, %v148
    %v150 = vrot.slane %v145, %v149
    %152 = vmatprep.subr.mxu0 0.0
    %153 = vmatpush1.msra.mxu0 %v141
    %154 = vmatprep.subr.mxu0 0.0
    %155 = vmatpush1.msra.mxu0 %v142
    %156 = vmatprep.subr.mxu0 0.0
    %157 = vmatpush1.msra.mxu0 %v143
    %158 = vmatprep.subr.mxu0 0.0
    %159 = vmatpush1.msra.mxu0 %v144
    %160 = vmatprep.subr.mxu0 0.0
    %161 = vmatpush1.msra.mxu0 0.0
    %162 = vmatprep.subr.mxu0 0.0
    %163 = vmatpush1.msra.mxu0 0.0
    %164 = vmatprep.subr.mxu0 0.0
    %165 = vmatpush1.msra.mxu0 0.0
    %166 = vmatprep.subr.mxu0 0.0
    %167 = vmatpush1.msra.mxu0 0.0
    %168 = vmatprep.subr.mxu0 0.0
    %169 = vmatpush1.msra.mxu0 0.0
    %170 = vmatprep.subr.mxu0 0.0
    %171 = vmatpush1.msra.mxu0 0.0
    %172 = vmatprep.subr.mxu0 0.0
    %173 = vmatpush1.msra.mxu0 0.0
    %174 = vmatprep.subr.mxu0 0.0
    %175 = vmatpush1.msra.mxu0 0.0
    %176 = vmatprep.subr.mxu0 0.0
    %177 = vmatpush1.msra.mxu0 0.0
    %178 = vmatprep.subr.mxu0 0.0
    %179 = vmatpush1.msra.mxu0 0.0
    %180 = vmatprep.subr.mxu0 0.0
    %181 = vmatpush1.msra.mxu0 0.0
    %182 = vmatprep.subr.mxu0 0.0
    %183 = vmatpush1.msra.mxu0 0.0
    %184 = vmatprep.subr.mxu0 0.0
    %185 = vmatpush1.msra.mxu0 0.0
    %186 = vmatprep.subr.mxu0 0.0
    %187 = vmatpush1.msra.mxu0 0.0
    %188 = vmatprep.subr.mxu0 0.0
    %189 = vmatpush1.msra.mxu0 0.0
    %190 = vmatprep.subr.mxu0 0.0
    %191 = vmatpush1.msra.mxu0 0.0
    %192 = vmatprep.subr.mxu0 0.0
    %193 = vmatpush1.msra.mxu0 0.0
    %194 = vmatprep.subr.mxu0 0.0
    %195 = vmatpush1.msra.mxu0 0.0
    %196 = vmatprep.subr.mxu0 0.0
    %197 = vmatpush1.msra.mxu0 0.0
    %198 = vmatprep.subr.mxu0 0.0
    %199 = vmatpush1.msra.mxu0 0.0
    %200 = vmatprep.subr.mxu0 0.0
    %201 = vmatpush1.msra.mxu0 0.0
    %202 = vmatprep.subr.mxu0 0.0
    %203 = vmatpush1.msra.mxu0 0.0
    %204 = vmatprep.subr.mxu0 0.0
    %205 = vmatpush1.msra.mxu0 0.0
    %206 = vmatprep.subr.mxu0 0.0
    %207 = vmatpush1.msra.mxu0 0.0
    %208 = vmatprep.subr.mxu0 0.0
    %209 = vmatpush1.msra.mxu0 0.0
    %210 = vmatprep.subr.mxu0 0.0
    %211 = vmatpush1.msra.mxu0 0.0
    %212 = vmatprep.subr.mxu0 0.0
    %213 = vmatpush1.msra.mxu0 0.0
    %214 = vmatprep.subr.mxu0 0.0
    %215 = vmatpush1.msra.mxu0 0.0
    %216 = vmatprep.mubr.f32.mxu0 0.0
    %217 = vmatmul.mubr.f32.gmra.mrb[0].mxu0 %v61
    %v218 = vpop.f32.mrb[0].mxu0
    %v219 = vadd.f32 %v150, %v218
    %v220 = vpop.f32.mrb[0].mxu0
    %221 = vdwg.mxu0
    %v222 = vld [vmem:[%s3] sm:$0xff]
    %v223 = vld [vmem:[%s4] sm:$0x1]
    %v225 = vlaneseq
    %v226 = vshrl.u32 %v225, 7
    %v227 = vsub.s32 0, %v226
    %v228 = vrot.slane %v223, %v227
    %vm230 = vcmask 64512
    %v231 = vsel %vm230, %v130, 0
    %233 = vmatprep.subr.mxu0 0.0
    %234 = vmatpush1.msra.mxu0 %v222
    %235 = vmatprep.subr.mxu0 0.0
    %236 = vmatpush1.msra.mxu0 0.0
    %237 = vmatprep.subr.mxu0 0.0
    %238 = vmatpush1.msra.mxu0 0.0
    %239 = vmatprep.subr.mxu0 0.0
    %240 = vmatpush1.msra.mxu0 0.0
    %241 = vmatprep.subr.mxu0 0.0
    %242 = vmatpush1.msra.mxu0 0.0
    %243 = vmatprep.subr.mxu0 0.0
    %244 = vmatpush1.msra.mxu0 0.0
    %245 = vmatprep.subr.mxu0 0.0
    %246 = vmatpush1.msra.mxu0 0.0
    %247 = vmatprep.subr.mxu0 0.0
    %248 = vmatpush1.msra.mxu0 0.0
    %249 = vmatprep.subr.mxu0 0.0
    %250 = vmatpush1.msra.mxu0 0.0
    %251 = vmatprep.subr.mxu0 0.0
    %252 = vmatpush1.msra.mxu0 0.0
    %253 = vmatprep.subr.mxu0 0.0
    %254 = vmatpush1.msra.mxu0 0.0
    %255 = vmatprep.subr.mxu0 0.0
    %256 = vmatpush1.msra.mxu0 0.0
    %257 = vmatprep.subr.mxu0 0.0
    %258 = vmatpush1.msra.mxu0 0.0
    %259 = vmatprep.subr.mxu0 0.0
    %260 = vmatpush1.msra.mxu0 0.0
    %261 = vmatprep.subr.mxu0 0.0
    %262 = vmatpush1.msra.mxu0 0.0
    %263 = vmatprep.subr.mxu0 0.0
    %264 = vmatpush1.msra.mxu0 0.0
    %265 = vmatprep.subr.mxu0 0.0
    %266 = vmatpush1.msra.mxu0 0.0
    %267 = vmatprep.subr.mxu0 0.0
    %268 = vmatpush1.msra.mxu0 0.0
    %269 = vmatprep.subr.mxu0 0.0
    %270 = vmatpush1.msra.mxu0 0.0
    %271 = vmatprep.subr.mxu0 0.0
    %272 = vmatpush1.msra.mxu0 0.0
    %273 = vmatprep.subr.mxu0 0.0
    %274 = vmatpush1.msra.mxu0 0.0
    %275 = vmatprep.subr.mxu0 0.0
    %276 = vmatpush1.msra.mxu0 0.0
    %277 = vmatprep.subr.mxu0 0.0
    %278 = vmatpush1.msra.mxu0 0.0
    %279 = vmatprep.subr.mxu0 0.0
    %280 = vmatpush1.msra.mxu0 0.0
    %281 = vmatprep.subr.mxu0 0.0
    %282 = vmatpush1.msra.mxu0 0.0
    %283 = vmatprep.subr.mxu0 0.0
    %284 = vmatpush1.msra.mxu0 0.0
    %285 = vmatprep.subr.mxu0 0.0
    %286 = vmatpush1.msra.mxu0 0.0
    %287 = vmatprep.subr.mxu0 0.0
    %288 = vmatpush1.msra.mxu0 0.0
    %289 = vmatprep.subr.mxu0 0.0
    %290 = vmatpush1.msra.mxu0 0.0
    %291 = vmatprep.subr.mxu0 0.0
    %292 = vmatpush1.msra.mxu0 0.0
    %293 = vmatprep.subr.mxu0 0.0
    %294 = vmatpush1.msra.mxu0 0.0
    %295 = vmatprep.subr.mxu0 0.0
    %296 = vmatpush1.msra.mxu0 0.0
    %297 = vmatprep.mubr.f32.mxu0 0.0
    %298 = vmatmul.mubr.f32.gmra.mrb[0].mxu0 %v231
    %v299 = vpop.f32.mrb[0].mxu0
    %v300 = vadd.f32 %v228, %v299
    %v301 = vpop.f32.mrb[0].mxu0
    %302 = vdwg.mxu0
    %v303 = vld [vmem:[%s8] sm:$0xff]
    %v305 = vsel %vm230, %v300, 0
    %307 = vmatprep.subr.mxu0 0.0
    %308 = vmatpush1.msra.mxu0 %v303
    %309 = vmatprep.subr.mxu0 0.0
    %310 = vmatpush1.msra.mxu0 0.0
    %311 = vmatprep.subr.mxu0 0.0
    %312 = vmatpush1.msra.mxu0 0.0
    %313 = vmatprep.subr.mxu0 0.0
    %314 = vmatpush1.msra.mxu0 0.0
    %315 = vmatprep.subr.mxu0 0.0
    %316 = vmatpush1.msra.mxu0 0.0
    %317 = vmatprep.subr.mxu0 0.0
    %318 = vmatpush1.msra.mxu0 0.0
    %319 = vmatprep.subr.mxu0 0.0
    %320 = vmatpush1.msra.mxu0 0.0
    %321 = vmatprep.subr.mxu0 0.0
    %322 = vmatpush1.msra.mxu0 0.0
    %323 = vmatprep.subr.mxu0 0.0
    %324 = vmatpush1.msra.mxu0 0.0
    %325 = vmatprep.subr.mxu0 0.0
    %326 = vmatpush1.msra.mxu0 0.0
    %327 = vmatprep.subr.mxu0 0.0
    %328 = vmatpush1.msra.mxu0 0.0
    %329 = vmatprep.subr.mxu0 0.0
    %330 = vmatpush1.msra.mxu0 0.0
    %331 = vmatprep.subr.mxu0 0.0
    %332 = vmatpush1.msra.mxu0 0.0
    %333 = vmatprep.subr.mxu0 0.0
    %334 = vmatpush1.msra.mxu0 0.0
    %335 = vmatprep.subr.mxu0 0.0
    %336 = vmatpush1.msra.mxu0 0.0
    %337 = vmatprep.subr.mxu0 0.0
    %338 = vmatpush1.msra.mxu0 0.0
    %339 = vmatprep.subr.mxu0 0.0
    %340 = vmatpush1.msra.mxu0 0.0
    %341 = vmatprep.subr.mxu0 0.0
    %342 = vmatpush1.msra.mxu0 0.0
    %343 = vmatprep.subr.mxu0 0.0
    %344 = vmatpush1.msra.mxu0 0.0
    %345 = vmatprep.subr.mxu0 0.0
    %346 = vmatpush1.msra.mxu0 0.0
    %347 = vmatprep.subr.mxu0 0.0
    %348 = vmatpush1.msra.mxu0 0.0
    %349 = vmatprep.subr.mxu0 0.0
    %350 = vmatpush1.msra.mxu0 0.0
    %351 = vmatprep.subr.mxu0 0.0
    %352 = vmatpush1.msra.mxu0 0.0
    %353 = vmatprep.subr.mxu0 0.0
    %354 = vmatpush1.msra.mxu0 0.0
    %355 = vmatprep.subr.mxu0 0.0
    %356 = vmatpush1.msra.mxu0 0.0
    %357 = vmatprep.subr.mxu0 0.0
    %358 = vmatpush1.msra.mxu0 0.0
    %359 = vmatprep.subr.mxu0 0.0
    %360 = vmatpush1.msra.mxu0 0.0
    %361 = vmatprep.subr.mxu0 0.0
    %362 = vmatpush1.msra.mxu0 0.0
    %363 = vmatprep.subr.mxu0 0.0
    %364 = vmatpush1.msra.mxu0 0.0
    %365 = vmatprep.subr.mxu0 0.0
    %366 = vmatpush1.msra.mxu0 0.0
    %367 = vmatprep.subr.mxu0 0.0
    %368 = vmatpush1.msra.mxu0 0.0
    %369 = vmatprep.subr.mxu0 0.0
    %370 = vmatpush1.msra.mxu0 0.0
    %371 = vmatprep.mubr.f32.mxu0 0.0
    %372 = vmatmul.mubr.f32.gmra.mrb[0].mxu0 %v305
    %v373 = vpop.f32.mrb[0].mxu0
    %v374 = vadd.f32 0.0, %v373
    %v375 = vpop.f32.mrb[0].mxu0
    %376 = vdwg.mxu0
    %v377 = vadd.f32 %v219, %v374
    %v378 = vmul.f32 %v377, 0.35355338
    %v379 = vld [vmem:[%s5] sm:$0xff]
    %v380 = vld [vmem:[%s6] sm:$0x1]
    %v382 = vlaneseq
    %v383 = vshrl.u32 %v382, 7
    %v384 = vsub.s32 0, %v383
    %v385 = vrot.slane %v380, %v384
    %v387 = vsel %vm230, %v137, 0
    %389 = vmatprep.subr.mxu0 0.0
    %390 = vmatpush1.msra.mxu0 %v379
    %391 = vmatprep.subr.mxu0 0.0
    %392 = vmatpush1.msra.mxu0 0.0
    %393 = vmatprep.subr.mxu0 0.0
    %394 = vmatpush1.msra.mxu0 0.0
    %395 = vmatprep.subr.mxu0 0.0
    %396 = vmatpush1.msra.mxu0 0.0
    %397 = vmatprep.subr.mxu0 0.0
    %398 = vmatpush1.msra.mxu0 0.0
    %399 = vmatprep.subr.mxu0 0.0
    %400 = vmatpush1.msra.mxu0 0.0
    %401 = vmatprep.subr.mxu0 0.0
    %402 = vmatpush1.msra.mxu0 0.0
    %403 = vmatprep.subr.mxu0 0.0
    %404 = vmatpush1.msra.mxu0 0.0
    %405 = vmatprep.subr.mxu0 0.0
    %406 = vmatpush1.msra.mxu0 0.0
    %407 = vmatprep.subr.mxu0 0.0
    %408 = vmatpush1.msra.mxu0 0.0
    %409 = vmatprep.subr.mxu0 0.0
    %410 = vmatpush1.msra.mxu0 0.0
    %411 = vmatprep.subr.mxu0 0.0
    %412 = vmatpush1.msra.mxu0 0.0
    %413 = vmatprep.subr.mxu0 0.0
    %414 = vmatpush1.msra.mxu0 0.0
    %415 = vmatprep.subr.mxu0 0.0
    %416 = vmatpush1.msra.mxu0 0.0
    %417 = vmatprep.subr.mxu0 0.0
    %418 = vmatpush1.msra.mxu0 0.0
    %419 = vmatprep.subr.mxu0 0.0
    %420 = vmatpush1.msra.mxu0 0.0
    %421 = vmatprep.subr.mxu0 0.0
    %422 = vmatpush1.msra.mxu0 0.0
    %423 = vmatprep.subr.mxu0 0.0
    %424 = vmatpush1.msra.mxu0 0.0
    %425 = vmatprep.subr.mxu0 0.0
    %426 = vmatpush1.msra.mxu0 0.0
    %427 = vmatprep.subr.mxu0 0.0
    %428 = vmatpush1.msra.mxu0 0.0
    %429 = vmatprep.subr.mxu0 0.0
    %430 = vmatpush1.msra.mxu0 0.0
    %431 = vmatprep.subr.mxu0 0.0
    %432 = vmatpush1.msra.mxu0 0.0
    %433 = vmatprep.subr.mxu0 0.0
    %434 = vmatpush1.msra.mxu0 0.0
    %435 = vmatprep.subr.mxu0 0.0
    %436 = vmatpush1.msra.mxu0 0.0
    %437 = vmatprep.subr.mxu0 0.0
    %438 = vmatpush1.msra.mxu0 0.0
    %439 = vmatprep.subr.mxu0 0.0
    %440 = vmatpush1.msra.mxu0 0.0
    %441 = vmatprep.subr.mxu0 0.0
    %442 = vmatpush1.msra.mxu0 0.0
    %443 = vmatprep.subr.mxu0 0.0
    %444 = vmatpush1.msra.mxu0 0.0
    %445 = vmatprep.subr.mxu0 0.0
    %446 = vmatpush1.msra.mxu0 0.0
    %447 = vmatprep.subr.mxu0 0.0
    %448 = vmatpush1.msra.mxu0 0.0
    %449 = vmatprep.subr.mxu0 0.0
    %450 = vmatpush1.msra.mxu0 0.0
    %451 = vmatprep.subr.mxu0 0.0
    %452 = vmatpush1.msra.mxu0 0.0
    %453 = vmatprep.mubr.f32.mxu0 0.0
    %454 = vmatmul.mubr.f32.gmra.mrb[0].mxu0 %v387
    %v455 = vpop.f32.mrb[0].mxu0
    %v456 = vadd.f32 %v385, %v455
    %v457 = vpop.f32.mrb[0].mxu0
    %458 = vdwg.mxu0
    %v460 = vsel %vm230, %v456, 0
    %462 = vmatprep.subr.mxu0 0.0
    %463 = vmatpush1.msra.mxu0 %v303
    %464 = vmatprep.subr.mxu0 0.0
    %465 = vmatpush1.msra.mxu0 0.0
    %466 = vmatprep.subr.mxu0 0.0
    %467 = vmatpush1.msra.mxu0 0.0
    %468 = vmatprep.subr.mxu0 0.0
    %469 = vmatpush1.msra.mxu0 0.0
    %470 = vmatprep.subr.mxu0 0.0
    %471 = vmatpush1.msra.mxu0 0.0
    %472 = vmatprep.subr.mxu0 0.0
    %473 = vmatpush1.msra.mxu0 0.0
    %474 = vmatprep.subr.mxu0 0.0
    %475 = vmatpush1.msra.mxu0 0.0
    %476 = vmatprep.subr.mxu0 0.0
    %477 = vmatpush1.msra.mxu0 0.0
    %478 = vmatprep.subr.mxu0 0.0
    %479 = vmatpush1.msra.mxu0 0.0
    %480 = vmatprep.subr.mxu0 0.0
    %481 = vmatpush1.msra.mxu0 0.0
    %482 = vmatprep.subr.mxu0 0.0
    %483 = vmatpush1.msra.mxu0 0.0
    %484 = vmatprep.subr.mxu0 0.0
    %485 = vmatpush1.msra.mxu0 0.0
    %486 = vmatprep.subr.mxu0 0.0
    %487 = vmatpush1.msra.mxu0 0.0
    %488 = vmatprep.subr.mxu0 0.0
    %489 = vmatpush1.msra.mxu0 0.0
    %490 = vmatprep.subr.mxu0 0.0
    %491 = vmatpush1.msra.mxu0 0.0
    %492 = vmatprep.subr.mxu0 0.0
    %493 = vmatpush1.msra.mxu0 0.0
    %494 = vmatprep.subr.mxu0 0.0
    %495 = vmatpush1.msra.mxu0 0.0
    %496 = vmatprep.subr.mxu0 0.0
    %497 = vmatpush1.msra.mxu0 0.0
    %498 = vmatprep.subr.mxu0 0.0
    %499 = vmatpush1.msra.mxu0 0.0
    %500 = vmatprep.subr.mxu0 0.0
    %501 = vmatpush1.msra.mxu0 0.0
    %502 = vmatprep.subr.mxu0 0.0
    %503 = vmatpush1.msra.mxu0 0.0
    %504 = vmatprep.subr.mxu0 0.0
    %505 = vmatpush1.msra.mxu0 0.0
    %506 = vmatprep.subr.mxu0 0.0
    %507 = vmatpush1.msra.mxu0 0.0
    %508 = vmatprep.subr.mxu0 0.0
    %509 = vmatpush1.msra.mxu0 0.0
    %510 = vmatprep.subr.mxu0 0.0
    %511 = vmatpush1.msra.mxu0 0.0
    %512 = vmatprep.subr.mxu0 0.0
    %513 = vmatpush1.msra.mxu0 0.0
    %514 = vmatprep.subr.mxu0 0.0
    %515 = vmatpush1.msra.mxu0 0.0
    %516 = vmatprep.subr.mxu0 0.0
    %517 = vmatpush1.msra.mxu0 0.0
    %518 = vmatprep.subr.mxu0 0.0
    %519 = vmatpush1.msra.mxu0 0.0
    %520 = vmatprep.subr.mxu0 0.0
    %521 = vmatpush1.msra.mxu0 0.0
    %522 = vmatprep.subr.mxu0 0.0
    %523 = vmatpush1.msra.mxu0 0.0
    %524 = vmatprep.subr.mxu0 0.0
    %525 = vmatpush1.msra.mxu0 0.0
    %526 = vmatprep.mubr.f32.mxu0 0.0
    %527 = vmatmul.mubr.f32.gmra.mrb[0].mxu0 %v460
    %v528 = vpop.f32.mrb[0].mxu0
    %v529 = vadd.f32 0.0, %v528
    %v530 = vpop.f32.mrb[0].mxu0
    %531 = vdwg.mxu0
    %v532 = vadd.f32 %v219, %v529
    %533 = vrot.lane.b32.xlu0 %v130, 112
    %v534 = vpop.permute.xlu0 %533
    %v535 = vsel %vm230, %v534, 0
    %537 = vmatprep.subr.mxu0 0.0
    %538 = vmatpush1.msra.mxu0 %v379
    %539 = vmatprep.subr.mxu0 0.0
    %540 = vmatpush1.msra.mxu0 0.0
    %541 = vmatprep.subr.mxu0 0.0
    %542 = vmatpush1.msra.mxu0 0.0
    %543 = vmatprep.subr.mxu0 0.0
    %544 = vmatpush1.msra.mxu0 0.0
    %545 = vmatprep.subr.mxu0 0.0
    %546 = vmatpush1.msra.mxu0 0.0
    %547 = vmatprep.subr.mxu0 0.0
    %548 = vmatpush1.msra.mxu0 0.0
    %549 = vmatprep.subr.mxu0 0.0
    %550 = vmatpush1.msra.mxu0 0.0
    %551 = vmatprep.subr.mxu0 0.0
    %552 = vmatpush1.msra.mxu0 0.0
    %553 = vmatprep.subr.mxu0 0.0
    %554 = vmatpush1.msra.mxu0 0.0
    %555 = vmatprep.subr.mxu0 0.0
    %556 = vmatpush1.msra.mxu0 0.0
    %557 = vmatprep.subr.mxu0 0.0
    %558 = vmatpush1.msra.mxu0 0.0
    %559 = vmatprep.subr.mxu0 0.0
    %560 = vmatpush1.msra.mxu0 0.0
    %561 = vmatprep.subr.mxu0 0.0
    %562 = vmatpush1.msra.mxu0 0.0
    %563 = vmatprep.subr.mxu0 0.0
    %564 = vmatpush1.msra.mxu0 0.0
    %565 = vmatprep.subr.mxu0 0.0
    %566 = vmatpush1.msra.mxu0 0.0
    %567 = vmatprep.subr.mxu0 0.0
    %568 = vmatpush1.msra.mxu0 0.0
    %569 = vmatprep.subr.mxu0 0.0
    %570 = vmatpush1.msra.mxu0 0.0
    %571 = vmatprep.subr.mxu0 0.0
    %572 = vmatpush1.msra.mxu0 0.0
    %573 = vmatprep.subr.mxu0 0.0
    %574 = vmatpush1.msra.mxu0 0.0
    %575 = vmatprep.subr.mxu0 0.0
    %576 = vmatpush1.msra.mxu0 0.0
    %577 = vmatprep.subr.mxu0 0.0
    %578 = vmatpush1.msra.mxu0 0.0
    %579 = vmatprep.subr.mxu0 0.0
    %580 = vmatpush1.msra.mxu0 0.0
    %581 = vmatprep.subr.mxu0 0.0
    %582 = vmatpush1.msra.mxu0 0.0
    %583 = vmatprep.subr.mxu0 0.0
    %584 = vmatpush1.msra.mxu0 0.0
    %585 = vmatprep.subr.mxu0 0.0
    %586 = vmatpush1.msra.mxu0 0.0
    %587 = vmatprep.subr.mxu0 0.0
    %588 = vmatpush1.msra.mxu0 0.0
    %589 = vmatprep.subr.mxu0 0.0
    %590 = vmatpush1.msra.mxu0 0.0
    %591 = vmatprep.subr.mxu0 0.0
    %592 = vmatpush1.msra.mxu0 0.0
    %593 = vmatprep.subr.mxu0 0.0
    %594 = vmatpush1.msra.mxu0 0.0
    %595 = vmatprep.subr.mxu0 0.0
    %596 = vmatpush1.msra.mxu0 0.0
    %597 = vmatprep.subr.mxu0 0.0
    %598 = vmatpush1.msra.mxu0 0.0
    %599 = vmatprep.subr.mxu0 0.0
    %600 = vmatpush1.msra.mxu0 0.0
    %601 = vmatprep.mubr.f32.mxu0 0.0
    %602 = vmatmul.mubr.f32.gmra.mrb[0].mxu0 %v535
    %v603 = vpop.f32.mrb[0].mxu0
    %v604 = vadd.f32 %v385, %v603
    %v605 = vpop.f32.mrb[0].mxu0
    %606 = vdwg.mxu0
    %v608 = vsel %vm230, %v604, 0
    %610 = vmatprep.subr.mxu0 0.0
    %611 = vmatpush1.msra.mxu0 %v303
    %612 = vmatprep.subr.mxu0 0.0
    %613 = vmatpush1.msra.mxu0 0.0
    %614 = vmatprep.subr.mxu0 0.0
    %615 = vmatpush1.msra.mxu0 0.0
    %616 = vmatprep.subr.mxu0 0.0
    %617 = vmatpush1.msra.mxu0 0.0
    %618 = vmatprep.subr.mxu0 0.0
    %619 = vmatpush1.msra.mxu0 0.0
    %620 = vmatprep.subr.mxu0 0.0
    %621 = vmatpush1.msra.mxu0 0.0
    %622 = vmatprep.subr.mxu0 0.0
    %623 = vmatpush1.msra.mxu0 0.0
    %624 = vmatprep.subr.mxu0 0.0
    %625 = vmatpush1.msra.mxu0 0.0
    %626 = vmatprep.subr.mxu0 0.0
    %627 = vmatpush1.msra.mxu0 0.0
    %628 = vmatprep.subr.mxu0 0.0
    %629 = vmatpush1.msra.mxu0 0.0
    %630 = vmatprep.subr.mxu0 0.0
    %631 = vmatpush1.msra.mxu0 0.0
    %632 = vmatprep.subr.mxu0 0.0
    %633 = vmatpush1.msra.mxu0 0.0
    %634 = vmatprep.subr.mxu0 0.0
    %635 = vmatpush1.msra.mxu0 0.0
    %636 = vmatprep.subr.mxu0 0.0
    %637 = vmatpush1.msra.mxu0 0.0
    %638 = vmatprep.subr.mxu0 0.0
    %639 = vmatpush1.msra.mxu0 0.0
    %640 = vmatprep.subr.mxu0 0.0
    %641 = vmatpush1.msra.mxu0 0.0
    %642 = vmatprep.subr.mxu0 0.0
    %643 = vmatpush1.msra.mxu0 0.0
    %644 = vmatprep.subr.mxu0 0.0
    %645 = vmatpush1.msra.mxu0 0.0
    %646 = vmatprep.subr.mxu0 0.0
    %647 = vmatpush1.msra.mxu0 0.0
    %648 = vmatprep.subr.mxu0 0.0
    %649 = vmatpush1.msra.mxu0 0.0
    %650 = vmatprep.subr.mxu0 0.0
    %651 = vmatpush1.msra.mxu0 0.0
    %652 = vmatprep.subr.mxu0 0.0
    %653 = vmatpush1.msra.mxu0 0.0
    %654 = vmatprep.subr.mxu0 0.0
    %655 = vmatpush1.msra.mxu0 0.0
    %656 = vmatprep.subr.mxu0 0.0
    %657 = vmatpush1.msra.mxu0 0.0
    %658 = vmatprep.subr.mxu0 0.0
    %659 = vmatpush1.msra.mxu0 0.0
    %660 = vmatprep.subr.mxu0 0.0
    %661 = vmatpush1.msra.mxu0 0.0
    %662 = vmatprep.subr.mxu0 0.0
    %663 = vmatpush1.msra.mxu0 0.0
    %664 = vmatprep.subr.mxu0 0.0
    %665 = vmatpush1.msra.mxu0 0.0
    %666 = vmatprep.subr.mxu0 0.0
    %667 = vmatpush1.msra.mxu0 0.0
    %668 = vmatprep.subr.mxu0 0.0
    %669 = vmatpush1.msra.mxu0 0.0
    %670 = vmatprep.subr.mxu0 0.0
    %671 = vmatpush1.msra.mxu0 0.0
    %672 = vmatprep.subr.mxu0 0.0
    %673 = vmatpush1.msra.mxu0 0.0
    %674 = vmatprep.mubr.f32.mxu0 0.0
    %675 = vmatmul.mubr.f32.gmra.mrb[0].mxu0 %v608
    %v676 = vpop.f32.mrb[0].mxu0
    %v677 = vadd.f32 0.0, %v676
    %v678 = vpop.f32.mrb[0].mxu0
    %679 = vdwg.mxu0
    %v680 = vadd.f32 %v219, %v677
    %681 = vrot.lane.b32.xlu0 %v130, 104
    %v682 = vpop.permute.xlu0 %681
    %v683 = vsel %vm230, %v682, 0
    %685 = vmatprep.subr.mxu0 0.0
    %686 = vmatpush1.msra.mxu0 %v379
    %687 = vmatprep.subr.mxu0 0.0
    %688 = vmatpush1.msra.mxu0 0.0
    %689 = vmatprep.subr.mxu0 0.0
    %690 = vmatpush1.msra.mxu0 0.0
    %691 = vmatprep.subr.mxu0 0.0
    %692 = vmatpush1.msra.mxu0 0.0
    %693 = vmatprep.subr.mxu0 0.0
    %694 = vmatpush1.msra.mxu0 0.0
    %695 = vmatprep.subr.mxu0 0.0
    %696 = vmatpush1.msra.mxu0 0.0
    %697 = vmatprep.subr.mxu0 0.0
    %698 = vmatpush1.msra.mxu0 0.0
    %699 = vmatprep.subr.mxu0 0.0
    %700 = vmatpush1.msra.mxu0 0.0
    %701 = vmatprep.subr.mxu0 0.0
    %702 = vmatpush1.msra.mxu0 0.0
    %703 = vmatprep.subr.mxu0 0.0
    %704 = vmatpush1.msra.mxu0 0.0
    %705 = vmatprep.subr.mxu0 0.0
    %706 = vmatpush1.msra.mxu0 0.0
    %707 = vmatprep.subr.mxu0 0.0
    %708 = vmatpush1.msra.mxu0 0.0
    %709 = vmatprep.subr.mxu0 0.0
    %710 = vmatpush1.msra.mxu0 0.0
    %711 = vmatprep.subr.mxu0 0.0
    %712 = vmatpush1.msra.mxu0 0.0
    %713 = vmatprep.subr.mxu0 0.0
    %714 = vmatpush1.msra.mxu0 0.0
    %715 = vmatprep.subr.mxu0 0.0
    %716 = vmatpush1.msra.mxu0 0.0
    %717 = vmatprep.subr.mxu0 0.0
    %718 = vmatpush1.msra.mxu0 0.0
    %719 = vmatprep.subr.mxu0 0.0
    %720 = vmatpush1.msra.mxu0 0.0
    %721 = vmatprep.subr.mxu0 0.0
    %722 = vmatpush1.msra.mxu0 0.0
    %723 = vmatprep.subr.mxu0 0.0
    %724 = vmatpush1.msra.mxu0 0.0
    %725 = vmatprep.subr.mxu0 0.0
    %726 = vmatpush1.msra.mxu0 0.0
    %727 = vmatprep.subr.mxu0 0.0
    %728 = vmatpush1.msra.mxu0 0.0
    %729 = vmatprep.subr.mxu0 0.0
    %730 = vmatpush1.msra.mxu0 0.0
    %731 = vmatprep.subr.mxu0 0.0
    %732 = vmatpush1.msra.mxu0 0.0
    %733 = vmatprep.subr.mxu0 0.0
    %734 = vmatpush1.msra.mxu0 0.0
    %735 = vmatprep.subr.mxu0 0.0
    %736 = vmatpush1.msra.mxu0 0.0
    %737 = vmatprep.subr.mxu0 0.0
    %738 = vmatpush1.msra.mxu0 0.0
    %739 = vmatprep.subr.mxu0 0.0
    %740 = vmatpush1.msra.mxu0 0.0
    %741 = vmatprep.subr.mxu0 0.0
    %742 = vmatpush1.msra.mxu0 0.0
    %743 = vmatprep.subr.mxu0 0.0
    %744 = vmatpush1.msra.mxu0 0.0
    %745 = vmatprep.subr.mxu0 0.0
    %746 = vmatpush1.msra.mxu0 0.0
    %747 = vmatprep.subr.mxu0 0.0
    %748 = vmatpush1.msra.mxu0 0.0
    %749 = vmatprep.mubr.f32.mxu0 0.0
    %750 = vmatmul.mubr.f32.gmra.mrb[0].mxu0 %v683
    %v751 = vpop.f32.mrb[0].mxu0
    %v752 = vadd.f32 %v385, %v751
    %v753 = vpop.f32.mrb[0].mxu0
    %754 = vdwg.mxu0
    %v756 = vsel %vm230, %v752, 0
    %758 = vmatprep.subr.mxu0 0.0
    %759 = vmatpush1.msra.mxu0 %v303
    %760 = vmatprep.subr.mxu0 0.0
    %761 = vmatpush1.msra.mxu0 0.0
    %762 = vmatprep.subr.mxu0 0.0
    %763 = vmatpush1.msra.mxu0 0.0
    %764 = vmatprep.subr.mxu0 0.0
    %765 = vmatpush1.msra.mxu0 0.0
    %766 = vmatprep.subr.mxu0 0.0
    %767 = vmatpush1.msra.mxu0 0.0
    %768 = vmatprep.subr.mxu0 0.0
    %769 = vmatpush1.msra.mxu0 0.0
    %770 = vmatprep.subr.mxu0 0.0
    %771 = vmatpush1.msra.mxu0 0.0
    %772 = vmatprep.subr.mxu0 0.0
    %773 = vmatpush1.msra.mxu0 0.0
    %774 = vmatprep.subr.mxu0 0.0
    %775 = vmatpush1.msra.mxu0 0.0
    %776 = vmatprep.subr.mxu0 0.0
    %777 = vmatpush1.msra.mxu0 0.0
    %778 = vmatprep.subr.mxu0 0.0
    %779 = vmatpush1.msra.mxu0 0.0
    %780 = vmatprep.subr.mxu0 0.0
    %781 = vmatpush1.msra.mxu0 0.0
    %782 = vmatprep.subr.mxu0 0.0
    %783 = vmatpush1.msra.mxu0 0.0
    %784 = vmatprep.subr.mxu0 0.0
    %785 = vmatpush1.msra.mxu0 0.0
    %786 = vmatprep.subr.mxu0 0.0
    %787 = vmatpush1.msra.mxu0 0.0
    %788 = vmatprep.subr.mxu0 0.0
    %789 = vmatpush1.msra.mxu0 0.0
    %790 = vmatprep.subr.mxu0 0.0
    %791 = vmatpush1.msra.mxu0 0.0
    %792 = vmatprep.subr.mxu0 0.0
    %793 = vmatpush1.msra.mxu0 0.0
    %794 = vmatprep.subr.mxu0 0.0
    %795 = vmatpush1.msra.mxu0 0.0
    %796 = vmatprep.subr.mxu0 0.0
    %797 = vmatpush1.msra.mxu0 0.0
    %798 = vmatprep.subr.mxu0 0.0
    %799 = vmatpush1.msra.mxu0 0.0
    %800 = vmatprep.subr.mxu0 0.0
    %801 = vmatpush1.msra.mxu0 0.0
    %802 = vmatprep.subr.mxu0 0.0
    %803 = vmatpush1.msra.mxu0 0.0
    %804 = vmatprep.subr.mxu0 0.0
    %805 = vmatpush1.msra.mxu0 0.0
    %806 = vmatprep.subr.mxu0 0.0
    %807 = vmatpush1.msra.mxu0 0.0
    %808 = vmatprep.subr.mxu0 0.0
    %809 = vmatpush1.msra.mxu0 0.0
    %810 = vmatprep.subr.mxu0 0.0
    %811 = vmatpush1.msra.mxu0 0.0
    %812 = vmatprep.subr.mxu0 0.0
    %813 = vmatpush1.msra.mxu0 0.0
    %814 = vmatprep.subr.mxu0 0.0
    %815 = vmatpush1.msra.mxu0 0.0
    %816 = vmatprep.subr.mxu0 0.0
    %817 = vmatpush1.msra.mxu0 0.0
    %818 = vmatprep.subr.mxu0 0.0
    %819 = vmatpush1.msra.mxu0 0.0
    %820 = vmatprep.subr.mxu0 0.0
    %821 = vmatpush1.msra.mxu0 0.0
    %822 = vmatprep.mubr.f32.mxu0 0.0
    %823 = vmatmul.mubr.f32.gmra.mrb[0].mxu0 %v756
    %v824 = vpop.f32.mrb[0].mxu0
    %v825 = vadd.f32 0.0, %v824
    %v826 = vpop.f32.mrb[0].mxu0
    %827 = vdwg.mxu0
    %v828 = vadd.f32 %v219, %v825
    %v829 = vld [vmem:[%s10] sm:$0xff]
    %v830 = vmul.f32 %v378, %v532
    %v831 = vsel %vm133, %v830, 0.0
    %832 = vadd.xlane.f32.xlu0 %v831
    %v833 = vpop.xlane.xlu0 %832
    %v834 = vmul.f32 %v378, %v680
    %v835 = vsel %vm133, %v834, 0.0
    %836 = vadd.xlane.f32.xlu0 %v835
    %v837 = vpop.xlane.xlu0 %836
    %v838 = vmul.f32 %v378, %v828
    %v839 = vsel %vm133, %v838, 0.0
    %840 = vadd.xlane.f32.xlu0 %v839
    %v841 = vpop.xlane.xlu0 %840
    %v842 = vmax.f32 %v833, %v837
    %v843 = vmax.f32 %v842, %v841
    %v844 = vsub.f32 %v833, %v843
    %v845 = vmul.f32 %v844, 1.442695
    %v846 = vpow.pop %v845
    %v847 = vsub.f32 %v837, %v843
    %v848 = vmul.f32 %v847, 1.442695
    %v849 = vpow.pop %v848
    %v850 = vsub.f32 %v841, %v843
    %v851 = vmul.f32 %v850, 1.442695
    %v852 = vpow.pop %v851
    %v853 = vadd.f32 %v846, %v849
    %v854 = vadd.f32 %v853, %v852
    %v855 = vrcp.pop %v854
    %v856 = vmul.f32 1.0, %v855
    %v857 = vmul.f32 %v846, %v856
    %v858 = vmul.f32 %v849, %v856
    %v859 = vmul.f32 %v852, %v856
    %v860 = vmul.f32 %v857, %v456
    %v861 = vmul.f32 %v858, %v604
    %v862 = vadd.f32 %v860, %v861
    %v863 = vmul.f32 %v859, %v752
    %v864 = vadd.f32 %v862, %v863
    %v865 = vld [vmem:[%s11] sm:$0x1]
    %v867 = vlaneseq
    %v868 = vshrl.u32 %v867, 7
    %v869 = vsub.s32 0, %v868
    %v870 = vrot.slane %v865, %v869
    %873 = vrot.lane.b32.xlu0 %v864, 120
    %v874 = vpop.permute.xlu0 %873
    %v875 = vsel %vm230, %v874, 0
    %877 = vmatprep.subr.mxu0 0.0
    %878 = vmatpush1.msra.mxu0 %v829
    %879 = vmatprep.subr.mxu0 0.0
    %880 = vmatpush1.msra.mxu0 0.0
    %881 = vmatprep.subr.mxu0 0.0
    %882 = vmatpush1.msra.mxu0 0.0
    %883 = vmatprep.subr.mxu0 0.0
    %884 = vmatpush1.msra.mxu0 0.0
    %885 = vmatprep.subr.mxu0 0.0
    %886 = vmatpush1.msra.mxu0 0.0
    %887 = vmatprep.subr.mxu0 0.0
    %888 = vmatpush1.msra.mxu0 0.0
    %889 = vmatprep.subr.mxu0 0.0
    %890 = vmatpush1.msra.mxu0 0.0
    %891 = vmatprep.subr.mxu0 0.0
    %892 = vmatpush1.msra.mxu0 0.0
    %893 = vmatprep.subr.mxu0 0.0
    %894 = vmatpush1.msra.mxu0 0.0
    %895 = vmatprep.subr.mxu0 0.0
    %896 = vmatpush1.msra.mxu0 0.0
    %897 = vmatprep.subr.mxu0 0.0
    %898 = vmatpush1.msra.mxu0 0.0
    %899 = vmatprep.subr.mxu0 0.0
    %900 = vmatpush1.msra.mxu0 0.0
    %901 = vmatprep.subr.mxu0 0.0
    %902 = vmatpush1.msra.mxu0 0.0
    %903 = vmatprep.subr.mxu0 0.0
    %904 = vmatpush1.msra.mxu0 0.0
    %905 = vmatprep.subr.mxu0 0.0
    %906 = vmatpush1.msra.mxu0 0.0
    %907 = vmatprep.subr.mxu0 0.0
    %908 = vmatpush1.msra.mxu0 0.0
    %909 = vmatprep.subr.mxu0 0.0
    %910 = vmatpush1.msra.mxu0 0.0
    %911 = vmatprep.subr.mxu0 0.0
    %912 = vmatpush1.msra.mxu0 0.0
    %913 = vmatprep.subr.mxu0 0.0
    %914 = vmatpush1.msra.mxu0 0.0
    %915 = vmatprep.subr.mxu0 0.0
    %916 = vmatpush1.msra.mxu0 0.0
    %917 = vmatprep.subr.mxu0 0.0
    %918 = vmatpush1.msra.mxu0 0.0
    %919 = vmatprep.subr.mxu0 0.0
    %920 = vmatpush1.msra.mxu0 0.0
    %921 = vmatprep.subr.mxu0 0.0
    %922 = vmatpush1.msra.mxu0 0.0
    %923 = vmatprep.subr.mxu0 0.0
    %924 = vmatpush1.msra.mxu0 0.0
    %925 = vmatprep.subr.mxu0 0.0
    %926 = vmatpush1.msra.mxu0 0.0
    %927 = vmatprep.subr.mxu0 0.0
    %928 = vmatpush1.msra.mxu0 0.0
    %929 = vmatprep.subr.mxu0 0.0
    %930 = vmatpush1.msra.mxu0 0.0
    %931 = vmatprep.subr.mxu0 0.0
    %932 = vmatpush1.msra.mxu0 0.0
    %933 = vmatprep.subr.mxu0 0.0
    %934 = vmatpush1.msra.mxu0 0.0
    %935 = vmatprep.subr.mxu0 0.0
    %936 = vmatpush1.msra.mxu0 0.0
    %937 = vmatprep.subr.mxu0 0.0
    %938 = vmatpush1.msra.mxu0 0.0
    %939 = vmatprep.subr.mxu0 0.0
    %940 = vmatpush1.msra.mxu0 0.0
    %941 = vmatprep.mubr.f32.mxu0 0.0
    %942 = vmatmul.mubr.f32.gmra.mrb[0].mxu0 %v875
    %v943 = vpop.f32.mrb[0].mxu0
    %v944 = vadd.f32 %v870, %v943
    %v945 = vpop.f32.mrb[0].mxu0
    %946 = vdwg.mxu0
    %947 = vst.msk [vmem:[#allocation4] sm:$0x3] %vm133, %v944
    %vm948 = vcmask 1024
    %949 = vst.msk [vmem:[#allocation6] sm:$0x3] %vm948, %v857
    %vm950 = vcmask 9224
    %951 = vst.msk [vmem:[#allocation6] sm:$0x3] %vm950, %v858
    %vm952 = vcmask 17424
    %953 = vst.msk [vmem:[#allocation6] sm:$0x3] %vm952, %v859
    // Predicated region
    $region50: #{multihead_dqn_forward.7} parent=1 // pred_check
      _
    $region51: #{multihead_dqn_forward.7} parent=1 // pred_check_branch
      %955 = sbr.rel (0) target = $region53
    $region52: #{multihead_dqn_forward.7} parent=1 // pred_region
      %s957 = ssub.s32 32, 32
      %958 = vsyncadd [#allocation3], %s957
      %s960 = sshll.u32 [#allocation2], 4
      %s961 = int_to_ptr.vmem [resolvable:$true] %s960
      %963 = dma.vmem_to_hbm [thread:$0]  %s961, 32, %s12, [#allocation3]
    $region53: #{multihead_dqn_forward.7} parent=1 // pred_fallthru
      _
    // Predicated region
    $region54: #{multihead_dqn_forward.7} parent=1 // pred_check
      _
    $region55: #{multihead_dqn_forward.7} parent=1 // pred_check_branch
      %965 = sbr.rel (0) target = $region57
    $region56: #{multihead_dqn_forward.7} parent=1 // pred_region
      _
    $region57: #{multihead_dqn_forward.7} parent=1 // pred_fallthru
      _
    // Predicated region
    $region58: #{multihead_dqn_forward.7} parent=1 // pred_check
      _
    $region59: #{multihead_dqn_forward.7} parent=1 // pred_check_branch
      %967 = sbr.rel (0) target = $region61
    $region60: #{multihead_dqn_forward.7} parent=1 // pred_region
      %s969 = ssub.s32 32, 32
      %970 = vsyncadd [#allocation5], %s969
      %s972 = sshll.u32 [#allocation4], 4
      %s973 = int_to_ptr.vmem [resolvable:$true] %s972
      %975 = dma.vmem_to_hbm [thread:$0]  %s973, 32, %s14, [#allocation5]
    $region61: #{multihead_dqn_forward.7} parent=1 // pred_fallthru
      _
    // Predicated region
    $region62: #{multihead_dqn_forward.7} parent=1 // pred_check
      _
    $region63: #{multihead_dqn_forward.7} parent=1 // pred_check_branch
      %977 = sbr.rel (0) target = $region65
    $region64: #{multihead_dqn_forward.7} parent=1 // pred_region
      %s979 = ssub.s32 32, 32
      %980 = vsyncadd [#allocation5], %s979
      %s982 = sshll.u32 [#allocation6], 4
      %s983 = int_to_ptr.vmem [resolvable:$true] %s982
      %985 = dma.vmem_to_hbm [thread:$0]  %s983, 32, %s15, [#allocation5]
    $region65: #{multihead_dqn_forward.7} parent=1 // pred_fallthru
      _
    // Predicated region
    $region66: #{multihead_dqn_forward.7} parent=1 // pred_check
      _
    $region67: #{multihead_dqn_forward.7} parent=1 // pred_check_branch
      %987 = sbr.rel (0) target = $region69
    $region68: #{multihead_dqn_forward.7} parent=1 // pred_region
      %988 = dma.done [#allocation3], 32
    $region69: #{multihead_dqn_forward.7} parent=1 // pred_fallthru
      _
    // Predicated region
    $region70: #{multihead_dqn_forward.7} parent=1 // pred_check
      _
    $region71: #{multihead_dqn_forward.7} parent=1 // pred_check_branch
      %990 = sbr.rel (0) target = $region73
    $region72: #{multihead_dqn_forward.7} parent=1 // pred_region
      _
    $region73: #{multihead_dqn_forward.7} parent=1 // pred_fallthru
      _
    // Predicated region
    $region74: #{multihead_dqn_forward.7} parent=1 // pred_check
      _
    $region75: #{multihead_dqn_forward.7} parent=1 // pred_check_branch
      %992 = sbr.rel (0) target = $region77
    $region76: #{multihead_dqn_forward.7} parent=1 // pred_region
      %993 = dma.done [#allocation5], 32
    $region77: #{multihead_dqn_forward.7} parent=1 // pred_fallthru
      _
    // Predicated region
    $region78: #{multihead_dqn_forward.7} parent=1 // pred_check
      _
    $region79: #{multihead_dqn_forward.7} parent=1 // pred_check_branch
      %995 = sbr.rel (0) target = $region81
    $region80: #{multihead_dqn_forward.7} parent=1 // pred_region
      %996 = dma.done [#allocation5], 32
    $region81: #{multihead_dqn_forward.7} parent=1 // pred_fallthru
      _
    %997 = vsyncpa [#allocation3], 1
    %998 = vsyncpa [#allocation5], 1

</llo_original>
